<compile_context>
chip_gen: v7x
topology: tpu7x:2x2x1
jax: 0.10.0
libtpu: 0.0.40
codegen_flags: <defaults>
</compile_context>

<pallas_src>
import functools

import jax
import jax.numpy as jnp
from jax.experimental import pallas as pl
from jax.experimental.pallas import tpu as pltpu

H = 50            # PyTorch hidden_size
HP = 64           # lane-padded per-direction hidden size
DP = 2 * HP       # 128: fused bi-directional state / feature width
GW = 3 * DP       # 384: fused (r, z, n) gate width covering both directions


def _round_up(x, m):
    return ((x + m - 1) // m) * m


def _pick_bm(bp, t):
    """Batch rows per grid step (bp is already a multiple of 8)."""
    per_row = t * (GW + DP) * 4                     # gi_scr + out_scr bytes / row
    vmem_cap = max(8, (24 * 1024 * 1024) // max(per_row, 1))
    cap = bp // 2 if bp >= 16 else bp               # >=2 grid steps for v7x's 2 TCs
    cap = min(cap, vmem_cap, 256)                   # v6e MXU likes up to 256 rows
    for cand in (256, 128, 64, 32, 16, 8):
        if cand <= cap and bp % cand == 0:
            return cand
    return 8


# ---------------------------------------------------------------------------
# Fused kernel: biGRU (time-major) + word attention + MLP head.
#   emb_ref : (T, bm, E) bf16     h0_ref : (bm, DP) f32  ([h_fwd | h_bwd])
#   wih     : (E, GW) bf16        bih    : (1, GW) f32   (fused gate layout)
#   whh     : (DP, GW) bf16       bhh    : (1, GW) f32   (block-diagonal per gate)
#   wlb     : (DP, DP) bf16       blb/attw : (1, DP) f32
#   w1/w2/wo: bf16 padded         b1/b2/bo : f32 padded
# outputs (lane-dense, sliced in wrapper):
#   logits (bm, Cpad), probs (bm, Cpad), sm (bm, Tpad), wav (bm, DP)
# ---------------------------------------------------------------------------
def _fused_kernel(emb_ref, h0_ref,
                  wih_ref, bih_ref, whh_ref, bhh_ref,
                  wlb_ref, blb_ref, attw_ref,
                  w1_ref, b1_ref, w2_ref, b2_ref, wo_ref, bo_ref,
                  logits_ref, probs_ref, sm_ref, wav_ref,
                  gi_scr, out_scr,
                  *, num_classes):
    T, bm, E = emb_ref.shape

    # ---- hoisted input->hidden projection: one GEMM for all timesteps, both dirs.
    # (cast through f32 before the leading-dim-collapse reshape -- known-good layout
    #  path; the HBM->VMEM DMA itself stays bf16.)
    emb_flat = (emb_ref[...].astype(jnp.float32)
                .reshape(T * bm, E).astype(jnp.bfloat16))
    gi = jnp.dot(emb_flat, wih_ref[...],
                 preferred_element_type=jnp.float32) + bih_ref[...]   # (T*bm, GW)
    gi_scr[...] = gi.reshape(T, bm, GW)

    # ---- time-reverse the backward half-lanes ONCE (outside the serial loop) so
    # gi_scr[t] already holds [fwd gates @ t | bwd gates @ T-1-t] and every in-loop
    # slice is 128-lane aligned.
    lane = jax.lax.broadcasted_iota(jnp.int32, (bm, GW), 1)
    is_fwd = (lane % DP) < HP
    for t in range(T // 2):
        a = gi_scr[t]
        b = gi_scr[T - 1 - t]
        gi_scr[t] = jnp.where(is_fwd, a, b)
        gi_scr[T - 1 - t] = jnp.where(is_fwd, b, a)

    whh = whh_ref[...]        # (DP, GW) bf16, block-diagonal per gate
    bhh = bhh_ref[...]        # (1, GW)  f32

    # ---- recurrent loop: ONE (bm,128)x(128,384) matmul + full-vreg gate math/step.
    # Fully unrolled for small static T; switch to lax.fori_loop(unroll=2..4) with
    # pl.ds indexing once T grows beyond ~32-64.
    h = h0_ref[...]           # (bm, DP) f32 carry = [h_fwd | h_bwd]
    for t in range(T):
        gi_t = gi_scr[t]                                              # (bm, GW)
        gh = jnp.dot(h.astype(jnp.bfloat16), whh,
                     preferred_element_type=jnp.float32) + bhh        # (bm, GW)
        r = jax.nn.sigmoid(gi_t[:, 0:DP] + gh[:, 0:DP])
        z = jax.nn.sigmoid(gi_t[:, DP:2 * DP] + gh[:, DP:2 * DP])
        n = jnp.tanh(gi_t[:, 2 * DP:3 * DP] + r * gh[:, 2 * DP:3 * DP])
        h = (1.0 - z) * n + z * h
        out_scr[t, :, 0:HP] = h[:, 0:HP]              # fwd output at time t
        out_scr[T - 1 - t, :, HP:DP] = h[:, HP:DP]    # bwd output at time T-1-t

    out3 = out_scr[...]                               # (T, bm, DP); padded lanes 0
    out_flat = out3.reshape(T * bm, DP)

    # ---- word attention: mlp = tanh(lin_bias(out)); scores = mlp . att_weight
    mlp = jnp.tanh(jnp.dot(out_flat.astype(jnp.bfloat16), wlb_ref[...],
                           preferred_element_type=jnp.float32) + blb_ref[...])
    attw3 = attw_ref[...][None]                                   # (1, 1, DP)
    scores3 = jnp.sum(mlp.reshape(T, bm, DP) * attw3,
                      axis=2, keepdims=True)                      # (T, bm, 1)

    m3 = jnp.max(scores3, axis=0, keepdims=True)
    e3 = jnp.exp(scores3 - m3)
    sm3 = e3 * pl.reciprocal(jnp.sum(e3, axis=0, keepdims=True), approx=True)

    # lane-dense (bm, Tpad) attention-weight output.
    # NOTE: one-hot expand is O(T*bm*Tpad) VPU work -- noise at small T; for long
    # sequences replace with a transpose / identity-matmul.
    Tpad = sm_ref.shape[1]
    t_ids = jax.lax.broadcasted_iota(jnp.int32, (T, 1, Tpad), 0)
    l_ids = jax.lax.broadcasted_iota(jnp.int32, (T, 1, Tpad), 2)
    onehot = (t_ids == l_ids).astype(jnp.float32)
    sm_ref[...] = jnp.sum(sm3 * onehot, axis=0)                   # (bm, Tpad)

    wav = jnp.sum(sm3 * out3, axis=0)                             # (bm, DP)
    wav_ref[...] = wav

    # ---- MLP head (bf16 MXU, f32 accumulate)
    h1 = jnp.maximum(jnp.dot(wav.astype(jnp.bfloat16), w1_ref[...],
                             preferred_element_type=jnp.float32) + b1_ref[...], 0.0)
    h2 = jnp.maximum(jnp.dot(h1.astype(jnp.bfloat16), w2_ref[...],
                             preferred_element_type=jnp.float32) + b2_ref[...], 0.0)
    # TODO(synk): nn.Dropout(p=0.6) is stochastic in training mode; treated as
    # eval-mode identity here.
    logits = jnp.dot(h2.astype(jnp.bfloat16), wo_ref[...],
                     preferred_element_type=jnp.float32) + bo_ref[...]
    logits_ref[...] = logits

    col = jax.lax.broadcasted_iota(jnp.int32, logits.shape, 1)
    masked = jnp.where(col < num_classes, logits, -1e30)
    lmax = jnp.max(masked, axis=1, keepdims=True)
    le = jnp.exp(masked - lmax)
    probs_ref[...] = le * pl.reciprocal(jnp.sum(le, axis=1, keepdims=True),
                                        approx=True)


# ---------------------------------------------------------------------------
# pallas_call wrapper (batch-parallel grid)
# ---------------------------------------------------------------------------
def _vmem_limit_bytes(T, bm, E, Cpad, Tpad, params):
    scr = T * bm * (GW + DP) * 4                     # f32 scratch slabs
    emb = 2 * T * bm * E * 2                         # bf16 emb block, double-buffered
    h0 = 2 * bm * DP * 4
    weights = sum(int(v.size) * v.dtype.itemsize for v in params.values())
    outs = 2 * bm * (2 * Cpad + Tpad + DP) * 4
    est = scr + emb + h0 + weights + outs
    return int(min(64 << 20, max(16 << 20, (est * 3) // 2 + (2 << 20))))


def run_fused(emb_tm, h0p, p, *, num_classes):
    T, Bp, E = emb_tm.shape
    bm = _pick_bm(Bp, T)
    Tpad = _round_up(T, 128)
    Cpad = _round_up(num_classes, 128)
    grid = (Bp // bm,)

    def wspec(arr):       # grid-invariant 2-D weights: single-buffered
        return pl.BlockSpec(arr.shape, lambda i: (0, 0),
                            pipeline_mode=pl.Buffered(1))

    in_specs = [
        pl.BlockSpec((T, bm, E), lambda i: (0, i, 0)),     # emb (time-major, bf16)
        pl.BlockSpec((bm, DP), lambda i: (i, 0)),          # fused h0
        wspec(p['wih']), wspec(p['bih']), wspec(p['whh']), wspec(p['bhh']),
        wspec(p['wlb']), wspec(p['blb']), wspec(p['attw']),
        wspec(p['w1']), wspec(p['b1']), wspec(p['w2']), wspec(p['b2']),
        wspec(p['wo']), wspec(p['bo']),
    ]
    out_specs = (
        pl.BlockSpec((bm, Cpad), lambda i: (i, 0)),
        pl.BlockSpec((bm, Cpad), lambda i: (i, 0)),
        pl.BlockSpec((bm, Tpad), lambda i: (i, 0)),
        pl.BlockSpec((bm, DP), lambda i: (i, 0)),
    )
    out_shape = (
        jax.ShapeDtypeStruct((Bp, Cpad), jnp.float32),
        jax.ShapeDtypeStruct((Bp, Cpad), jnp.float32),
        jax.ShapeDtypeStruct((Bp, Tpad), jnp.float32),
        jax.ShapeDtypeStruct((Bp, DP), jnp.float32),
    )
    scratch_shapes = [
        pltpu.VMEM((T, bm, GW), jnp.float32),   # hoisted fused gate pre-activations
        pltpu.VMEM((T, bm, DP), jnp.float32),   # biGRU output slab
    ]
    fn = pl.pallas_call(
        functools.partial(_fused_kernel, num_classes=num_classes),
        out_shape=out_shape,
        grid=grid,
        in_specs=in_specs,
        out_specs=out_specs,
        scratch_shapes=scratch_shapes,
        compiler_params=pltpu.CompilerParams(
            dimension_semantics=("parallel",),
            vmem_limit_bytes=_vmem_limit_bytes(T, bm, E, Cpad, Tpad, p)),
    )
    return fn(emb_tm, h0p,
              p['wih'], p['bih'], p['whh'], p['bhh'],
              p['wlb'], p['blb'], p['attw'],
              p['w1'], p['b1'], p['w2'], p['b2'], p['wo'], p['bo'])


@functools.partial(jax.jit, static_argnames=('num_classes',))
def attention_forward(x, h0, emb_table, params, *, num_classes):
    B, T = x.shape
    # embedding gather directly into time-major bf16 (halves the kernel's input DMA)
    emb = jnp.take(emb_table, x.T, axis=0).astype(jnp.bfloat16)    # (T, B, E)
    Bp = _round_up(B, 8)                                           # tile-aligned batch
    emb = jnp.pad(emb, ((0, 0), (0, Bp - B), (0, 0)))
    # fused initial state [h_fwd | h_bwd]; padded lanes zero => stay zero in the GRU
    h0p = jnp.zeros((Bp, DP), jnp.float32)
    h0p = h0p.at[:B, 0:H].set(h0[0])
    h0p = h0p.at[:B, HP:HP + H].set(h0[1])
    logits_p, probs_p, sm_p, wav_p = run_fused(emb, h0p, params,
                                               num_classes=num_classes)
    logits = logits_p[:B, :num_classes]
    probs = probs_p[:B, :num_classes]
    sm_out2 = sm_p[:B, :T]
    wav = jnp.concatenate([wav_p[:B, 0:H], wav_p[:B, HP:HP + H]], axis=1)
    # matches PyTorch return: (out_o, softmax(out_o), sm_out2, word_attn_vectors)
    return logits, probs, sm_out2, wav


# ---------------------------------------------------------------------------
# Deterministic parameter init (PyTorch-convention shapes) + kernel-layout prep
# ---------------------------------------------------------------------------
def init_raw_params(key, emb_size, num_classes, vocab_size):
    ks = jax.random.split(key, 16)

    def u(k, shape, bound):
        return jax.random.uniform(k, shape, jnp.float32, -bound, bound)

    emb_table = jax.random.normal(ks[0], (vocab_size, emb_size), jnp.float32)
    emb_table = emb_table.at[0].set(0.0)                     # padding_idx = 0

    kg = 1.0 / float(H) ** 0.5
    raw = dict(
        wih_f=u(ks[1], (3 * H, emb_size), kg), whh_f=u(ks[2], (3 * H, H), kg),
        bih_f=u(ks[3], (3 * H,), kg), bhh_f=u(ks[4], (3 * H,), kg),
        wih_b=u(ks[5], (3 * H, emb_size), kg), whh_b=u(ks[6], (3 * H, H), kg),
        bih_b=u(ks[7], (3 * H,), kg), bhh_b=u(ks[8], (3 * H,), kg),
        att_weight=jax.random.uniform(ks[9], (2 * H, 1), jnp.float32),  # torch.rand
    )

    def linear(k, in_f, out_f):
        kb = 1.0 / float(in_f) ** 0.5
        k1, k2 = jax.random.split(k)
        return u(k1, (out_f, in_f), kb), u(k2, (out_f,), kb)  # PyTorch (out,in),(out,)

    raw['wlb'], raw['blb'] = linear(ks[10], 2 * H, 2 * H)
    raw['w1'], raw['b1'] = linear(ks[11], 2 * H, 500)
    raw['w2'], raw['b2'] = linear(ks[12], 500, 1000)
    raw['wo'], raw['bo'] = linear(ks[13], 1000, num_classes)
    return emb_table, raw


def prepare_params(raw, num_classes):
    f32, bf16 = jnp.float32, jnp.bfloat16
    Cpad = _round_up(num_classes, 128)

    # ---- fused GRU layouts: gate columns [r_f|r_b][z_f|z_b][n_f|n_b] (128 each) ----
    def fuse_ih(w_f, w_b):                  # PyTorch (3H, E) each -> (E, GW)
        e = w_f.shape[1]
        out = jnp.zeros((e, GW), f32)
        wtf, wtb = w_f.T, w_b.T
        for g in range(3):
            out = out.at[:, g * DP:g * DP + H].set(wtf[:, g * H:(g + 1) * H])
            out = out.at[:, g * DP + HP:g * DP + HP + H].set(wtb[:, g * H:(g + 1) * H])
        return out

    def fuse_b(b_f, b_b):                   # (3H,) each -> (1, GW)
        out = jnp.zeros((1, GW), f32)
        for g in range(3):
            out = out.at[0, g * DP:g * DP + H].set(b_f[g * H:(g + 1) * H])
            out = out.at[0, g * DP + HP:g * DP + HP + H].set(b_b[g * H:(g + 1) * H])
        return out

    def fuse_hh(w_f, w_b):                  # PyTorch (3H, H) each -> block-diag (DP, GW)
        out = jnp.zeros((DP, GW), f32)
        wtf, wtb = w_f.T, w_b.T             # (H, 3H)
        for g in range(3):
            out = out.at[0:H, g * DP:g * DP + H].set(wtf[:, g * H:(g + 1) * H])
            out = out.at[HP:HP + H, g * DP + HP:g * DP + HP + H].set(
                wtb[:, g * H:(g + 1) * H])
        return out

    def pad_rows(w_t, rpad):                 # (r, c) -> (rpad, c)
        out = jnp.zeros((rpad, w_t.shape[1]), f32)
        return out.at[:w_t.shape[0], :].set(w_t)

    def pad_cols(w, cpad):                   # (r, c) -> (r, cpad)
        out = jnp.zeros((w.shape[0], cpad), f32)
        return out.at[:, :w.shape[1]].set(w)

    def pad_rows_bidir(w_t):                 # (2H, c) -> (DP, c); fwd rows 0..H-1, bwd HP..HP+H-1
        out = jnp.zeros((DP, w_t.shape[1]), f32)
        out = out.at[0:H, :].set(w_t[0:H, :])
        out = out.at[HP:HP + H, :].set(w_t[H:2 * H, :])
        return out

    def pad_vec(b, cpad):
        out = jnp.zeros((1, cpad), f32)
        return out.at[0, :b.shape[0]].set(b)

    return dict(
        wih=fuse_ih(raw['wih_f'], raw['wih_b']).astype(bf16),
        bih=fuse_b(raw['bih_f'], raw['bih_b']),
        whh=fuse_hh(raw['whh_f'], raw['whh_b']).astype(bf16),
        bhh=fuse_b(raw['bhh_f'], raw['bhh_b']),
        wlb=pad_cols(pad_rows_bidir(raw['wlb'].T), DP).astype(bf16),
        blb=pad_vec(raw['blb'], DP),
        attw=pad_vec(raw['att_weight'][:, 0], DP),
        w1=pad_cols(pad_rows_bidir(raw['w1'].T), 512).astype(bf16),
        b1=pad_vec(raw['b1'], 512),
        w2=pad_cols(pad_rows(raw['w2'].T, 512), 1024).astype(bf16),
        b2=pad_vec(raw['b2'], 1024),
        wo=pad_cols(pad_rows(raw['wo'].T, 1024), Cpad).astype(bf16),
        bo=pad_vec(raw['bo'], Cpad),
    )


if __name__ == "__main__":
    B, T = 2, 8
    emb_size, num_classes, vocab_size = 32, 5, 20

    key = jax.random.PRNGKey(0)
    kp, kx, kh = jax.random.split(key, 3)

    emb_table, raw = init_raw_params(kp, emb_size, num_classes, vocab_size)
    params = prepare_params(raw, num_classes)

    x = jax.random.randint(kx, (B, T), 0, vocab_size, dtype=jnp.int32)
    x = x.at[0, -2:].set(0)                         # a couple of PAD tokens
    # init_hidden uses torch.randn each call -> deterministic random h0 here
    h0 = jax.random.normal(kh, (2, B, H), jnp.float32)

    outs = attention_forward(x, h0, emb_table, params, num_classes=num_classes)
    outs = jax.block_until_ready(outs)
    logits, probs, sm_out2, wav = outs

    assert logits.shape == (B, num_classes)
    assert probs.shape == (B, num_classes)
    assert sm_out2.shape == (B, T)
    assert wav.shape == (B, 2 * H)
    assert all(bool(jnp.all(jnp.isfinite(o))) for o in outs)
    # attention weights and class probabilities should each sum to ~1
    # (5e-3 tolerance: softmax denominators use the approximate EUP reciprocal)
    assert bool(jnp.all(jnp.abs(jnp.sum(sm_out2, axis=1) - 1.0) < 5e-3))
    assert bool(jnp.all(jnp.abs(jnp.sum(probs, axis=1) - 1.0) < 5e-3))

    print("KERNEL_OK")
</pallas_src>

<mosaic_0001>
module attributes {stable_mosaic.version = 11 : i64} {
  func.func @_fused_kernel(%arg0: i32, %arg1: memref<8x8x32xbf16, #tpu.memory_space<vmem>>, %arg2: memref<8x128xf32, #tpu.memory_space<vmem>>, %arg3: memref<32x384xbf16, #tpu.memory_space<vmem>>, %arg4: memref<1x384xf32, #tpu.memory_space<vmem>>, %arg5: memref<128x384xbf16, #tpu.memory_space<vmem>>, %arg6: memref<1x384xf32, #tpu.memory_space<vmem>>, %arg7: memref<128x128xbf16, #tpu.memory_space<vmem>>, %arg8: memref<1x128xf32, #tpu.memory_space<vmem>>, %arg9: memref<1x128xf32, #tpu.memory_space<vmem>>, %arg10: memref<128x512xbf16, #tpu.memory_space<vmem>>, %arg11: memref<1x512xf32, #tpu.memory_space<vmem>>, %arg12: memref<512x1024xbf16, #tpu.memory_space<vmem>>, %arg13: memref<1x1024xf32, #tpu.memory_space<vmem>>, %arg14: memref<1024x128xbf16, #tpu.memory_space<vmem>>, %arg15: memref<1x128xf32, #tpu.memory_space<vmem>>, %arg16: memref<8x128xf32, #tpu.memory_space<vmem>>, %arg17: memref<8x128xf32, #tpu.memory_space<vmem>>, %arg18: memref<8x128xf32, #tpu.memory_space<vmem>>, %arg19: memref<8x128xf32, #tpu.memory_space<vmem>>, %arg20: memref<8x8x384xf32, #tpu.memory_space<vmem>>, %arg21: memref<8x8x128xf32, #tpu.memory_space<vmem>>) attributes {dimension_semantics = [#tpu.dimension_semantics<parallel>], iteration_bounds = array<i64: 1>, scalar_prefetch = 0 : i64, scratch_operands = 2 : i64, tpu.core_type = #tpu.core_type<tc>, window_params = [{transform_indices = @transform_0, window_bounds = array<i64: 8, 8, 32>}, {transform_indices = @transform_1, window_bounds = array<i64: 8, 128>}, {pipeline_mode = #tpu.pipeline_mode<synchronous>, transform_indices = @transform_2, window_bounds = array<i64: 32, 384>}, {pipeline_mode = #tpu.pipeline_mode<synchronous>, transform_indices = @transform_3, window_bounds = array<i64: 1, 384>}, {pipeline_mode = #tpu.pipeline_mode<synchronous>, transform_indices = @transform_4, window_bounds = array<i64: 128, 384>}, {pipeline_mode = #tpu.pipeline_mode<synchronous>, transform_indices = @transform_5, window_bounds = array<i64: 1, 384>}, {pipeline_mode = #tpu.pipeline_mode<synchronous>, transform_indices = @transform_6, window_bounds = array<i64: 128, 128>}, {pipeline_mode = #tpu.pipeline_mode<synchronous>, transform_indices = @transform_7, window_bounds = array<i64: 1, 128>}, {pipeline_mode = #tpu.pipeline_mode<synchronous>, transform_indices = @transform_8, window_bounds = array<i64: 1, 128>}, {pipeline_mode = #tpu.pipeline_mode<synchronous>, transform_indices = @transform_9, window_bounds = array<i64: 128, 512>}, {pipeline_mode = #tpu.pipeline_mode<synchronous>, transform_indices = @transform_10, window_bounds = array<i64: 1, 512>}, {pipeline_mode = #tpu.pipeline_mode<synchronous>, transform_indices = @transform_11, window_bounds = array<i64: 512, 1024>}, {pipeline_mode = #tpu.pipeline_mode<synchronous>, transform_indices = @transform_12, window_bounds = array<i64: 1, 1024>}, {pipeline_mode = #tpu.pipeline_mode<synchronous>, transform_indices = @transform_13, window_bounds = array<i64: 1024, 128>}, {pipeline_mode = #tpu.pipeline_mode<synchronous>, transform_indices = @transform_14, window_bounds = array<i64: 1, 128>}, {transform_indices = @transform_15, window_bounds = array<i64: 8, 128>}, {transform_indices = @transform_16, window_bounds = array<i64: 8, 128>}, {transform_indices = @transform_17, window_bounds = array<i64: 8, 128>}, {transform_indices = @transform_18, window_bounds = array<i64: 8, 128>}]} {
    %c0 = arith.constant 0 : index
    %c0_0 = arith.constant 0 : index
    %c0_1 = arith.constant 0 : index
    %0 = vector.load %arg1[%c0, %c0_0, %c0_1] : memref<8x8x32xbf16, #tpu.memory_space<vmem>>, vector<8x8x32xbf16>
    %1 = arith.extf %0 : vector<8x8x32xbf16> to vector<8x8x32xf32>
    %2 = vector.shape_cast %1 : vector<8x8x32xf32> to vector<64x32xf32>
    %3 = arith.truncf %2 : vector<64x32xf32> to vector<64x32xbf16>
    %c0_2 = arith.constant 0 : index
    %c0_3 = arith.constant 0 : index
    %4 = vector.load %arg3[%c0_2, %c0_3] : memref<32x384xbf16, #tpu.memory_space<vmem>>, vector<32x384xbf16>
    %cst = arith.constant dense<0.000000e+00> : vector<64x384xf32>
    %5 = tpu.matmul %3, %4, %cst {dimension_numbers = #tpu.dot_dimension_numbers<[1], [0], [0], [1], [0, 0, 1, 1], [], []>} : vector<64x32xbf16>, vector<32x384xbf16>, vector<64x384xf32> -> vector<64x384xf32>
    %c0_4 = arith.constant 0 : index
    %c0_5 = arith.constant 0 : index
    %6 = vector.load %arg4[%c0_4, %c0_5] : memref<1x384xf32, #tpu.memory_space<vmem>>, vector<1x384xf32>
    %7 = vector.broadcast %6 : vector<1x384xf32> to vector<64x384xf32>
    %8 = arith.addf %5, %7 : vector<64x384xf32>
    %9 = vector.shape_cast %8 : vector<64x384xf32> to vector<8x8x384xf32>
    %c0_6 = arith.constant 0 : index
    %c0_7 = arith.constant 0 : index
    %c0_8 = arith.constant 0 : index
    %10 = vector.load %arg20[%c0_6, %c0_7, %c0_8] : memref<8x8x384xf32, #tpu.memory_space<vmem>>, vector<8x8x384xf32>
    tpu.vector_store %arg20[%c0_6, %c0_7, %c0_8], %9 {strides = array<i32>} : memref<8x8x384xf32, #tpu.memory_space<vmem>>, vector<8x8x384xf32>,
    %11 = tpu.iota {dimensions = array<i32: 1>} : vector<8x384xi32>
    %c128_i32 = arith.constant 128 : i32
    %c0_i32 = arith.constant 0 : i32
    %12 = arith.cmpi eq, %c128_i32, %c0_i32 : i32
    %c1_i32 = arith.constant 1 : i32
    %13 = arith.select %12, %c1_i32, %c128_i32 : i32
    %14 = vector.broadcast %13 : i32 to vector<8x384xi32>
    %15 = arith.remsi %11, %14 : vector<8x384xi32>
    %c0_i32_9 = arith.constant 0 : i32
    %16 = vector.broadcast %c0_i32_9 : i32 to vector<8x384xi32>
    %17 = arith.cmpi ne, %15, %16 : vector<8x384xi32>
    %c0_i32_10 = arith.constant 0 : i32
    %18 = vector.broadcast %c0_i32_10 : i32 to vector<8x384xi32>
    %19 = arith.cmpi slt, %15, %18 : vector<8x384xi32>
    %c0_i32_11 = arith.constant 0 : i32
    %20 = arith.cmpi slt, %13, %c0_i32_11 : i32
    %21 = vector.broadcast %20 : i1 to vector<8x384xi1>
    %22 = vector.broadcast %21 : vector<8x384xi1> to vector<8x384xi1>
    %23 = arith.xori %19, %22 : vector<8x384xi1>
    %24 = arith.andi %23, %17 : vector<8x384xi1>
    %25 = vector.broadcast %13 : i32 to vector<8x384xi32>
    %26 = arith.addi %15, %25 : vector<8x384xi32>
    %27 = arith.select %24, %26, %15 : vector<8x384xi1>, vector<8x384xi32>
    %c64_i32 = arith.constant 64 : i32
    %28 = vector.broadcast %c64_i32 : i32 to vector<8x384xi32>
    %29 = arith.cmpi slt, %27, %28 : vector<8x384xi32>
    %c0_12 = arith.constant 0 : index
    %c0_13 = arith.constant 0 : index
    %c0_14 = arith.constant 0 : index
    %30 = vector.load %arg20[%c0_12, %c0_13, %c0_14] : memref<8x8x384xf32, #tpu.memory_space<vmem>>, vector<1x8x384xf32>
    %31 = vector.shape_cast %30 : vector<1x8x384xf32> to vector<8x384xf32>
    %c7 = arith.constant 7 : index
    %c0_15 = arith.constant 0 : index
    %c0_16 = arith.constant 0 : index
    %32 = vector.load %arg20[%c7, %c0_15, %c0_16] : memref<8x8x384xf32, #tpu.memory_space<vmem>>, vector<1x8x384xf32>
    %33 = vector.shape_cast %32 : vector<1x8x384xf32> to vector<8x384xf32>
    %34 = arith.select %29, %31, %33 : vector<8x384xi1>, vector<8x384xf32>
    %c0_17 = arith.constant 0 : index
    %c0_18 = arith.constant 0 : index
    %c0_19 = arith.constant 0 : index
    %35 = vector.load %arg20[%c0_17, %c0_18, %c0_19] : memref<8x8x384xf32, #tpu.memory_space<vmem>>, vector<1x8x384xf32>
    %36 = vector.shape_cast %35 : vector<1x8x384xf32> to vector<8x384xf32>
    %37 = vector.shape_cast %34 : vector<8x384xf32> to vector<1x8x384xf32>
    tpu.vector_store %arg20[%c0_17, %c0_18, %c0_19], %37 {strides = array<i32>} : memref<8x8x384xf32, #tpu.memory_space<vmem>>, vector<1x8x384xf32>,
    %38 = arith.select %29, %33, %31 : vector<8x384xi1>, vector<8x384xf32>
    %c7_20 = arith.constant 7 : index
    %c0_21 = arith.constant 0 : index
    %c0_22 = arith.constant 0 : index
    %39 = vector.load %arg20[%c7_20, %c0_21, %c0_22] : memref<8x8x384xf32, #tpu.memory_space<vmem>>, vector<1x8x384xf32>
    %40 = vector.shape_cast %39 : vector<1x8x384xf32> to vector<8x384xf32>
    %41 = vector.shape_cast %38 : vector<8x384xf32> to vector<1x8x384xf32>
    tpu.vector_store %arg20[%c7_20, %c0_21, %c0_22], %41 {strides = array<i32>} : memref<8x8x384xf32, #tpu.memory_space<vmem>>, vector<1x8x384xf32>,
    %c1 = arith.constant 1 : index
    %c0_23 = arith.constant 0 : index
    %c0_24 = arith.constant 0 : index
    %42 = vector.load %arg20[%c1, %c0_23, %c0_24] : memref<8x8x384xf32, #tpu.memory_space<vmem>>, vector<1x8x384xf32>
    %43 = vector.shape_cast %42 : vector<1x8x384xf32> to vector<8x384xf32>
    %c6 = arith.constant 6 : index
    %c0_25 = arith.constant 0 : index
    %c0_26 = arith.constant 0 : index
    %44 = vector.load %arg20[%c6, %c0_25, %c0_26] : memref<8x8x384xf32, #tpu.memory_space<vmem>>, vector<1x8x384xf32>
    %45 = vector.shape_cast %44 : vector<1x8x384xf32> to vector<8x384xf32>
    %46 = arith.select %29, %43, %45 : vector<8x384xi1>, vector<8x384xf32>
    %c1_27 = arith.constant 1 : index
    %c0_28 = arith.constant 0 : index
    %c0_29 = arith.constant 0 : index
    %47 = vector.load %arg20[%c1_27, %c0_28, %c0_29] : memref<8x8x384xf32, #tpu.memory_space<vmem>>, vector<1x8x384xf32>
    %48 = vector.shape_cast %47 : vector<1x8x384xf32> to vector<8x384xf32>
    %49 = vector.shape_cast %46 : vector<8x384xf32> to vector<1x8x384xf32>
    tpu.vector_store %arg20[%c1_27, %c0_28, %c0_29], %49 {strides = array<i32>} : memref<8x8x384xf32, #tpu.memory_space<vmem>>, vector<1x8x384xf32>,
    %50 = arith.select %29, %45, %43 : vector<8x384xi1>, vector<8x384xf32>
    %c6_30 = arith.constant 6 : index
    %c0_31 = arith.constant 0 : index
    %c0_32 = arith.constant 0 : index
    %51 = vector.load %arg20[%c6_30, %c0_31, %c0_32] : memref<8x8x384xf32, #tpu.memory_space<vmem>>, vector<1x8x384xf32>
    %52 = vector.shape_cast %51 : vector<1x8x384xf32> to vector<8x384xf32>
    %53 = vector.shape_cast %50 : vector<8x384xf32> to vector<1x8x384xf32>
    tpu.vector_store %arg20[%c6_30, %c0_31, %c0_32], %53 {strides = array<i32>} : memref<8x8x384xf32, #tpu.memory_space<vmem>>, vector<1x8x384xf32>,
    %c2 = arith.constant 2 : index
    %c0_33 = arith.constant 0 : index
    %c0_34 = arith.constant 0 : index
    %54 = vector.load %arg20[%c2, %c0_33, %c0_34] : memref<8x8x384xf32, #tpu.memory_space<vmem>>, vector<1x8x384xf32>
    %55 = vector.shape_cast %54 : vector<1x8x384xf32> to vector<8x384xf32>
    %c5 = arith.constant 5 : index
    %c0_35 = arith.constant 0 : index
    %c0_36 = arith.constant 0 : index
    %56 = vector.load %arg20[%c5, %c0_35, %c0_36] : memref<8x8x384xf32, #tpu.memory_space<vmem>>, vector<1x8x384xf32>
    %57 = vector.shape_cast %56 : vector<1x8x384xf32> to vector<8x384xf32>
    %58 = arith.select %29, %55, %57 : vector<8x384xi1>, vector<8x384xf32>
    %c2_37 = arith.constant 2 : index
    %c0_38 = arith.constant 0 : index
    %c0_39 = arith.constant 0 : index
    %59 = vector.load %arg20[%c2_37, %c0_38, %c0_39] : memref<8x8x384xf32, #tpu.memory_space<vmem>>, vector<1x8x384xf32>
    %60 = vector.shape_cast %59 : vector<1x8x384xf32> to vector<8x384xf32>
    %61 = vector.shape_cast %58 : vector<8x384xf32> to vector<1x8x384xf32>
    tpu.vector_store %arg20[%c2_37, %c0_38, %c0_39], %61 {strides = array<i32>} : memref<8x8x384xf32, #tpu.memory_space<vmem>>, vector<1x8x384xf32>,
    %62 = arith.select %29, %57, %55 : vector<8x384xi1>, vector<8x384xf32>
    %c5_40 = arith.constant 5 : index
    %c0_41 = arith.constant 0 : index
    %c0_42 = arith.constant 0 : index
    %63 = vector.load %arg20[%c5_40, %c0_41, %c0_42] : memref<8x8x384xf32, #tpu.memory_space<vmem>>, vector<1x8x384xf32>
    %64 = vector.shape_cast %63 : vector<1x8x384xf32> to vector<8x384xf32>
    %65 = vector.shape_cast %62 : vector<8x384xf32> to vector<1x8x384xf32>
    tpu.vector_store %arg20[%c5_40, %c0_41, %c0_42], %65 {strides = array<i32>} : memref<8x8x384xf32, #tpu.memory_space<vmem>>, vector<1x8x384xf32>,
    %c3 = arith.constant 3 : index
    %c0_43 = arith.constant 0 : index
    %c0_44 = arith.constant 0 : index
    %66 = vector.load %arg20[%c3, %c0_43, %c0_44] : memref<8x8x384xf32, #tpu.memory_space<vmem>>, vector<1x8x384xf32>
    %67 = vector.shape_cast %66 : vector<1x8x384xf32> to vector<8x384xf32>
    %c4 = arith.constant 4 : index
    %c0_45 = arith.constant 0 : index
    %c0_46 = arith.constant 0 : index
    %68 = vector.load %arg20[%c4, %c0_45, %c0_46] : memref<8x8x384xf32, #tpu.memory_space<vmem>>, vector<1x8x384xf32>
    %69 = vector.shape_cast %68 : vector<1x8x384xf32> to vector<8x384xf32>
    %70 = arith.select %29, %67, %69 : vector<8x384xi1>, vector<8x384xf32>
    %c3_47 = arith.constant 3 : index
    %c0_48 = arith.constant 0 : index
    %c0_49 = arith.constant 0 : index
    %71 = vector.load %arg20[%c3_47, %c0_48, %c0_49] : memref<8x8x384xf32, #tpu.memory_space<vmem>>, vector<1x8x384xf32>
    %72 = vector.shape_cast %71 : vector<1x8x384xf32> to vector<8x384xf32>
    %73 = vector.shape_cast %70 : vector<8x384xf32> to vector<1x8x384xf32>
    tpu.vector_store %arg20[%c3_47, %c0_48, %c0_49], %73 {strides = array<i32>} : memref<8x8x384xf32, #tpu.memory_space<vmem>>, vector<1x8x384xf32>,
    %74 = arith.select %29, %69, %67 : vector<8x384xi1>, vector<8x384xf32>
    %c4_50 = arith.constant 4 : index
    %c0_51 = arith.constant 0 : index
    %c0_52 = arith.constant 0 : index
    %75 = vector.load %arg20[%c4_50, %c0_51, %c0_52] : memref<8x8x384xf32, #tpu.memory_space<vmem>>, vector<1x8x384xf32>
    %76 = vector.shape_cast %75 : vector<1x8x384xf32> to vector<8x384xf32>
    %77 = vector.shape_cast %74 : vector<8x384xf32> to vector<1x8x384xf32>
    tpu.vector_store %arg20[%c4_50, %c0_51, %c0_52], %77 {strides = array<i32>} : memref<8x8x384xf32, #tpu.memory_space<vmem>>, vector<1x8x384xf32>,
    %c0_53 = arith.constant 0 : index
    %c0_54 = arith.constant 0 : index
    %78 = vector.load %arg5[%c0_53, %c0_54] : memref<128x384xbf16, #tpu.memory_space<vmem>>, vector<128x384xbf16>
    %c0_55 = arith.constant 0 : index
    %c0_56 = arith.constant 0 : index
    %79 = vector.load %arg6[%c0_55, %c0_56] : memref<1x384xf32, #tpu.memory_space<vmem>>, vector<1x384xf32>
    %c0_57 = arith.constant 0 : index
    %c0_58 = arith.constant 0 : index
    %80 = vector.load %arg2[%c0_57, %c0_58] : memref<8x128xf32, #tpu.memory_space<vmem>>, vector<8x128xf32>
    %c0_59 = arith.constant 0 : index
    %c0_60 = arith.constant 0 : index
    %c0_61 = arith.constant 0 : index
    %81 = vector.load %arg20[%c0_59, %c0_60, %c0_61] : memref<8x8x384xf32, #tpu.memory_space<vmem>>, vector<1x8x384xf32>
    %82 = vector.shape_cast %81 : vector<1x8x384xf32> to vector<8x384xf32>
    %83 = arith.truncf %80 : vector<8x128xf32> to vector<8x128xbf16>
    %cst_62 = arith.constant dense<0.000000e+00> : vector<8x384xf32>
    %84 = tpu.matmul %83, %78, %cst_62 {dimension_numbers = #tpu.dot_dimension_numbers<[1], [0], [0], [1], [0, 0, 1, 1], [], []>} : vector<8x128xbf16>, vector<128x384xbf16>, vector<8x384xf32> -> vector<8x384xf32>
    %85 = vector.broadcast %79 : vector<1x384xf32> to vector<8x384xf32>
    %86 = arith.addf %84, %85 : vector<8x384xf32>
    %87 = vector.extract_strided_slice %82 {offsets = [0, 0], sizes = [8, 128], strides = [1, 1]} : vector<8x384xf32> to vector<8x128xf32>
    %88 = vector.extract_strided_slice %86 {offsets = [0, 0], sizes = [8, 128], strides = [1, 1]} : vector<8x384xf32> to vector<8x128xf32>
    %89 = arith.addf %87, %88 : vector<8x128xf32>
    %90 = arith.negf %89 : vector<8x128xf32>
    %91 = math.exp %90 : vector<8x128xf32>
    %cst_63 = arith.constant 1.000000e+00 : f32
    %92 = vector.broadcast %cst_63 : f32 to vector<8x128xf32>
    %93 = arith.addf %92, %91 : vector<8x128xf32>
    %94 = arith.divf %92, %93 : vector<8x128xf32>
    %95 = vector.extract_strided_slice %82 {offsets = [0, 128], sizes = [8, 128], strides = [1, 1]} : vector<8x384xf32> to vector<8x128xf32>
    %96 = vector.extract_strided_slice %86 {offsets = [0, 128], sizes = [8, 128], strides = [1, 1]} : vector<8x384xf32> to vector<8x128xf32>
    %97 = arith.addf %95, %96 : vector<8x128xf32>
    %98 = arith.negf %97 : vector<8x128xf32>
    %99 = math.exp %98 : vector<8x128xf32>
    %cst_64 = arith.constant 1.000000e+00 : f32
    %100 = vector.broadcast %cst_64 : f32 to vector<8x128xf32>
    %101 = arith.addf %100, %99 : vector<8x128xf32>
    %102 = arith.divf %100, %101 : vector<8x128xf32>
    %103 = vector.extract_strided_slice %82 {offsets = [0, 256], sizes = [8, 128], strides = [1, 1]} : vector<8x384xf32> to vector<8x128xf32>
    %104 = vector.extract_strided_slice %86 {offsets = [0, 256], sizes = [8, 128], strides = [1, 1]} : vector<8x384xf32> to vector<8x128xf32>
    %105 = arith.mulf %94, %104 : vector<8x128xf32>
    %106 = arith.addf %103, %105 : vector<8x128xf32>
    %107 = math.tanh %106 : vector<8x128xf32>
    %cst_65 = arith.constant 1.000000e+00 : f32
    %108 = vector.broadcast %cst_65 : f32 to vector<8x128xf32>
    %109 = arith.subf %108, %102 : vector<8x128xf32>
    %110 = arith.mulf %109, %107 : vector<8x128xf32>
    %111 = arith.mulf %102, %80 : vector<8x128xf32>
    %112 = arith.addf %110, %111 : vector<8x128xf32>
    %113 = vector.extract_strided_slice %112 {offsets = [0, 0], sizes = [8, 64], strides = [1, 1]} : vector<8x128xf32> to vector<8x64xf32>
    %c0_66 = arith.constant 0 : index
    %c0_67 = arith.constant 0 : index
    %c0_68 = arith.constant 0 : index
    %114 = vector.load %arg21[%c0_66, %c0_67, %c0_68] : memref<8x8x128xf32, #tpu.memory_space<vmem>>, vector<1x8x64xf32>
    %115 = vector.shape_cast %114 : vector<1x8x64xf32> to vector<8x64xf32>
    %116 = vector.shape_cast %113 : vector<8x64xf32> to vector<1x8x64xf32>
    tpu.vector_store %arg21[%c0_66, %c0_67, %c0_68], %116 {strides = array<i32>} : memref<8x8x128xf32, #tpu.memory_space<vmem>>, vector<1x8x64xf32>,
    %117 = vector.extract_strided_slice %112 {offsets = [0, 64], sizes = [8, 64], strides = [1, 1]} : vector<8x128xf32> to vector<8x64xf32>
    %c7_69 = arith.constant 7 : index
    %c0_70 = arith.constant 0 : index
    %c64 = arith.constant 64 : index
    %118 = vector.load %arg21[%c7_69, %c0_70, %c64] : memref<8x8x128xf32, #tpu.memory_space<vmem>>, vector<1x8x64xf32>
    %119 = vector.shape_cast %118 : vector<1x8x64xf32> to vector<8x64xf32>
    %120 = vector.shape_cast %117 : vector<8x64xf32> to vector<1x8x64xf32>
    tpu.vector_store %arg21[%c7_69, %c0_70, %c64], %120 {strides = array<i32>} : memref<8x8x128xf32, #tpu.memory_space<vmem>>, vector<1x8x64xf32>,
    %c1_71 = arith.constant 1 : index
    %c0_72 = arith.constant 0 : index
    %c0_73 = arith.constant 0 : index
    %121 = vector.load %arg20[%c1_71, %c0_72, %c0_73] : memref<8x8x384xf32, #tpu.memory_space<vmem>>, vector<1x8x384xf32>
    %122 = vector.shape_cast %121 : vector<1x8x384xf32> to vector<8x384xf32>
    %123 = arith.truncf %112 : vector<8x128xf32> to vector<8x128xbf16>
    %cst_74 = arith.constant dense<0.000000e+00> : vector<8x384xf32>
    %124 = tpu.matmul %123, %78, %cst_74 {dimension_numbers = #tpu.dot_dimension_numbers<[1], [0], [0], [1], [0, 0, 1, 1], [], []>} : vector<8x128xbf16>, vector<128x384xbf16>, vector<8x384xf32> -> vector<8x384xf32>
    %125 = vector.broadcast %79 : vector<1x384xf32> to vector<8x384xf32>
    %126 = arith.addf %124, %125 : vector<8x384xf32>
    %127 = vector.extract_strided_slice %122 {offsets = [0, 0], sizes = [8, 128], strides = [1, 1]} : vector<8x384xf32> to vector<8x128xf32>
    %128 = vector.extract_strided_slice %126 {offsets = [0, 0], sizes = [8, 128], strides = [1, 1]} : vector<8x384xf32> to vector<8x128xf32>
    %129 = arith.addf %127, %128 : vector<8x128xf32>
    %130 = arith.negf %129 : vector<8x128xf32>
    %131 = math.exp %130 : vector<8x128xf32>
    %cst_75 = arith.constant 1.000000e+00 : f32
    %132 = vector.broadcast %cst_75 : f32 to vector<8x128xf32>
    %133 = arith.addf %132, %131 : vector<8x128xf32>
    %134 = arith.divf %132, %133 : vector<8x128xf32>
    %135 = vector.extract_strided_slice %122 {offsets = [0, 128], sizes = [8, 128], strides = [1, 1]} : vector<8x384xf32> to vector<8x128xf32>
    %136 = vector.extract_strided_slice %126 {offsets = [0, 128], sizes = [8, 128], strides = [1, 1]} : vector<8x384xf32> to vector<8x128xf32>
    %137 = arith.addf %135, %136 : vector<8x128xf32>
    %138 = arith.negf %137 : vector<8x128xf32>
    %139 = math.exp %138 : vector<8x128xf32>
    %cst_76 = arith.constant 1.000000e+00 : f32
    %140 = vector.broadcast %cst_76 : f32 to vector<8x128xf32>
    %141 = arith.addf %140, %139 : vector<8x128xf32>
    %142 = arith.divf %140, %141 : vector<8x128xf32>
    %143 = vector.extract_strided_slice %122 {offsets = [0, 256], sizes = [8, 128], strides = [1, 1]} : vector<8x384xf32> to vector<8x128xf32>
    %144 = vector.extract_strided_slice %126 {offsets = [0, 256], sizes = [8, 128], strides = [1, 1]} : vector<8x384xf32> to vector<8x128xf32>
    %145 = arith.mulf %134, %144 : vector<8x128xf32>
    %146 = arith.addf %143, %145 : vector<8x128xf32>
    %147 = math.tanh %146 : vector<8x128xf32>
    %cst_77 = arith.constant 1.000000e+00 : f32
    %148 = vector.broadcast %cst_77 : f32 to vector<8x128xf32>
    %149 = arith.subf %148, %142 : vector<8x128xf32>
    %150 = arith.mulf %149, %147 : vector<8x128xf32>
    %151 = arith.mulf %142, %112 : vector<8x128xf32>
    %152 = arith.addf %150, %151 : vector<8x128xf32>
    %153 = vector.extract_strided_slice %152 {offsets = [0, 0], sizes = [8, 64], strides = [1, 1]} : vector<8x128xf32> to vector<8x64xf32>
    %c1_78 = arith.constant 1 : index
    %c0_79 = arith.constant 0 : index
    %c0_80 = arith.constant 0 : index
    %154 = vector.load %arg21[%c1_78, %c0_79, %c0_80] : memref<8x8x128xf32, #tpu.memory_space<vmem>>, vector<1x8x64xf32>
    %155 = vector.shape_cast %154 : vector<1x8x64xf32> to vector<8x64xf32>
    %156 = vector.shape_cast %153 : vector<8x64xf32> to vector<1x8x64xf32>
    tpu.vector_store %arg21[%c1_78, %c0_79, %c0_80], %156 {strides = array<i32>} : memref<8x8x128xf32, #tpu.memory_space<vmem>>, vector<1x8x64xf32>,
    %157 = vector.extract_strided_slice %152 {offsets = [0, 64], sizes = [8, 64], strides = [1, 1]} : vector<8x128xf32> to vector<8x64xf32>
    %c6_81 = arith.constant 6 : index
    %c0_82 = arith.constant 0 : index
    %c64_83 = arith.constant 64 : index
    %158 = vector.load %arg21[%c6_81, %c0_82, %c64_83] : memref<8x8x128xf32, #tpu.memory_space<vmem>>, vector<1x8x64xf32>
    %159 = vector.shape_cast %158 : vector<1x8x64xf32> to vector<8x64xf32>
    %160 = vector.shape_cast %157 : vector<8x64xf32> to vector<1x8x64xf32>
    tpu.vector_store %arg21[%c6_81, %c0_82, %c64_83], %160 {strides = array<i32>} : memref<8x8x128xf32, #tpu.memory_space<vmem>>, vector<1x8x64xf32>,
    %c2_84 = arith.constant 2 : index
    %c0_85 = arith.constant 0 : index
    %c0_86 = arith.constant 0 : index
    %161 = vector.load %arg20[%c2_84, %c0_85, %c0_86] : memref<8x8x384xf32, #tpu.memory_space<vmem>>, vector<1x8x384xf32>
    %162 = vector.shape_cast %161 : vector<1x8x384xf32> to vector<8x384xf32>
    %163 = arith.truncf %152 : vector<8x128xf32> to vector<8x128xbf16>
    %cst_87 = arith.constant dense<0.000000e+00> : vector<8x384xf32>
    %164 = tpu.matmul %163, %78, %cst_87 {dimension_numbers = #tpu.dot_dimension_numbers<[1], [0], [0], [1], [0, 0, 1, 1], [], []>} : vector<8x128xbf16>, vector<128x384xbf16>, vector<8x384xf32> -> vector<8x384xf32>
    %165 = vector.broadcast %79 : vector<1x384xf32> to vector<8x384xf32>
    %166 = arith.addf %164, %165 : vector<8x384xf32>
    %167 = vector.extract_strided_slice %162 {offsets = [0, 0], sizes = [8, 128], strides = [1, 1]} : vector<8x384xf32> to vector<8x128xf32>
    %168 = vector.extract_strided_slice %166 {offsets = [0, 0], sizes = [8, 128], strides = [1, 1]} : vector<8x384xf32> to vector<8x128xf32>
    %169 = arith.addf %167, %168 : vector<8x128xf32>
    %170 = arith.negf %169 : vector<8x128xf32>
    %171 = math.exp %170 : vector<8x128xf32>
    %cst_88 = arith.constant 1.000000e+00 : f32
    %172 = vector.broadcast %cst_88 : f32 to vector<8x128xf32>
    %173 = arith.addf %172, %171 : vector<8x128xf32>
    %174 = arith.divf %172, %173 : vector<8x128xf32>
    %175 = vector.extract_strided_slice %162 {offsets = [0, 128], sizes = [8, 128], strides = [1, 1]} : vector<8x384xf32> to vector<8x128xf32>
    %176 = vector.extract_strided_slice %166 {offsets = [0, 128], sizes = [8, 128], strides = [1, 1]} : vector<8x384xf32> to vector<8x128xf32>
    %177 = arith.addf %175, %176 : vector<8x128xf32>
    %178 = arith.negf %177 : vector<8x128xf32>
    %179 = math.exp %178 : vector<8x128xf32>
    %cst_89 = arith.constant 1.000000e+00 : f32
    %180 = vector.broadcast %cst_89 : f32 to vector<8x128xf32>
    %181 = arith.addf %180, %179 : vector<8x128xf32>
    %182 = arith.divf %180, %181 : vector<8x128xf32>
    %183 = vector.extract_strided_slice %162 {offsets = [0, 256], sizes = [8, 128], strides = [1, 1]} : vector<8x384xf32> to vector<8x128xf32>
    %184 = vector.extract_strided_slice %166 {offsets = [0, 256], sizes = [8, 128], strides = [1, 1]} : vector<8x384xf32> to vector<8x128xf32>
    %185 = arith.mulf %174, %184 : vector<8x128xf32>
    %186 = arith.addf %183, %185 : vector<8x128xf32>
    %187 = math.tanh %186 : vector<8x128xf32>
    %cst_90 = arith.constant 1.000000e+00 : f32
    %188 = vector.broadcast %cst_90 : f32 to vector<8x128xf32>
    %189 = arith.subf %188, %182 : vector<8x128xf32>
    %190 = arith.mulf %189, %187 : vector<8x128xf32>
    %191 = arith.mulf %182, %152 : vector<8x128xf32>
    %192 = arith.addf %190, %191 : vector<8x128xf32>
    %193 = vector.extract_strided_slice %192 {offsets = [0, 0], sizes = [8, 64], strides = [1, 1]} : vector<8x128xf32> to vector<8x64xf32>
    %c2_91 = arith.constant 2 : index
    %c0_92 = arith.constant 0 : index
    %c0_93 = arith.constant 0 : index
    %194 = vector.load %arg21[%c2_91, %c0_92, %c0_93] : memref<8x8x128xf32, #tpu.memory_space<vmem>>, vector<1x8x64xf32>
    %195 = vector.shape_cast %194 : vector<1x8x64xf32> to vector<8x64xf32>
    %196 = vector.shape_cast %193 : vector<8x64xf32> to vector<1x8x64xf32>
    tpu.vector_store %arg21[%c2_91, %c0_92, %c0_93], %196 {strides = array<i32>} : memref<8x8x128xf32, #tpu.memory_space<vmem>>, vector<1x8x64xf32>,
    %197 = vector.extract_strided_slice %192 {offsets = [0, 64], sizes = [8, 64], strides = [1, 1]} : vector<8x128xf32> to vector<8x64xf32>
    %c5_94 = arith.constant 5 : index
    %c0_95 = arith.constant 0 : index
    %c64_96 = arith.constant 64 : index
    %198 = vector.load %arg21[%c5_94, %c0_95, %c64_96] : memref<8x8x128xf32, #tpu.memory_space<vmem>>, vector<1x8x64xf32>
    %199 = vector.shape_cast %198 : vector<1x8x64xf32> to vector<8x64xf32>
    %200 = vector.shape_cast %197 : vector<8x64xf32> to vector<1x8x64xf32>
    tpu.vector_store %arg21[%c5_94, %c0_95, %c64_96], %200 {strides = array<i32>} : memref<8x8x128xf32, #tpu.memory_space<vmem>>, vector<1x8x64xf32>,
    %c3_97 = arith.constant 3 : index
    %c0_98 = arith.constant 0 : index
    %c0_99 = arith.constant 0 : index
    %201 = vector.load %arg20[%c3_97, %c0_98, %c0_99] : memref<8x8x384xf32, #tpu.memory_space<vmem>>, vector<1x8x384xf32>
    %202 = vector.shape_cast %201 : vector<1x8x384xf32> to vector<8x384xf32>
    %203 = arith.truncf %192 : vector<8x128xf32> to vector<8x128xbf16>
    %cst_100 = arith.constant dense<0.000000e+00> : vector<8x384xf32>
    %204 = tpu.matmul %203, %78, %cst_100 {dimension_numbers = #tpu.dot_dimension_numbers<[1], [0], [0], [1], [0, 0, 1, 1], [], []>} : vector<8x128xbf16>, vector<128x384xbf16>, vector<8x384xf32> -> vector<8x384xf32>
    %205 = vector.broadcast %79 : vector<1x384xf32> to vector<8x384xf32>
    %206 = arith.addf %204, %205 : vector<8x384xf32>
    %207 = vector.extract_strided_slice %202 {offsets = [0, 0], sizes = [8, 128], strides = [1, 1]} : vector<8x384xf32> to vector<8x128xf32>
    %208 = vector.extract_strided_slice %206 {offsets = [0, 0], sizes = [8, 128], strides = [1, 1]} : vector<8x384xf32> to vector<8x128xf32>
    %209 = arith.addf %207, %208 : vector<8x128xf32>
    %210 = arith.negf %209 : vector<8x128xf32>
    %211 = math.exp %210 : vector<8x128xf32>
    %cst_101 = arith.constant 1.000000e+00 : f32
    %212 = vector.broadcast %cst_101 : f32 to vector<8x128xf32>
    %213 = arith.addf %212, %211 : vector<8x128xf32>
    %214 = arith.divf %212, %213 : vector<8x128xf32>
    %215 = vector.extract_strided_slice %202 {offsets = [0, 128], sizes = [8, 128], strides = [1, 1]} : vector<8x384xf32> to vector<8x128xf32>
    %216 = vector.extract_strided_slice %206 {offsets = [0, 128], sizes = [8, 128], strides = [1, 1]} : vector<8x384xf32> to vector<8x128xf32>
    %217 = arith.addf %215, %216 : vector<8x128xf32>
    %218 = arith.negf %217 : vector<8x128xf32>
    %219 = math.exp %218 : vector<8x128xf32>
    %cst_102 = arith.constant 1.000000e+00 : f32
    %220 = vector.broadcast %cst_102 : f32 to vector<8x128xf32>
    %221 = arith.addf %220, %219 : vector<8x128xf32>
    %222 = arith.divf %220, %221 : vector<8x128xf32>
    %223 = vector.extract_strided_slice %202 {offsets = [0, 256], sizes = [8, 128], strides = [1, 1]} : vector<8x384xf32> to vector<8x128xf32>
    %224 = vector.extract_strided_slice %206 {offsets = [0, 256], sizes = [8, 128], strides = [1, 1]} : vector<8x384xf32> to vector<8x128xf32>
    %225 = arith.mulf %214, %224 : vector<8x128xf32>
    %226 = arith.addf %223, %225 : vector<8x128xf32>
    %227 = math.tanh %226 : vector<8x128xf32>
    %cst_103 = arith.constant 1.000000e+00 : f32
    %228 = vector.broadcast %cst_103 : f32 to vector<8x128xf32>
    %229 = arith.subf %228, %222 : vector<8x128xf32>
    %230 = arith.mulf %229, %227 : vector<8x128xf32>
    %231 = arith.mulf %222, %192 : vector<8x128xf32>
    %232 = arith.addf %230, %231 : vector<8x128xf32>
    %233 = vector.extract_strided_slice %232 {offsets = [0, 0], sizes = [8, 64], strides = [1, 1]} : vector<8x128xf32> to vector<8x64xf32>
    %c3_104 = arith.constant 3 : index
    %c0_105 = arith.constant 0 : index
    %c0_106 = arith.constant 0 : index
    %234 = vector.load %arg21[%c3_104, %c0_105, %c0_106] : memref<8x8x128xf32, #tpu.memory_space<vmem>>, vector<1x8x64xf32>
    %235 = vector.shape_cast %234 : vector<1x8x64xf32> to vector<8x64xf32>
    %236 = vector.shape_cast %233 : vector<8x64xf32> to vector<1x8x64xf32>
    tpu.vector_store %arg21[%c3_104, %c0_105, %c0_106], %236 {strides = array<i32>} : memref<8x8x128xf32, #tpu.memory_space<vmem>>, vector<1x8x64xf32>,
    %237 = vector.extract_strided_slice %232 {offsets = [0, 64], sizes = [8, 64], strides = [1, 1]} : vector<8x128xf32> to vector<8x64xf32>
    %c4_107 = arith.constant 4 : index
    %c0_108 = arith.constant 0 : index
    %c64_109 = arith.constant 64 : index
    %238 = vector.load %arg21[%c4_107, %c0_108, %c64_109] : memref<8x8x128xf32, #tpu.memory_space<vmem>>, vector<1x8x64xf32>
    %239 = vector.shape_cast %238 : vector<1x8x64xf32> to vector<8x64xf32>
    %240 = vector.shape_cast %237 : vector<8x64xf32> to vector<1x8x64xf32>
    tpu.vector_store %arg21[%c4_107, %c0_108, %c64_109], %240 {strides = array<i32>} : memref<8x8x128xf32, #tpu.memory_space<vmem>>, vector<1x8x64xf32>,
    %c4_110 = arith.constant 4 : index
    %c0_111 = arith.constant 0 : index
    %c0_112 = arith.constant 0 : index
    %241 = vector.load %arg20[%c4_110, %c0_111, %c0_112] : memref<8x8x384xf32, #tpu.memory_space<vmem>>, vector<1x8x384xf32>
    %242 = vector.shape_cast %241 : vector<1x8x384xf32> to vector<8x384xf32>
    %243 = arith.truncf %232 : vector<8x128xf32> to vector<8x128xbf16>
    %cst_113 = arith.constant dense<0.000000e+00> : vector<8x384xf32>
    %244 = tpu.matmul %243, %78, %cst_113 {dimension_numbers = #tpu.dot_dimension_numbers<[1], [0], [0], [1], [0, 0, 1, 1], [], []>} : vector<8x128xbf16>, vector<128x384xbf16>, vector<8x384xf32> -> vector<8x384xf32>
    %245 = vector.broadcast %79 : vector<1x384xf32> to vector<8x384xf32>
    %246 = arith.addf %244, %245 : vector<8x384xf32>
    %247 = vector.extract_strided_slice %242 {offsets = [0, 0], sizes = [8, 128], strides = [1, 1]} : vector<8x384xf32> to vector<8x128xf32>
    %248 = vector.extract_strided_slice %246 {offsets = [0, 0], sizes = [8, 128], strides = [1, 1]} : vector<8x384xf32> to vector<8x128xf32>
    %249 = arith.addf %247, %248 : vector<8x128xf32>
    %250 = arith.negf %249 : vector<8x128xf32>
    %251 = math.exp %250 : vector<8x128xf32>
    %cst_114 = arith.constant 1.000000e+00 : f32
    %252 = vector.broadcast %cst_114 : f32 to vector<8x128xf32>
    %253 = arith.addf %252, %251 : vector<8x128xf32>
    %254 = arith.divf %252, %253 : vector<8x128xf32>
    %255 = vector.extract_strided_slice %242 {offsets = [0, 128], sizes = [8, 128], strides = [1, 1]} : vector<8x384xf32> to vector<8x128xf32>
    %256 = vector.extract_strided_slice %246 {offsets = [0, 128], sizes = [8, 128], strides = [1, 1]} : vector<8x384xf32> to vector<8x128xf32>
    %257 = arith.addf %255, %256 : vector<8x128xf32>
    %258 = arith.negf %257 : vector<8x128xf32>
    %259 = math.exp %258 : vector<8x128xf32>
    %cst_115 = arith.constant 1.000000e+00 : f32
    %260 = vector.broadcast %cst_115 : f32 to vector<8x128xf32>
    %261 = arith.addf %260, %259 : vector<8x128xf32>
    %262 = arith.divf %260, %261 : vector<8x128xf32>
    %263 = vector.extract_strided_slice %242 {offsets = [0, 256], sizes = [8, 128], strides = [1, 1]} : vector<8x384xf32> to vector<8x128xf32>
    %264 = vector.extract_strided_slice %246 {offsets = [0, 256], sizes = [8, 128], strides = [1, 1]} : vector<8x384xf32> to vector<8x128xf32>
    %265 = arith.mulf %254, %264 : vector<8x128xf32>
    %266 = arith.addf %263, %265 : vector<8x128xf32>
    %267 = math.tanh %266 : vector<8x128xf32>
    %cst_116 = arith.constant 1.000000e+00 : f32
    %268 = vector.broadcast %cst_116 : f32 to vector<8x128xf32>
    %269 = arith.subf %268, %262 : vector<8x128xf32>
    %270 = arith.mulf %269, %267 : vector<8x128xf32>
    %271 = arith.mulf %262, %232 : vector<8x128xf32>
    %272 = arith.addf %270, %271 : vector<8x128xf32>
    %273 = vector.extract_strided_slice %272 {offsets = [0, 0], sizes = [8, 64], strides = [1, 1]} : vector<8x128xf32> to vector<8x64xf32>
    %c4_117 = arith.constant 4 : index
    %c0_118 = arith.constant 0 : index
    %c0_119 = arith.constant 0 : index
    %274 = vector.load %arg21[%c4_117, %c0_118, %c0_119] : memref<8x8x128xf32, #tpu.memory_space<vmem>>, vector<1x8x64xf32>
    %275 = vector.shape_cast %274 : vector<1x8x64xf32> to vector<8x64xf32>
    %276 = vector.shape_cast %273 : vector<8x64xf32> to vector<1x8x64xf32>
    tpu.vector_store %arg21[%c4_117, %c0_118, %c0_119], %276 {strides = array<i32>} : memref<8x8x128xf32, #tpu.memory_space<vmem>>, vector<1x8x64xf32>,
    %277 = vector.extract_strided_slice %272 {offsets = [0, 64], sizes = [8, 64], strides = [1, 1]} : vector<8x128xf32> to vector<8x64xf32>
    %c3_120 = arith.constant 3 : index
    %c0_121 = arith.constant 0 : index
    %c64_122 = arith.constant 64 : index
    %278 = vector.load %arg21[%c3_120, %c0_121, %c64_122] : memref<8x8x128xf32, #tpu.memory_space<vmem>>, vector<1x8x64xf32>
    %279 = vector.shape_cast %278 : vector<1x8x64xf32> to vector<8x64xf32>
    %280 = vector.shape_cast %277 : vector<8x64xf32> to vector<1x8x64xf32>
    tpu.vector_store %arg21[%c3_120, %c0_121, %c64_122], %280 {strides = array<i32>} : memref<8x8x128xf32, #tpu.memory_space<vmem>>, vector<1x8x64xf32>,
    %c5_123 = arith.constant 5 : index
    %c0_124 = arith.constant 0 : index
    %c0_125 = arith.constant 0 : index
    %281 = vector.load %arg20[%c5_123, %c0_124, %c0_125] : memref<8x8x384xf32, #tpu.memory_space<vmem>>, vector<1x8x384xf32>
    %282 = vector.shape_cast %281 : vector<1x8x384xf32> to vector<8x384xf32>
    %283 = arith.truncf %272 : vector<8x128xf32> to vector<8x128xbf16>
    %cst_126 = arith.constant dense<0.000000e+00> : vector<8x384xf32>
    %284 = tpu.matmul %283, %78, %cst_126 {dimension_numbers = #tpu.dot_dimension_numbers<[1], [0], [0], [1], [0, 0, 1, 1], [], []>} : vector<8x128xbf16>, vector<128x384xbf16>, vector<8x384xf32> -> vector<8x384xf32>
    %285 = vector.broadcast %79 : vector<1x384xf32> to vector<8x384xf32>
    %286 = arith.addf %284, %285 : vector<8x384xf32>
    %287 = vector.extract_strided_slice %282 {offsets = [0, 0], sizes = [8, 128], strides = [1, 1]} : vector<8x384xf32> to vector<8x128xf32>
    %288 = vector.extract_strided_slice %286 {offsets = [0, 0], sizes = [8, 128], strides = [1, 1]} : vector<8x384xf32> to vector<8x128xf32>
    %289 = arith.addf %287, %288 : vector<8x128xf32>
    %290 = arith.negf %289 : vector<8x128xf32>
    %291 = math.exp %290 : vector<8x128xf32>
    %cst_127 = arith.constant 1.000000e+00 : f32
    %292 = vector.broadcast %cst_127 : f32 to vector<8x128xf32>
    %293 = arith.addf %292, %291 : vector<8x128xf32>
    %294 = arith.divf %292, %293 : vector<8x128xf32>
    %295 = vector.extract_strided_slice %282 {offsets = [0, 128], sizes = [8, 128], strides = [1, 1]} : vector<8x384xf32> to vector<8x128xf32>
    %296 = vector.extract_strided_slice %286 {offsets = [0, 128], sizes = [8, 128], strides = [1, 1]} : vector<8x384xf32> to vector<8x128xf32>
    %297 = arith.addf %295, %296 : vector<8x128xf32>
    %298 = arith.negf %297 : vector<8x128xf32>
    %299 = math.exp %298 : vector<8x128xf32>
    %cst_128 = arith.constant 1.000000e+00 : f32
    %300 = vector.broadcast %cst_128 : f32 to vector<8x128xf32>
    %301 = arith.addf %300, %299 : vector<8x128xf32>
    %302 = arith.divf %300, %301 : vector<8x128xf32>
    %303 = vector.extract_strided_slice %282 {offsets = [0, 256], sizes = [8, 128], strides = [1, 1]} : vector<8x384xf32> to vector<8x128xf32>
    %304 = vector.extract_strided_slice %286 {offsets = [0, 256], sizes = [8, 128], strides = [1, 1]} : vector<8x384xf32> to vector<8x128xf32>
    %305 = arith.mulf %294, %304 : vector<8x128xf32>
    %306 = arith.addf %303, %305 : vector<8x128xf32>
    %307 = math.tanh %306 : vector<8x128xf32>
    %cst_129 = arith.constant 1.000000e+00 : f32
    %308 = vector.broadcast %cst_129 : f32 to vector<8x128xf32>
    %309 = arith.subf %308, %302 : vector<8x128xf32>
    %310 = arith.mulf %309, %307 : vector<8x128xf32>
    %311 = arith.mulf %302, %272 : vector<8x128xf32>
    %312 = arith.addf %310, %311 : vector<8x128xf32>
    %313 = vector.extract_strided_slice %312 {offsets = [0, 0], sizes = [8, 64], strides = [1, 1]} : vector<8x128xf32> to vector<8x64xf32>
    %c5_130 = arith.constant 5 : index
    %c0_131 = arith.constant 0 : index
    %c0_132 = arith.constant 0 : index
    %314 = vector.load %arg21[%c5_130, %c0_131, %c0_132] : memref<8x8x128xf32, #tpu.memory_space<vmem>>, vector<1x8x64xf32>
    %315 = vector.shape_cast %314 : vector<1x8x64xf32> to vector<8x64xf32>
    %316 = vector.shape_cast %313 : vector<8x64xf32> to vector<1x8x64xf32>
    tpu.vector_store %arg21[%c5_130, %c0_131, %c0_132], %316 {strides = array<i32>} : memref<8x8x128xf32, #tpu.memory_space<vmem>>, vector<1x8x64xf32>,
    %317 = vector.extract_strided_slice %312 {offsets = [0, 64], sizes = [8, 64], strides = [1, 1]} : vector<8x128xf32> to vector<8x64xf32>
    %c2_133 = arith.constant 2 : index
    %c0_134 = arith.constant 0 : index
    %c64_135 = arith.constant 64 : index
    %318 = vector.load %arg21[%c2_133, %c0_134, %c64_135] : memref<8x8x128xf32, #tpu.memory_space<vmem>>, vector<1x8x64xf32>
    %319 = vector.shape_cast %318 : vector<1x8x64xf32> to vector<8x64xf32>
    %320 = vector.shape_cast %317 : vector<8x64xf32> to vector<1x8x64xf32>
    tpu.vector_store %arg21[%c2_133, %c0_134, %c64_135], %320 {strides = array<i32>} : memref<8x8x128xf32, #tpu.memory_space<vmem>>, vector<1x8x64xf32>,
    %c6_136 = arith.constant 6 : index
    %c0_137 = arith.constant 0 : index
    %c0_138 = arith.constant 0 : index
    %321 = vector.load %arg20[%c6_136, %c0_137, %c0_138] : memref<8x8x384xf32, #tpu.memory_space<vmem>>, vector<1x8x384xf32>
    %322 = vector.shape_cast %321 : vector<1x8x384xf32> to vector<8x384xf32>
    %323 = arith.truncf %312 : vector<8x128xf32> to vector<8x128xbf16>
    %cst_139 = arith.constant dense<0.000000e+00> : vector<8x384xf32>
    %324 = tpu.matmul %323, %78, %cst_139 {dimension_numbers = #tpu.dot_dimension_numbers<[1], [0], [0], [1], [0, 0, 1, 1], [], []>} : vector<8x128xbf16>, vector<128x384xbf16>, vector<8x384xf32> -> vector<8x384xf32>
    %325 = vector.broadcast %79 : vector<1x384xf32> to vector<8x384xf32>
    %326 = arith.addf %324, %325 : vector<8x384xf32>
    %327 = vector.extract_strided_slice %322 {offsets = [0, 0], sizes = [8, 128], strides = [1, 1]} : vector<8x384xf32> to vector<8x128xf32>
    %328 = vector.extract_strided_slice %326 {offsets = [0, 0], sizes = [8, 128], strides = [1, 1]} : vector<8x384xf32> to vector<8x128xf32>
    %329 = arith.addf %327, %328 : vector<8x128xf32>
    %330 = arith.negf %329 : vector<8x128xf32>
    %331 = math.exp %330 : vector<8x128xf32>
    %cst_140 = arith.constant 1.000000e+00 : f32
    %332 = vector.broadcast %cst_140 : f32 to vector<8x128xf32>
    %333 = arith.addf %332, %331 : vector<8x128xf32>
    %334 = arith.divf %332, %333 : vector<8x128xf32>
    %335 = vector.extract_strided_slice %322 {offsets = [0, 128], sizes = [8, 128], strides = [1, 1]} : vector<8x384xf32> to vector<8x128xf32>
    %336 = vector.extract_strided_slice %326 {offsets = [0, 128], sizes = [8, 128], strides = [1, 1]} : vector<8x384xf32> to vector<8x128xf32>
    %337 = arith.addf %335, %336 : vector<8x128xf32>
    %338 = arith.negf %337 : vector<8x128xf32>
    %339 = math.exp %338 : vector<8x128xf32>
    %cst_141 = arith.constant 1.000000e+00 : f32
    %340 = vector.broadcast %cst_141 : f32 to vector<8x128xf32>
    %341 = arith.addf %340, %339 : vector<8x128xf32>
    %342 = arith.divf %340, %341 : vector<8x128xf32>
    %343 = vector.extract_strided_slice %322 {offsets = [0, 256], sizes = [8, 128], strides = [1, 1]} : vector<8x384xf32> to vector<8x128xf32>
    %344 = vector.extract_strided_slice %326 {offsets = [0, 256], sizes = [8, 128], strides = [1, 1]} : vector<8x384xf32> to vector<8x128xf32>
    %345 = arith.mulf %334, %344 : vector<8x128xf32>
    %346 = arith.addf %343, %345 : vector<8x128xf32>
    %347 = math.tanh %346 : vector<8x128xf32>
    %cst_142 = arith.constant 1.000000e+00 : f32
    %348 = vector.broadcast %cst_142 : f32 to vector<8x128xf32>
    %349 = arith.subf %348, %342 : vector<8x128xf32>
    %350 = arith.mulf %349, %347 : vector<8x128xf32>
    %351 = arith.mulf %342, %312 : vector<8x128xf32>
    %352 = arith.addf %350, %351 : vector<8x128xf32>
    %353 = vector.extract_strided_slice %352 {offsets = [0, 0], sizes = [8, 64], strides = [1, 1]} : vector<8x128xf32> to vector<8x64xf32>
    %c6_143 = arith.constant 6 : index
    %c0_144 = arith.constant 0 : index
    %c0_145 = arith.constant 0 : index
    %354 = vector.load %arg21[%c6_143, %c0_144, %c0_145] : memref<8x8x128xf32, #tpu.memory_space<vmem>>, vector<1x8x64xf32>
    %355 = vector.shape_cast %354 : vector<1x8x64xf32> to vector<8x64xf32>
    %356 = vector.shape_cast %353 : vector<8x64xf32> to vector<1x8x64xf32>
    tpu.vector_store %arg21[%c6_143, %c0_144, %c0_145], %356 {strides = array<i32>} : memref<8x8x128xf32, #tpu.memory_space<vmem>>, vector<1x8x64xf32>,
    %357 = vector.extract_strided_slice %352 {offsets = [0, 64], sizes = [8, 64], strides = [1, 1]} : vector<8x128xf32> to vector<8x64xf32>
    %c1_146 = arith.constant 1 : index
    %c0_147 = arith.constant 0 : index
    %c64_148 = arith.constant 64 : index
    %358 = vector.load %arg21[%c1_146, %c0_147, %c64_148] : memref<8x8x128xf32, #tpu.memory_space<vmem>>, vector<1x8x64xf32>
    %359 = vector.shape_cast %358 : vector<1x8x64xf32> to vector<8x64xf32>
    %360 = vector.shape_cast %357 : vector<8x64xf32> to vector<1x8x64xf32>
    tpu.vector_store %arg21[%c1_146, %c0_147, %c64_148], %360 {strides = array<i32>} : memref<8x8x128xf32, #tpu.memory_space<vmem>>, vector<1x8x64xf32>,
    %c7_149 = arith.constant 7 : index
    %c0_150 = arith.constant 0 : index
    %c0_151 = arith.constant 0 : index
    %361 = vector.load %arg20[%c7_149, %c0_150, %c0_151] : memref<8x8x384xf32, #tpu.memory_space<vmem>>, vector<1x8x384xf32>
    %362 = vector.shape_cast %361 : vector<1x8x384xf32> to vector<8x384xf32>
    %363 = arith.truncf %352 : vector<8x128xf32> to vector<8x128xbf16>
    %cst_152 = arith.constant dense<0.000000e+00> : vector<8x384xf32>
    %364 = tpu.matmul %363, %78, %cst_152 {dimension_numbers = #tpu.dot_dimension_numbers<[1], [0], [0], [1], [0, 0, 1, 1], [], []>} : vector<8x128xbf16>, vector<128x384xbf16>, vector<8x384xf32> -> vector<8x384xf32>
    %365 = vector.broadcast %79 : vector<1x384xf32> to vector<8x384xf32>
    %366 = arith.addf %364, %365 : vector<8x384xf32>
    %367 = vector.extract_strided_slice %362 {offsets = [0, 0], sizes = [8, 128], strides = [1, 1]} : vector<8x384xf32> to vector<8x128xf32>
    %368 = vector.extract_strided_slice %366 {offsets = [0, 0], sizes = [8, 128], strides = [1, 1]} : vector<8x384xf32> to vector<8x128xf32>
    %369 = arith.addf %367, %368 : vector<8x128xf32>
    %370 = arith.negf %369 : vector<8x128xf32>
    %371 = math.exp %370 : vector<8x128xf32>
    %cst_153 = arith.constant 1.000000e+00 : f32
    %372 = vector.broadcast %cst_153 : f32 to vector<8x128xf32>
    %373 = arith.addf %372, %371 : vector<8x128xf32>
    %374 = arith.divf %372, %373 : vector<8x128xf32>
    %375 = vector.extract_strided_slice %362 {offsets = [0, 128], sizes = [8, 128], strides = [1, 1]} : vector<8x384xf32> to vector<8x128xf32>
    %376 = vector.extract_strided_slice %366 {offsets = [0, 128], sizes = [8, 128], strides = [1, 1]} : vector<8x384xf32> to vector<8x128xf32>
    %377 = arith.addf %375, %376 : vector<8x128xf32>
    %378 = arith.negf %377 : vector<8x128xf32>
    %379 = math.exp %378 : vector<8x128xf32>
    %cst_154 = arith.constant 1.000000e+00 : f32
    %380 = vector.broadcast %cst_154 : f32 to vector<8x128xf32>
    %381 = arith.addf %380, %379 : vector<8x128xf32>
    %382 = arith.divf %380, %381 : vector<8x128xf32>
    %383 = vector.extract_strided_slice %362 {offsets = [0, 256], sizes = [8, 128], strides = [1, 1]} : vector<8x384xf32> to vector<8x128xf32>
    %384 = vector.extract_strided_slice %366 {offsets = [0, 256], sizes = [8, 128], strides = [1, 1]} : vector<8x384xf32> to vector<8x128xf32>
    %385 = arith.mulf %374, %384 : vector<8x128xf32>
    %386 = arith.addf %383, %385 : vector<8x128xf32>
    %387 = math.tanh %386 : vector<8x128xf32>
    %cst_155 = arith.constant 1.000000e+00 : f32
    %388 = vector.broadcast %cst_155 : f32 to vector<8x128xf32>
    %389 = arith.subf %388, %382 : vector<8x128xf32>
    %390 = arith.mulf %389, %387 : vector<8x128xf32>
    %391 = arith.mulf %382, %352 : vector<8x128xf32>
    %392 = arith.addf %390, %391 : vector<8x128xf32>
    %393 = vector.extract_strided_slice %392 {offsets = [0, 0], sizes = [8, 64], strides = [1, 1]} : vector<8x128xf32> to vector<8x64xf32>
    %c7_156 = arith.constant 7 : index
    %c0_157 = arith.constant 0 : index
    %c0_158 = arith.constant 0 : index
    %394 = vector.load %arg21[%c7_156, %c0_157, %c0_158] : memref<8x8x128xf32, #tpu.memory_space<vmem>>, vector<1x8x64xf32>
    %395 = vector.shape_cast %394 : vector<1x8x64xf32> to vector<8x64xf32>
    %396 = vector.shape_cast %393 : vector<8x64xf32> to vector<1x8x64xf32>
    tpu.vector_store %arg21[%c7_156, %c0_157, %c0_158], %396 {strides = array<i32>} : memref<8x8x128xf32, #tpu.memory_space<vmem>>, vector<1x8x64xf32>,
    %397 = vector.extract_strided_slice %392 {offsets = [0, 64], sizes = [8, 64], strides = [1, 1]} : vector<8x128xf32> to vector<8x64xf32>
    %c0_159 = arith.constant 0 : index
    %c0_160 = arith.constant 0 : index
    %c64_161 = arith.constant 64 : index
    %398 = vector.load %arg21[%c0_159, %c0_160, %c64_161] : memref<8x8x128xf32, #tpu.memory_space<vmem>>, vector<1x8x64xf32>
    %399 = vector.shape_cast %398 : vector<1x8x64xf32> to vector<8x64xf32>
    %400 = vector.shape_cast %397 : vector<8x64xf32> to vector<1x8x64xf32>
    tpu.vector_store %arg21[%c0_159, %c0_160, %c64_161], %400 {strides = array<i32>} : memref<8x8x128xf32, #tpu.memory_space<vmem>>, vector<1x8x64xf32>,
    %c0_162 = arith.constant 0 : index
    %c0_163 = arith.constant 0 : index
    %c0_164 = arith.constant 0 : index
    %401 = vector.load %arg21[%c0_162, %c0_163, %c0_164] : memref<8x8x128xf32, #tpu.memory_space<vmem>>, vector<8x8x128xf32>
    %402 = vector.shape_cast %401 : vector<8x8x128xf32> to vector<64x128xf32>
    %403 = arith.truncf %402 : vector<64x128xf32> to vector<64x128xbf16>
    %c0_165 = arith.constant 0 : index
    %c0_166 = arith.constant 0 : index
    %404 = vector.load %arg7[%c0_165, %c0_166] : memref<128x128xbf16, #tpu.memory_space<vmem>>, vector<128x128xbf16>
    %cst_167 = arith.constant dense<0.000000e+00> : vector<64x128xf32>
    %405 = tpu.matmul %403, %404, %cst_167 {dimension_numbers = #tpu.dot_dimension_numbers<[1], [0], [0], [1], [0, 0, 1, 1], [], []>} : vector<64x128xbf16>, vector<128x128xbf16>, vector<64x128xf32> -> vector<64x128xf32>
    %c0_168 = arith.constant 0 : index
    %c0_169 = arith.constant 0 : index
    %406 = vector.load %arg8[%c0_168, %c0_169] : memref<1x128xf32, #tpu.memory_space<vmem>>, vector<1x128xf32>
    %407 = vector.broadcast %406 : vector<1x128xf32> to vector<64x128xf32>
    %408 = arith.addf %405, %407 : vector<64x128xf32>
    %409 = math.tanh %408 : vector<64x128xf32>
    %c0_170 = arith.constant 0 : index
    %c0_171 = arith.constant 0 : index
    %410 = vector.load %arg9[%c0_170, %c0_171] : memref<1x128xf32, #tpu.memory_space<vmem>>, vector<1x128xf32>
    %411 = vector.shape_cast %410 : vector<1x128xf32> to vector<1x1x128xf32>
    %412 = vector.shape_cast %409 : vector<64x128xf32> to vector<8x8x128xf32>
    %413 = vector.broadcast %411 : vector<1x1x128xf32> to vector<8x8x128xf32>
    %414 = arith.mulf %412, %413 : vector<8x8x128xf32>
    %cst_172 = arith.constant dense<0.000000e+00> : vector<8x8xf32>
    %415 = vector.multi_reduction <add>, %414, %cst_172 [2] : vector<8x8x128xf32> to vector<8x8xf32>
    %416 = vector.shape_cast %415 : vector<8x8xf32> to vector<8x8x1xf32>
    %cst_173 = arith.constant dense<0xFF800000> : vector<8x1xf32>
    %417 = vector.multi_reduction <maximumf>, %416, %cst_173 [0] : vector<8x8x1xf32> to vector<8x1xf32>
    %418 = vector.shape_cast %417 : vector<8x1xf32> to vector<1x8x1xf32>
    %419 = vector.broadcast %418 : vector<1x8x1xf32> to vector<8x8x1xf32>
    %420 = arith.subf %416, %419 : vector<8x8x1xf32>
    %421 = math.exp %420 : vector<8x8x1xf32>
    %cst_174 = arith.constant dense<0.000000e+00> : vector<8x1xf32>
    %422 = vector.multi_reduction <add>, %421, %cst_174 [0] : vector<8x8x1xf32> to vector<8x1xf32>
    %423 = vector.shape_cast %422 : vector<8x1xf32> to vector<1x8x1xf32>
    %424 = tpu.reciprocal %423 {approx = true} : vector<1x8x1xf32> -> vector<1x8x1xf32>
    %425 = vector.broadcast %424 : vector<1x8x1xf32> to vector<8x8x1xf32>
    %426 = arith.mulf %421, %425 : vector<8x8x1xf32>
    %427 = tpu.iota {dimensions = array<i32: 0>} : vector<8x1x128xi32>
    %428 = tpu.iota {dimensions = array<i32: 2>} : vector<8x1x128xi32>
    %429 = arith.cmpi eq, %427, %428 : vector<8x1x128xi32>
    %430 = arith.extui %429 : vector<8x1x128xi1> to vector<8x1x128xi32>
    %431 = arith.sitofp %430 : vector<8x1x128xi32> to vector<8x1x128xf32>
    %432 = vector.broadcast %426 : vector<8x8x1xf32> to vector<8x8x128xf32>
    %433 = vector.broadcast %431 : vector<8x1x128xf32> to vector<8x8x128xf32>
    %434 = arith.mulf %432, %433 : vector<8x8x128xf32>
    %cst_175 = arith.constant dense<0.000000e+00> : vector<8x128xf32>
    %435 = vector.multi_reduction <add>, %434, %cst_175 [0] : vector<8x8x128xf32> to vector<8x128xf32>
    %c0_176 = arith.constant 0 : index
    %c0_177 = arith.constant 0 : index
    %436 = vector.load %arg18[%c0_176, %c0_177] : memref<8x128xf32, #tpu.memory_space<vmem>>, vector<8x128xf32>
    tpu.vector_store %arg18[%c0_176, %c0_177], %435 {strides = array<i32>} : memref<8x128xf32, #tpu.memory_space<vmem>>, vector<8x128xf32>,
    %437 = vector.broadcast %426 : vector<8x8x1xf32> to vector<8x8x128xf32>
    %438 = arith.mulf %437, %401 : vector<8x8x128xf32>
    %cst_178 = arith.constant dense<0.000000e+00> : vector<8x128xf32>
    %439 = vector.multi_reduction <add>, %438, %cst_178 [0] : vector<8x8x128xf32> to vector<8x128xf32>
    %c0_179 = arith.constant 0 : index
    %c0_180 = arith.constant 0 : index
    %440 = vector.load %arg19[%c0_179, %c0_180] : memref<8x128xf32, #tpu.memory_space<vmem>>, vector<8x128xf32>
    tpu.vector_store %arg19[%c0_179, %c0_180], %439 {strides = array<i32>} : memref<8x128xf32, #tpu.memory_space<vmem>>, vector<8x128xf32>,
    %441 = arith.truncf %439 : vector<8x128xf32> to vector<8x128xbf16>
    %c0_181 = arith.constant 0 : index
    %c0_182 = arith.constant 0 : index
    %442 = vector.load %arg10[%c0_181, %c0_182] : memref<128x512xbf16, #tpu.memory_space<vmem>>, vector<128x512xbf16>
    %cst_183 = arith.constant dense<0.000000e+00> : vector<8x512xf32>
    %443 = tpu.matmul %441, %442, %cst_183 {dimension_numbers = #tpu.dot_dimension_numbers<[1], [0], [0], [1], [0, 0, 1, 1], [], []>} : vector<8x128xbf16>, vector<128x512xbf16>, vector<8x512xf32> -> vector<8x512xf32>
    %c0_184 = arith.constant 0 : index
    %c0_185 = arith.constant 0 : index
    %444 = vector.load %arg11[%c0_184, %c0_185] : memref<1x512xf32, #tpu.memory_space<vmem>>, vector<1x512xf32>
    %445 = vector.broadcast %444 : vector<1x512xf32> to vector<8x512xf32>
    %446 = arith.addf %443, %445 : vector<8x512xf32>
    %cst_186 = arith.constant 0.000000e+00 : f32
    %447 = vector.broadcast %cst_186 : f32 to vector<8x512xf32>
    %448 = arith.maximumf %446, %447 : vector<8x512xf32>
    %449 = arith.truncf %448 : vector<8x512xf32> to vector<8x512xbf16>
    %c0_187 = arith.constant 0 : index
    %c0_188 = arith.constant 0 : index
    %450 = vector.load %arg12[%c0_187, %c0_188] : memref<512x1024xbf16, #tpu.memory_space<vmem>>, vector<512x1024xbf16>
    %cst_189 = arith.constant dense<0.000000e+00> : vector<8x1024xf32>
    %451 = tpu.matmul %449, %450, %cst_189 {dimension_numbers = #tpu.dot_dimension_numbers<[1], [0], [0], [1], [0, 0, 1, 1], [], []>} : vector<8x512xbf16>, vector<512x1024xbf16>, vector<8x1024xf32> -> vector<8x1024xf32>
    %c0_190 = arith.constant 0 : index
    %c0_191 = arith.constant 0 : index
    %452 = vector.load %arg13[%c0_190, %c0_191] : memref<1x1024xf32, #tpu.memory_space<vmem>>, vector<1x1024xf32>
    %453 = vector.broadcast %452 : vector<1x1024xf32> to vector<8x1024xf32>
    %454 = arith.addf %451, %453 : vector<8x1024xf32>
    %cst_192 = arith.constant 0.000000e+00 : f32
    %455 = vector.broadcast %cst_192 : f32 to vector<8x1024xf32>
    %456 = arith.maximumf %454, %455 : vector<8x1024xf32>
    %457 = arith.truncf %456 : vector<8x1024xf32> to vector<8x1024xbf16>
    %c0_193 = arith.constant 0 : index
    %c0_194 = arith.constant 0 : index
    %458 = vector.load %arg14[%c0_193, %c0_194] : memref<1024x128xbf16, #tpu.memory_space<vmem>>, vector<1024x128xbf16>
    %cst_195 = arith.constant dense<0.000000e+00> : vector<8x128xf32>
    %459 = tpu.matmul %457, %458, %cst_195 {dimension_numbers = #tpu.dot_dimension_numbers<[1], [0], [0], [1], [0, 0, 1, 1], [], []>} : vector<8x1024xbf16>, vector<1024x128xbf16>, vector<8x128xf32> -> vector<8x128xf32>
    %c0_196 = arith.constant 0 : index
    %c0_197 = arith.constant 0 : index
    %460 = vector.load %arg15[%c0_196, %c0_197] : memref<1x128xf32, #tpu.memory_space<vmem>>, vector<1x128xf32>
    %461 = vector.broadcast %460 : vector<1x128xf32> to vector<8x128xf32>
    %462 = arith.addf %459, %461 : vector<8x128xf32>
    %c0_198 = arith.constant 0 : index
    %c0_199 = arith.constant 0 : index
    %463 = vector.load %arg16[%c0_198, %c0_199] : memref<8x128xf32, #tpu.memory_space<vmem>>, vector<8x128xf32>
    tpu.vector_store %arg16[%c0_198, %c0_199], %462 {strides = array<i32>} : memref<8x128xf32, #tpu.memory_space<vmem>>, vector<8x128xf32>,
    %464 = tpu.iota {dimensions = array<i32: 1>} : vector<8x128xi32>
    %c5_i32 = arith.constant 5 : i32
    %465 = vector.broadcast %c5_i32 : i32 to vector<8x128xi32>
    %466 = arith.cmpi slt, %464, %465 : vector<8x128xi32>
    %cst_200 = arith.constant -1.000000e+30 : f32
    %467 = vector.broadcast %cst_200 : f32 to vector<8x128xf32>
    %468 = arith.select %466, %462, %467 : vector<8x128xi1>, vector<8x128xf32>
    %cst_201 = arith.constant dense<0xFF800000> : vector<8xf32>
    %469 = vector.multi_reduction <maximumf>, %468, %cst_201 [1] : vector<8x128xf32> to vector<8xf32>
    %470 = vector.shape_cast %469 : vector<8xf32> to vector<8x1xf32>
    %471 = vector.broadcast %470 : vector<8x1xf32> to vector<8x128xf32>
    %472 = arith.subf %468, %471 : vector<8x128xf32>
    %473 = math.exp %472 : vector<8x128xf32>
    %cst_202 = arith.constant dense<0.000000e+00> : vector<8xf32>
    %474 = vector.multi_reduction <add>, %473, %cst_202 [1] : vector<8x128xf32> to vector<8xf32>
    %475 = vector.shape_cast %474 : vector<8xf32> to vector<8x1xf32>
    %476 = tpu.reciprocal %475 {approx = true} : vector<8x1xf32> -> vector<8x1xf32>
    %477 = vector.broadcast %476 : vector<8x1xf32> to vector<8x128xf32>
    %478 = arith.mulf %473, %477 : vector<8x128xf32>
    %c0_203 = arith.constant 0 : index
    %c0_204 = arith.constant 0 : index
    %479 = vector.load %arg17[%c0_203, %c0_204] : memref<8x128xf32, #tpu.memory_space<vmem>>, vector<8x128xf32>
    tpu.vector_store %arg17[%c0_203, %c0_204], %478 {strides = array<i32>} : memref<8x128xf32, #tpu.memory_space<vmem>>, vector<8x128xf32>,
    return
  }
  func.func @transform_0(%arg0: i32) -> (i32, i32, i32) {
    %c0_i32 = arith.constant 0 : i32
    %c0_i32_0 = arith.constant 0 : i32
    %c0_i32_1 = arith.constant 0 : i32
    return %c0_i32, %arg0, %c0_i32_0 : i32, i32, i32
  }
  func.func @transform_1(%arg0: i32) -> (i32, i32) {
    %c0_i32 = arith.constant 0 : i32
    %c0_i32_0 = arith.constant 0 : i32
    return %arg0, %c0_i32 : i32, i32
  }
  func.func @transform_2(%arg0: i32) -> (i32, i32) {
    %c0_i32 = arith.constant 0 : i32
    %c0_i32_0 = arith.constant 0 : i32
    %c0_i32_1 = arith.constant 0 : i32
    return %c0_i32, %c0_i32_0 : i32, i32
  }
  func.func @transform_3(%arg0: i32) -> (i32, i32) {
    %c0_i32 = arith.constant 0 : i32
    %c0_i32_0 = arith.constant 0 : i32
    %c0_i32_1 = arith.constant 0 : i32
    return %c0_i32, %c0_i32_0 : i32, i32
  }
  func.func @transform_4(%arg0: i32) -> (i32, i32) {
    %c0_i32 = arith.constant 0 : i32
    %c0_i32_0 = arith.constant 0 : i32
    %c0_i32_1 = arith.constant 0 : i32
    return %c0_i32, %c0_i32_0 : i32, i32
  }
  func.func @transform_5(%arg0: i32) -> (i32, i32) {
    %c0_i32 = arith.constant 0 : i32
    %c0_i32_0 = arith.constant 0 : i32
    %c0_i32_1 = arith.constant 0 : i32
    return %c0_i32, %c0_i32_0 : i32, i32
  }
  func.func @transform_6(%arg0: i32) -> (i32, i32) {
    %c0_i32 = arith.constant 0 : i32
    %c0_i32_0 = arith.constant 0 : i32
    %c0_i32_1 = arith.constant 0 : i32
    return %c0_i32, %c0_i32_0 : i32, i32
  }
  func.func @transform_7(%arg0: i32) -> (i32, i32) {
    %c0_i32 = arith.constant 0 : i32
    %c0_i32_0 = arith.constant 0 : i32
    %c0_i32_1 = arith.constant 0 : i32
    return %c0_i32, %c0_i32_0 : i32, i32
  }
  func.func @transform_8(%arg0: i32) -> (i32, i32) {
    %c0_i32 = arith.constant 0 : i32
    %c0_i32_0 = arith.constant 0 : i32
    %c0_i32_1 = arith.constant 0 : i32
    return %c0_i32, %c0_i32_0 : i32, i32
  }
  func.func @transform_9(%arg0: i32) -> (i32, i32) {
    %c0_i32 = arith.constant 0 : i32
    %c0_i32_0 = arith.constant 0 : i32
    %c0_i32_1 = arith.constant 0 : i32
    return %c0_i32, %c0_i32_0 : i32, i32
  }
  func.func @transform_10(%arg0: i32) -> (i32, i32) {
    %c0_i32 = arith.constant 0 : i32
    %c0_i32_0 = arith.constant 0 : i32
    %c0_i32_1 = arith.constant 0 : i32
    return %c0_i32, %c0_i32_0 : i32, i32
  }
  func.func @transform_11(%arg0: i32) -> (i32, i32) {
    %c0_i32 = arith.constant 0 : i32
    %c0_i32_0 = arith.constant 0 : i32
    %c0_i32_1 = arith.constant 0 : i32
    return %c0_i32, %c0_i32_0 : i32, i32
  }
  func.func @transform_12(%arg0: i32) -> (i32, i32) {
    %c0_i32 = arith.constant 0 : i32
    %c0_i32_0 = arith.constant 0 : i32
    %c0_i32_1 = arith.constant 0 : i32
    return %c0_i32, %c0_i32_0 : i32, i32
  }
  func.func @transform_13(%arg0: i32) -> (i32, i32) {
    %c0_i32 = arith.constant 0 : i32
    %c0_i32_0 = arith.constant 0 : i32
    %c0_i32_1 = arith.constant 0 : i32
    return %c0_i32, %c0_i32_0 : i32, i32
  }
  func.func @transform_14(%arg0: i32) -> (i32, i32) {
    %c0_i32 = arith.constant 0 : i32
    %c0_i32_0 = arith.constant 0 : i32
    %c0_i32_1 = arith.constant 0 : i32
    return %c0_i32, %c0_i32_0 : i32, i32
  }
  func.func @transform_15(%arg0: i32) -> (i32, i32) {
    %c0_i32 = arith.constant 0 : i32
    %c0_i32_0 = arith.constant 0 : i32
    return %arg0, %c0_i32 : i32, i32
  }
  func.func @transform_16(%arg0: i32) -> (i32, i32) {
    %c0_i32 = arith.constant 0 : i32
    %c0_i32_0 = arith.constant 0 : i32
    return %arg0, %c0_i32 : i32, i32
  }
  func.func @transform_17(%arg0: i32) -> (i32, i32) {
    %c0_i32 = arith.constant 0 : i32
    %c0_i32_0 = arith.constant 0 : i32
    return %arg0, %c0_i32 : i32, i32
  }
  func.func @transform_18(%arg0: i32) -> (i32, i32) {
    %c0_i32 = arith.constant 0 : i32
    %c0_i32_0 = arith.constant 0 : i32
    return %arg0, %c0_i32 : i32, i32
  }
}

</mosaic_0001>

<llo_original>
// kernel: attention_forward.1
$region0: #{attention_forward.1}
  #allocation0 [shape = 'u32[]', space=smem, size = 0x4, offset = 0x4, fixed_abs, tag = 'smem constant byte address 0x4 - core index']
  #allocation1 [shape = 'u32[144,128]{1,0:T(1,128)}', space=vmem, size = 0x12000, scoped, tag = 'internal scratch']
  #allocation2 [shape = 'f32[8,8,384]{2,1,0:T(8,128)}', space=vmem, size = 0x18000, scoped, tag = 'scratch operand']
  #allocation3 [shape = 'f32[8,8,128]{2,1,0:T(8,128)}', space=vmem, size = 0x8000, scoped, tag = 'scratch operand']
  %s0 = inlined_call_operand.vmem [shape: bf16[8,8,32], index: 0, kind: input, shape index: {}]
  %s1 = inlined_call_operand.vmem [shape: f32[8,128], index: 1, kind: input, shape index: {}]
  %s2 = inlined_call_operand.hbm [shape: bf16[32,384], index: 2, kind: input, shape index: {}]
  %s3 = inlined_call_operand.hbm [shape: f32[1,384], index: 3, kind: input, shape index: {}]
  %s4 = inlined_call_operand.hbm [shape: bf16[128,384], index: 4, kind: input, shape index: {}]
  %s5 = inlined_call_operand.hbm [shape: f32[1,384], index: 5, kind: input, shape index: {}]
  %s6 = inlined_call_operand.hbm [shape: bf16[128,128], index: 6, kind: input, shape index: {}]
  %s7 = inlined_call_operand.vmem [shape: f32[1,128], index: 7, kind: input, shape index: {}]
  %s8 = inlined_call_operand.hbm [shape: f32[1,128], index: 8, kind: input, shape index: {}]
  %s9 = inlined_call_operand.vmem [shape: bf16[128,512], index: 9, kind: input, shape index: {}]
  %s10 = inlined_call_operand.vmem [shape: f32[1,512], index: 10, kind: input, shape index: {}]
  %s11 = inlined_call_operand.hbm [shape: bf16[512,1024], index: 11, kind: input, shape index: {}]
  %s12 = inlined_call_operand.vmem [shape: f32[1,1024], index: 12, kind: input, shape index: {}]
  %s13 = inlined_call_operand.hbm [shape: bf16[1024,128], index: 13, kind: input, shape index: {}]
  %s14 = inlined_call_operand.hbm [shape: f32[1,128], index: 14, kind: input, shape index: {}]
  %s15 = inlined_call_operand.vmem [shape: f32[8,128], index: 15, kind: output, shape index: {0}]
  %s16 = inlined_call_operand.vmem [shape: f32[8,128], index: 16, kind: output, shape index: {1}]
  %s17 = inlined_call_operand.vmem [shape: f32[8,128], index: 17, kind: output, shape index: {2}]
  %s18 = inlined_call_operand.vmem [shape: f32[8,128], index: 18, kind: output, shape index: {3}]
  %19 = xla_tuple %s15, %s16, %s17, %s18
  %s20 = sld [smem:[#allocation0]]
  $region130: #{attention_forward.1} parent=0
    _
  %s22 = ssub.s32 1, %s20
  %s23 = scalar_select 0, %s22, %s20
  $region1: #{attention_forward.1} parent=0
    #allocation4 [shape = 'u8[24576]{0}', space=vmem, size = 0x6000, scoped, tag = 'input window, operand 2, single buffered']
    #allocation5 [shape = 's32[1]{0}', space=sflag, size = 0x4, scoped, tag = 'scoped memory for attention_forward.1']
    #allocation6 [shape = 'u8[1536]{0}', space=vmem, size = 0x800, scoped, tag = 'input window, operand 3, single buffered']
    #allocation7 [shape = 's32[1]{0}', space=sflag, size = 0x4, scoped, tag = 'scoped memory for attention_forward.1']
    #allocation8 [shape = 'u8[98304]{0}', space=vmem, size = 0x18000, scoped, tag = 'input window, operand 4, single buffered']
    #allocation9 [shape = 'u8[1536]{0}', space=vmem, size = 0x800, scoped, tag = 'input window, operand 5, single buffered']
    #allocation10 [shape = 's32[1]{0}', space=sflag, size = 0x4, scoped, tag = 'scoped memory for attention_forward.1']
    #allocation11 [shape = 'u8[32768]{0}', space=vmem, size = 0x8000, scoped, tag = 'input window, operand 6, single buffered']
    #allocation12 [shape = 'u8[512]{0}', space=vmem, size = 0x400, scoped, tag = 'input window, operand 8, single buffered']
    #allocation13 [shape = 's32[1]{0}', space=sflag, size = 0x4, scoped, tag = 'scoped memory for attention_forward.1']
    #allocation14 [shape = 'u8[1048576]{0}', space=vmem, size = 0x100000, scoped, tag = 'input window, operand 11, single buffered']
    #allocation15 [shape = 'u8[262144]{0}', space=vmem, size = 0x40000, scoped, tag = 'input window, operand 13, single buffered']
    #allocation16 [shape = 's32[1]{0}', space=sflag, size = 0x4, scoped, tag = 'scoped memory for attention_forward.1']
    #allocation17 [shape = 'u8[512]{0}', space=vmem, size = 0x400, scoped, tag = 'input window, operand 14, single buffered']
    %24 = vsyncpa [#allocation5], 0
    %25 = vsyncpa [#allocation7], 0
    %26 = vsyncpa [#allocation10], 0
    %27 = vsyncpa [#allocation13], 0
    %28 = vsyncpa [#allocation16], 0
    // Predicated region
    $region2: #{attention_forward.1} parent=1 // pred_check
      _
    $region3: #{attention_forward.1} parent=1 // pred_check_branch
      %30 = sbr.rel (0) target = $region5
    $region4: #{attention_forward.1} parent=1 // pred_region
      _
    $region5: #{attention_forward.1} parent=1 // pred_fallthru
      _
    // Predicated region
    $region6: #{attention_forward.1} parent=1 // pred_check
      _
    $region7: #{attention_forward.1} parent=1 // pred_check_branch
      %32 = sbr.rel (0) target = $region9
    $region8: #{attention_forward.1} parent=1 // pred_region
      _
    $region9: #{attention_forward.1} parent=1 // pred_fallthru
      _
    // Predicated region
    $region10: #{attention_forward.1} parent=1 // pred_check
      _
    $region11: #{attention_forward.1} parent=1 // pred_check_branch
      %34 = sbr.rel (0) target = $region13
    $region12: #{attention_forward.1} parent=1 // pred_region
      %s36 = ssub.s32 768, 768
      %37 = vsyncadd [#allocation5], %s36
      %s38 = sshll.u32 [#allocation4], 4
      %s39 = int_to_ptr.vmem [resolvable:$true] %s38
      %44 = dma.hbm_to_vmem [thread:$0]  %s2, 768, %s39, [#allocation5], 192, 192, 12
    $region13: #{attention_forward.1} parent=1 // pred_fallthru
      _
    // Predicated region
    $region14: #{attention_forward.1} parent=1 // pred_check
      _
    $region15: #{attention_forward.1} parent=1 // pred_check_branch
      %46 = sbr.rel (0) target = $region17
    $region16: #{attention_forward.1} parent=1 // pred_region
      %s48 = ssub.s32 48, 48
      %49 = vsyncadd [#allocation7], %s48
      %s51 = sshll.u32 [#allocation6], 4
      %s52 = int_to_ptr.vmem [resolvable:$true] %s51
      %54 = dma.hbm_to_vmem [thread:$0]  %s3, 48, %s52, [#allocation7]
    $region17: #{attention_forward.1} parent=1 // pred_fallthru
      _
    // Predicated region
    $region18: #{attention_forward.1} parent=1 // pred_check
      _
    $region19: #{attention_forward.1} parent=1 // pred_check_branch
      %56 = sbr.rel (0) target = $region21
    $region20: #{attention_forward.1} parent=1 // pred_region
      %s58 = ssub.s32 3072, 3072
      %59 = vsyncadd [#allocation7], %s58
      %s60 = sshll.u32 [#allocation8], 4
      %s61 = int_to_ptr.vmem [resolvable:$true] %s60
      %66 = dma.hbm_to_vmem [thread:$0]  %s4, 3072, %s61, [#allocation7], 192, 192, 12
    $region21: #{attention_forward.1} parent=1 // pred_fallthru
      _
    // Predicated region
    $region22: #{attention_forward.1} parent=1 // pred_check
      _
    $region23: #{attention_forward.1} parent=1 // pred_check_branch
      %68 = sbr.rel (0) target = $region25
    $region24: #{attention_forward.1} parent=1 // pred_region
      %s70 = ssub.s32 48, 48
      %71 = vsyncadd [#allocation10], %s70
      %s73 = sshll.u32 [#allocation9], 4
      %s74 = int_to_ptr.vmem [resolvable:$true] %s73
      %76 = dma.hbm_to_vmem [thread:$0]  %s5, 48, %s74, [#allocation10]
    $region25: #{attention_forward.1} parent=1 // pred_fallthru
      _
    // Predicated region
    $region26: #{attention_forward.1} parent=1 // pred_check
      _
    $region27: #{attention_forward.1} parent=1 // pred_check_branch
      %78 = sbr.rel (0) target = $region29
    $region28: #{attention_forward.1} parent=1 // pred_region
      %s80 = ssub.s32 1024, 1024
      %81 = vsyncadd [#allocation10], %s80
      %s82 = sshll.u32 [#allocation11], 4
      %s83 = int_to_ptr.vmem [resolvable:$true] %s82
      %88 = dma.hbm_to_vmem [thread:$0]  %s6, 1024, %s83, [#allocation10], 64, 64, 4
    $region29: #{attention_forward.1} parent=1 // pred_fallthru
      _
    // Predicated region
    $region30: #{attention_forward.1} parent=1 // pred_check
      _
    $region31: #{attention_forward.1} parent=1 // pred_check_branch
      %90 = sbr.rel (0) target = $region33
    $region32: #{attention_forward.1} parent=1 // pred_region
      _
    $region33: #{attention_forward.1} parent=1 // pred_fallthru
      _
    // Predicated region
    $region34: #{attention_forward.1} parent=1 // pred_check
      _
    $region35: #{attention_forward.1} parent=1 // pred_check_branch
      %92 = sbr.rel (0) target = $region37
    $region36: #{attention_forward.1} parent=1 // pred_region
      %s94 = ssub.s32 16, 16
      %95 = vsyncadd [#allocation13], %s94
      %s97 = sshll.u32 [#allocation12], 4
      %s98 = int_to_ptr.vmem [resolvable:$true] %s97
      %100 = dma.hbm_to_vmem [thread:$0]  %s8, 16, %s98, [#allocation13]
    $region37: #{attention_forward.1} parent=1 // pred_fallthru
      _
    // Predicated region
    $region38: #{attention_forward.1} parent=1 // pred_check
      _
    $region39: #{attention_forward.1} parent=1 // pred_check_branch
      %102 = sbr.rel (0) target = $region41
    $region40: #{attention_forward.1} parent=1 // pred_region
      _
    $region41: #{attention_forward.1} parent=1 // pred_fallthru
      _
    // Predicated region
    $region42: #{attention_forward.1} parent=1 // pred_check
      _
    $region43: #{attention_forward.1} parent=1 // pred_check_branch
      %104 = sbr.rel (0) target = $region45
    $region44: #{attention_forward.1} parent=1 // pred_region
      _
    $region45: #{attention_forward.1} parent=1 // pred_fallthru
      _
    // Predicated region
    $region46: #{attention_forward.1} parent=1 // pred_check
      _
    $region47: #{attention_forward.1} parent=1 // pred_check_branch
      %106 = sbr.rel (0) target = $region49
    $region48: #{attention_forward.1} parent=1 // pred_region
      %s108 = ssub.s32 32768, 32768
      %109 = vsyncadd [#allocation13], %s108
      %s110 = sshll.u32 [#allocation14], 4
      %s111 = int_to_ptr.vmem [resolvable:$true] %s110
      %116 = dma.hbm_to_vmem [thread:$0]  %s11, 32768, %s111, [#allocation13], 512, 512, 32
    $region49: #{attention_forward.1} parent=1 // pred_fallthru
      _
    // Predicated region
    $region50: #{attention_forward.1} parent=1 // pred_check
      _
    $region51: #{attention_forward.1} parent=1 // pred_check_branch
      %118 = sbr.rel (0) target = $region53
    $region52: #{attention_forward.1} parent=1 // pred_region
      _
    $region53: #{attention_forward.1} parent=1 // pred_fallthru
      _
    // Predicated region
    $region54: #{attention_forward.1} parent=1 // pred_check
      _
    $region55: #{attention_forward.1} parent=1 // pred_check_branch
      %120 = sbr.rel (0) target = $region57
    $region56: #{attention_forward.1} parent=1 // pred_region
      %s122 = ssub.s32 8192, 8192
      %123 = vsyncadd [#allocation16], %s122
      %s124 = sshll.u32 [#allocation15], 4
      %s125 = int_to_ptr.vmem [resolvable:$true] %s124
      %130 = dma.hbm_to_vmem [thread:$0]  %s13, 8192, %s125, [#allocation16], 64, 64, 4
    $region57: #{attention_forward.1} parent=1 // pred_fallthru
      _
    // Predicated region
    $region58: #{attention_forward.1} parent=1 // pred_check
      _
    $region59: #{attention_forward.1} parent=1 // pred_check_branch
      %132 = sbr.rel (0) target = $region61
    $region60: #{attention_forward.1} parent=1 // pred_region
      %s134 = ssub.s32 16, 16
      %135 = vsyncadd [#allocation16], %s134
      %s137 = sshll.u32 [#allocation17], 4
      %s138 = int_to_ptr.vmem [resolvable:$true] %s137
      %140 = dma.hbm_to_vmem [thread:$0]  %s14, 16, %s138, [#allocation16]
    $region61: #{attention_forward.1} parent=1 // pred_fallthru
      _
    // Predicated region
    $region62: #{attention_forward.1} parent=1 // pred_check
      _
    $region63: #{attention_forward.1} parent=1 // pred_check_branch
      %142 = sbr.rel (0) target = $region65
    $region64: #{attention_forward.1} parent=1 // pred_region
      %143 = dma.done [#allocation5], 768
    $region65: #{attention_forward.1} parent=1 // pred_fallthru
      _
    // Predicated region
    $region66: #{attention_forward.1} parent=1 // pred_check
      _
    $region67: #{attention_forward.1} parent=1 // pred_check_branch
      %145 = sbr.rel (0) target = $region69
    $region68: #{attention_forward.1} parent=1 // pred_region
      %146 = dma.done [#allocation7], 48
    $region69: #{attention_forward.1} parent=1 // pred_fallthru
      _
    // Predicated region
    $region70: #{attention_forward.1} parent=1 // pred_check
      _
    $region71: #{attention_forward.1} parent=1 // pred_check_branch
      %148 = sbr.rel (0) target = $region73
    $region72: #{attention_forward.1} parent=1 // pred_region
      %149 = dma.done [#allocation7], 3072
    $region73: #{attention_forward.1} parent=1 // pred_fallthru
      _
    // Predicated region
    $region74: #{attention_forward.1} parent=1 // pred_check
      _
    $region75: #{attention_forward.1} parent=1 // pred_check_branch
      %151 = sbr.rel (0) target = $region77
    $region76: #{attention_forward.1} parent=1 // pred_region
      %152 = dma.done [#allocation10], 48
    $region77: #{attention_forward.1} parent=1 // pred_fallthru
      _
    // Predicated region
    $region78: #{attention_forward.1} parent=1 // pred_check
      _
    $region79: #{attention_forward.1} parent=1 // pred_check_branch
      %154 = sbr.rel (0) target = $region81
    $region80: #{attention_forward.1} parent=1 // pred_region
      %155 = dma.done [#allocation10], 1024
    $region81: #{attention_forward.1} parent=1 // pred_fallthru
      _
    // Predicated region
    $region82: #{attention_forward.1} parent=1 // pred_check
      _
    $region83: #{attention_forward.1} parent=1 // pred_check_branch
      %157 = sbr.rel (0) target = $region85
    $region84: #{attention_forward.1} parent=1 // pred_region
      %158 = dma.done [#allocation13], 16
    $region85: #{attention_forward.1} parent=1 // pred_fallthru
      _
    // Predicated region
    $region86: #{attention_forward.1} parent=1 // pred_check
      _
    $region87: #{attention_forward.1} parent=1 // pred_check_branch
      %160 = sbr.rel (0) target = $region89
    $region88: #{attention_forward.1} parent=1 // pred_region
      %161 = dma.done [#allocation13], 32768
    $region89: #{attention_forward.1} parent=1 // pred_fallthru
      _
    // Predicated region
    $region90: #{attention_forward.1} parent=1 // pred_check
      _
    $region91: #{attention_forward.1} parent=1 // pred_check_branch
      %163 = sbr.rel (0) target = $region93
    $region92: #{attention_forward.1} parent=1 // pred_region
      %164 = dma.done [#allocation16], 8192
    $region93: #{attention_forward.1} parent=1 // pred_fallthru
      _
    // Predicated region
    $region94: #{attention_forward.1} parent=1 // pred_check
      _
    $region95: #{attention_forward.1} parent=1 // pred_check_branch
      %166 = sbr.rel (0) target = $region97
    $region96: #{attention_forward.1} parent=1 // pred_region
      %167 = dma.done [#allocation16], 16
    $region97: #{attention_forward.1} parent=1 // pred_fallthru
      _
    %v169 = vld [vmem:[%s0] sm:$0xf]
    %v170 = vld [vmem:[%s0 + $0x4] sm:$0xf]
    %v171 = vld [vmem:[%s0 + $0x8] sm:$0xf]
    %v172 = vld [vmem:[%s0 + $0xc] sm:$0xf]
    %v173 = vld [vmem:[%s0 + $0x10] sm:$0xf]
    %v174 = vld [vmem:[%s0 + $0x14] sm:$0xf]
    %v175 = vld [vmem:[%s0 + $0x18] sm:$0xf]
    %v176 = vld [vmem:[%s0 + $0x1c] sm:$0xf]
    %v177 = vunpack.c.l.bf16 %v169
    %v178 = vunpack.c.l.bf16 %v170
    %v179 = vunpack.c.l.bf16 %v171
    %v180 = vunpack.c.l.bf16 %v172
    %v181 = vunpack.c.l.bf16 %v173
    %v182 = vunpack.c.l.bf16 %v174
    %v183 = vunpack.c.l.bf16 %v175
    %v184 = vunpack.c.l.bf16 %v176
    %v185 = vpack.c.bf16 %v178, %v177
    %v186 = vpack.c.bf16 %v180, %v179
    %v187 = vpack.c.bf16 %v182, %v181
    %v188 = vpack.c.bf16 %v184, %v183
    %v189 = vld [vmem:[#allocation4] sm:$0xff]
    %v190 = vld [vmem:[#allocation4 + $0x8] sm:$0xf]
    %v191 = vld [vmem:[#allocation4 + $0xc] sm:$0xff]
    %v192 = vld [vmem:[#allocation4 + $0x14] sm:$0xf]
    %v193 = vld [vmem:[#allocation4 + $0x18] sm:$0xff]
    %v194 = vld [vmem:[#allocation4 + $0x20] sm:$0xf]
    %v195 = vld [vmem:[#allocation4 + $0x24] sm:$0xff]
    %v196 = vld [vmem:[#allocation4 + $0x2c] sm:$0xf]
    %v197 = vld [vmem:[#allocation6] sm:$0x7]
    %v199 = vlaneseq
    %v200 = vshrl.u32 %v199, 7
    %v201 = vsub.s32 0, %v200
    %v202 = vrot.slane %v197, %v201
    %v203 = vlaneseq
    %v204 = vshrl.u32 %v203, 7
    %v205 = vsub.s32 1, %v204
    %v206 = vrot.slane %v197, %v205
    %v207 = vlaneseq
    %v208 = vshrl.u32 %v207, 7
    %v209 = vsub.s32 2, %v208
    %v210 = vrot.slane %v197, %v209
    %v222 = vunpack.c.l.b16 %v189
    %v223 = vunpack.c.h.b16 %v189
    %v224 = vunpack.c.l.b16 %v190
    %v225 = vunpack.c.l.b16 %v191
    %v226 = vunpack.c.h.b16 %v191
    %v227 = vunpack.c.l.b16 %v192
    %v228 = vunpack.c.l.b16 %v193
    %v229 = vunpack.c.h.b16 %v193
    %v230 = vunpack.c.l.b16 %v194
    %v231 = vunpack.c.l.b16 %v195
    %v232 = vunpack.c.h.b16 %v195
    %v233 = vunpack.c.l.b16 %v196
    %v234 = vpack.c.b16 %v225, %v222
    %v235 = vpack.c.b16 %v226, %v223
    %v236 = vpack.c.b16 %v227, %v224
    %v237 = vpack.c.b16 %v231, %v228
    %v238 = vpack.c.b16 %v232, %v229
    %v239 = vpack.c.b16 %v233, %v230
    %vm246 = vcmask 261120
    %v248 = vsel %vm246, %v185, 0
    %v251 = vsel %vm246, %v186, 0
    %v254 = vsel %vm246, %v187, 0
    %v257 = vsel %vm246, %v188, 0
    %259 = vmatprep.subr.bf16.mxu0 %v235
    %260 = vmatpush1.bf16.msra.mxu0 %v234
    %261 = vmatprep.subr.bf16.mxu0 %v238
    %262 = vmatpush1.bf16.msra.mxu0 %v237
    %263 = vmatprep.subr.bf16.mxu0 0
    %264 = vmatpush1.bf16.msra.mxu0 0
    %265 = vmatprep.subr.bf16.mxu0 0
    %266 = vmatpush1.bf16.msra.mxu0 0
    %267 = vmatprep.subr.bf16.mxu0 0
    %268 = vmatpush1.bf16.msra.mxu0 0
    %269 = vmatprep.subr.bf16.mxu0 0
    %270 = vmatpush1.bf16.msra.mxu0 0
    %271 = vmatprep.subr.bf16.mxu0 0
    %272 = vmatpush1.bf16.msra.mxu0 0
    %273 = vmatprep.subr.bf16.mxu0 0
    %274 = vmatpush1.bf16.msra.mxu0 0
    %275 = vmatprep.subr.bf16.mxu0 0
    %276 = vmatpush1.bf16.msra.mxu0 0
    %277 = vmatprep.subr.bf16.mxu0 0
    %278 = vmatpush1.bf16.msra.mxu0 0
    %279 = vmatprep.subr.bf16.mxu0 0
    %280 = vmatpush1.bf16.msra.mxu0 0
    %281 = vmatprep.subr.bf16.mxu0 0
    %282 = vmatpush1.bf16.msra.mxu0 0
    %283 = vmatprep.subr.bf16.mxu0 0
    %284 = vmatpush1.bf16.msra.mxu0 0
    %285 = vmatprep.subr.bf16.mxu0 0
    %286 = vmatpush1.bf16.msra.mxu0 0
    %287 = vmatprep.subr.bf16.mxu0 0
    %288 = vmatpush1.bf16.msra.mxu0 0
    %289 = vmatprep.subr.bf16.mxu0 0
    %290 = vmatpush1.bf16.msra.mxu0 0
    %291 = vmatprep.mubr.bf16.mxu0 0
    %292 = vmatmul.mubr.bf16.gmra.mrb[0].mxu0 %v248
    %v293 = vpop.f32.mrb[0].mxu0
    %v294 = vadd.f32 %v202, %v293
    %v295 = vpop.f32.mrb[0].mxu0
    %v296 = vadd.f32 %v206, %v295
    %v297 = vpop.f32.mrb[0].mxu0
    %v298 = vadd.f32 %v202, %v297
    %v299 = vpop.f32.mrb[0].mxu0
    %v300 = vadd.f32 %v206, %v299
    %301 = vmatprep.mubr.bf16.mxu0 0
    %302 = vmatmul.mubr.bf16.gmra.mrb[0].mxu0 %v251
    %v303 = vpop.f32.mrb[0].mxu0
    %v304 = vadd.f32 %v202, %v303
    %v305 = vpop.f32.mrb[0].mxu0
    %v306 = vadd.f32 %v206, %v305
    %v307 = vpop.f32.mrb[0].mxu0
    %v308 = vadd.f32 %v202, %v307
    %v309 = vpop.f32.mrb[0].mxu0
    %v310 = vadd.f32 %v206, %v309
    %311 = vmatprep.mubr.bf16.mxu0 0
    %312 = vmatmul.mubr.bf16.gmra.mrb[0].mxu0 %v254
    %v313 = vpop.f32.mrb[0].mxu0
    %v314 = vadd.f32 %v202, %v313
    %v315 = vpop.f32.mrb[0].mxu0
    %v316 = vadd.f32 %v206, %v315
    %v317 = vpop.f32.mrb[0].mxu0
    %v318 = vadd.f32 %v202, %v317
    %v319 = vpop.f32.mrb[0].mxu0
    %v320 = vadd.f32 %v206, %v319
    %321 = vmatprep.mubr.bf16.mxu0 0
    %322 = vmatmul.mubr.bf16.gmra.mrb[0].mxu0 %v257
    %v323 = vpop.f32.mrb[0].mxu0
    %v324 = vadd.f32 %v202, %v323
    %v325 = vpop.f32.mrb[0].mxu0
    %v326 = vadd.f32 %v206, %v325
    %v327 = vpop.f32.mrb[0].mxu0
    %v328 = vadd.f32 %v202, %v327
    %v329 = vpop.f32.mrb[0].mxu0
    %v330 = vadd.f32 %v206, %v329
    %331 = vdwg.mxu0
    %332 = vmatprep.subr.bf16.mxu0 0
    %333 = vmatpush1.bf16.msra.mxu0 %v236
    %334 = vmatprep.subr.bf16.mxu0 0
    %335 = vmatpush1.bf16.msra.mxu0 %v239
    %336 = vmatprep.subr.bf16.mxu0 0
    %337 = vmatpush1.bf16.msra.mxu0 0
    %338 = vmatprep.subr.bf16.mxu0 0
    %339 = vmatpush1.bf16.msra.mxu0 0
    %340 = vmatprep.subr.bf16.mxu0 0
    %341 = vmatpush1.bf16.msra.mxu0 0
    %342 = vmatprep.subr.bf16.mxu0 0
    %343 = vmatpush1.bf16.msra.mxu0 0
    %344 = vmatprep.subr.bf16.mxu0 0
    %345 = vmatpush1.bf16.msra.mxu0 0
    %346 = vmatprep.subr.bf16.mxu0 0
    %347 = vmatpush1.bf16.msra.mxu0 0
    %348 = vmatprep.subr.bf16.mxu0 0
    %349 = vmatpush1.bf16.msra.mxu0 0
    %350 = vmatprep.subr.bf16.mxu0 0
    %351 = vmatpush1.bf16.msra.mxu0 0
    %352 = vmatprep.subr.bf16.mxu0 0
    %353 = vmatpush1.bf16.msra.mxu0 0
    %354 = vmatprep.subr.bf16.mxu0 0
    %355 = vmatpush1.bf16.msra.mxu0 0
    %356 = vmatprep.subr.bf16.mxu0 0
    %357 = vmatpush1.bf16.msra.mxu0 0
    %358 = vmatprep.subr.bf16.mxu0 0
    %359 = vmatpush1.bf16.msra.mxu0 0
    %360 = vmatprep.subr.bf16.mxu0 0
    %361 = vmatpush1.bf16.msra.mxu0 0
    %362 = vmatprep.subr.bf16.mxu0 0
    %363 = vmatpush1.bf16.msra.mxu0 0
    %364 = vmatprep.mubr.bf16.mxu0 0
    %365 = vmatmul.mubr.bf16.gmra.mrb[0].mxu0 %v248
    %v366 = vpop.f32.mrb[0].mxu0
    %v367 = vadd.f32 %v210, %v366
    %v368 = vpop.f32.mrb[0].mxu0
    %v369 = vpop.f32.mrb[0].mxu0
    %v370 = vadd.f32 %v210, %v369
    %v371 = vpop.f32.mrb[0].mxu0
    %372 = vmatprep.mubr.bf16.mxu0 0
    %373 = vmatmul.mubr.bf16.gmra.mrb[0].mxu0 %v251
    %v374 = vpop.f32.mrb[0].mxu0
    %v375 = vadd.f32 %v210, %v374
    %v376 = vpop.f32.mrb[0].mxu0
    %v377 = vpop.f32.mrb[0].mxu0
    %v378 = vadd.f32 %v210, %v377
    %v379 = vpop.f32.mrb[0].mxu0
    %380 = vmatprep.mubr.bf16.mxu0 0
    %381 = vmatmul.mubr.bf16.gmra.mrb[0].mxu0 %v254
    %v382 = vpop.f32.mrb[0].mxu0
    %v383 = vadd.f32 %v210, %v382
    %v384 = vpop.f32.mrb[0].mxu0
    %v385 = vpop.f32.mrb[0].mxu0
    %v386 = vadd.f32 %v210, %v385
    %v387 = vpop.f32.mrb[0].mxu0
    %388 = vmatprep.mubr.bf16.mxu0 0
    %389 = vmatmul.mubr.bf16.gmra.mrb[0].mxu0 %v257
    %v390 = vpop.f32.mrb[0].mxu0
    %v391 = vadd.f32 %v210, %v390
    %v392 = vpop.f32.mrb[0].mxu0
    %v393 = vpop.f32.mrb[0].mxu0
    %v394 = vadd.f32 %v210, %v393
    %v395 = vpop.f32.mrb[0].mxu0
    %396 = vdwg.mxu0
    %397 = vst [vmem:[#allocation2] sm:$0xff] %v294
    %398 = vst [vmem:[#allocation2 + $0x8] sm:$0xff] %v296
    %399 = vst [vmem:[#allocation2 + $0x10] sm:$0xff] %v367
    %400 = vst [vmem:[#allocation2 + $0x18] sm:$0xff] %v298
    %401 = vst [vmem:[#allocation2 + $0x20] sm:$0xff] %v300
    %402 = vst [vmem:[#allocation2 + $0x28] sm:$0xff] %v370
    %403 = vst [vmem:[#allocation2 + $0x30] sm:$0xff] %v304
    %404 = vst [vmem:[#allocation2 + $0x38] sm:$0xff] %v306
    %405 = vst [vmem:[#allocation2 + $0x40] sm:$0xff] %v375
    %406 = vst [vmem:[#allocation2 + $0x48] sm:$0xff] %v308
    %407 = vst [vmem:[#allocation2 + $0x50] sm:$0xff] %v310
    %408 = vst [vmem:[#allocation2 + $0x58] sm:$0xff] %v378
    %409 = vst [vmem:[#allocation2 + $0x60] sm:$0xff] %v314
    %410 = vst [vmem:[#allocation2 + $0x68] sm:$0xff] %v316
    %411 = vst [vmem:[#allocation2 + $0x70] sm:$0xff] %v383
    %412 = vst [vmem:[#allocation2 + $0x78] sm:$0xff] %v318
    %413 = vst [vmem:[#allocation2 + $0x80] sm:$0xff] %v320
    %414 = vst [vmem:[#allocation2 + $0x88] sm:$0xff] %v386
    %415 = vst [vmem:[#allocation2 + $0x90] sm:$0xff] %v324
    %416 = vst [vmem:[#allocation2 + $0x98] sm:$0xff] %v326
    %417 = vst [vmem:[#allocation2 + $0xa0] sm:$0xff] %v391
    %418 = vst [vmem:[#allocation2 + $0xa8] sm:$0xff] %v328
    %419 = vst [vmem:[#allocation2 + $0xb0] sm:$0xff] %v330
    %420 = vst [vmem:[#allocation2 + $0xb8] sm:$0xff] %v394
    %v421 = vlaneseq
    %v422 = vand.u32 %v421, 127
    %v423 = vadd.s32 %v422, 128
    %v424 = vadd.s32 %v422, 256
    %vm425 = vcmp.lt.s32.totalorder %v422, 0
    %v426 = vsub.s32 0, %v422
    %v427 = vsel %vm425, %v426, %v422
    %v428 = vshrl.u32 %v427, 7
    %v429 = vand.u32 %v427, 127
    %v430 = vsub.s32 0, %v429
    %v431 = vsel %vm425, %v430, %v429
    %vm432 = vcmp.lt.s32.totalorder %v423, 0
    %v433 = vsub.s32 0, %v423
    %v434 = vsel %vm432, %v433, %v423
    %v435 = vshrl.u32 %v434, 7
    %v436 = vand.u32 %v434, 127
    %v437 = vsub.s32 0, %v436
    %v438 = vsel %vm432, %v437, %v436
    %vm439 = vcmp.lt.s32.totalorder %v424, 0
    %v440 = vsub.s32 0, %v424
    %v441 = vsel %vm439, %v440, %v424
    %v442 = vshrl.u32 %v441, 7
    %v443 = vand.u32 %v441, 127
    %v444 = vsub.s32 0, %v443
    %v445 = vsel %vm439, %v444, %v443
    %vm446 = vcmp.ne.s32.totalorder %v431, 0
    %vm447 = vcmp.ne.s32.totalorder %v438, 0
    %vm448 = vcmp.ne.s32.totalorder %v445, 0
    %vm449 = vcmp.lt.s32.totalorder %v431, 0
    %vm450 = vcmp.lt.s32.totalorder %v438, 0
    %vm451 = vcmp.lt.s32.totalorder %v445, 0
    %vm452 = vmand %vm449, %vm446
    %vm453 = vmand %vm450, %vm447
    %vm454 = vmand %vm451, %vm448
    %v455 = vadd.s32 %v431, 128
    %v456 = vadd.s32 %v438, 128
    %v457 = vadd.s32 %v445, 128
    %v458 = vsel %vm452, %v455, %v431
    %v459 = vsel %vm453, %v456, %v438
    %v460 = vsel %vm454, %v457, %v445
    %vm461 = vcmp.lt.s32.totalorder %v458, 64
    %vm462 = vcmp.lt.s32.totalorder %v459, 64
    %vm463 = vcmp.lt.s32.totalorder %v460, 64
    %v464 = vld [vmem:[#allocation2] sm:$0xff]
    %v465 = vld [vmem:[#allocation2 + $0x8] sm:$0xff]
    %v466 = vld [vmem:[#allocation2 + $0x10] sm:$0xff]
    %s467 = scalar_lea.vmem [#allocation2], 168
    %v468 = vld [vmem:[%s467] sm:$0xff]
    %v469 = vld [vmem:[%s467 + $0x8] sm:$0xff]
    %v470 = vld [vmem:[%s467 + $0x10] sm:$0xff]
    %v471 = vsel %vm461, %v464, %v468
    %v472 = vsel %vm462, %v465, %v469
    %v473 = vsel %vm463, %v466, %v470
    %474 = vst [vmem:[#allocation2] sm:$0xff] %v471
    %475 = vst [vmem:[#allocation2 + $0x8] sm:$0xff] %v472
    %476 = vst [vmem:[#allocation2 + $0x10] sm:$0xff] %v473
    %v477 = vsel %vm461, %v468, %v464
    %v478 = vsel %vm462, %v469, %v465
    %v479 = vsel %vm463, %v470, %v466
    %480 = vst [vmem:[%s467] sm:$0xff] %v477
    %481 = vst [vmem:[%s467 + $0x8] sm:$0xff] %v478
    %482 = vst [vmem:[%s467 + $0x10] sm:$0xff] %v479
    %s483 = scalar_lea.vmem [#allocation2], 24
    %v484 = vld [vmem:[%s483] sm:$0xff]
    %v485 = vld [vmem:[%s483 + $0x8] sm:$0xff]
    %v486 = vld [vmem:[%s483 + $0x10] sm:$0xff]
    %s487 = scalar_lea.vmem [#allocation2], 144
    %v488 = vld [vmem:[%s487] sm:$0xff]
    %v489 = vld [vmem:[%s487 + $0x8] sm:$0xff]
    %v490 = vld [vmem:[%s487 + $0x10] sm:$0xff]
    %v491 = vsel %vm461, %v484, %v488
    %v492 = vsel %vm462, %v485, %v489
    %v493 = vsel %vm463, %v486, %v490
    %494 = vst [vmem:[%s483] sm:$0xff] %v491
    %495 = vst [vmem:[%s483 + $0x8] sm:$0xff] %v492
    %496 = vst [vmem:[%s483 + $0x10] sm:$0xff] %v493
    %v497 = vsel %vm461, %v488, %v484
    %v498 = vsel %vm462, %v489, %v485
    %v499 = vsel %vm463, %v490, %v486
    %500 = vst [vmem:[%s487] sm:$0xff] %v497
    %501 = vst [vmem:[%s487 + $0x8] sm:$0xff] %v498
    %502 = vst [vmem:[%s487 + $0x10] sm:$0xff] %v499
    %s503 = scalar_lea.vmem [#allocation2], 48
    %v504 = vld [vmem:[%s503] sm:$0xff]
    %v505 = vld [vmem:[%s503 + $0x8] sm:$0xff]
    %v506 = vld [vmem:[%s503 + $0x10] sm:$0xff]
    %s507 = scalar_lea.vmem [#allocation2], 120
    %v508 = vld [vmem:[%s507] sm:$0xff]
    %v509 = vld [vmem:[%s507 + $0x8] sm:$0xff]
    %v510 = vld [vmem:[%s507 + $0x10] sm:$0xff]
    %v511 = vsel %vm461, %v504, %v508
    %v512 = vsel %vm462, %v505, %v509
    %v513 = vsel %vm463, %v506, %v510
    %514 = vst [vmem:[%s503] sm:$0xff] %v511
    %515 = vst [vmem:[%s503 + $0x8] sm:$0xff] %v512
    %516 = vst [vmem:[%s503 + $0x10] sm:$0xff] %v513
    %v517 = vsel %vm461, %v508, %v504
    %v518 = vsel %vm462, %v509, %v505
    %v519 = vsel %vm463, %v510, %v506
    %520 = vst [vmem:[%s507] sm:$0xff] %v517
    %521 = vst [vmem:[%s507 + $0x8] sm:$0xff] %v518
    %522 = vst [vmem:[%s507 + $0x10] sm:$0xff] %v519
    %s523 = scalar_lea.vmem [#allocation2], 72
    %v524 = vld [vmem:[%s523] sm:$0xff]
    %v525 = vld [vmem:[%s523 + $0x8] sm:$0xff]
    %v526 = vld [vmem:[%s523 + $0x10] sm:$0xff]
    %s527 = scalar_lea.vmem [#allocation2], 96
    %v528 = vld [vmem:[%s527] sm:$0xff]
    %v529 = vld [vmem:[%s527 + $0x8] sm:$0xff]
    %v530 = vld [vmem:[%s527 + $0x10] sm:$0xff]
    %v531 = vsel %vm461, %v524, %v528
    %v532 = vsel %vm462, %v525, %v529
    %v533 = vsel %vm463, %v526, %v530
    %534 = vst [vmem:[%s523] sm:$0xff] %v531
    %535 = vst [vmem:[%s523 + $0x8] sm:$0xff] %v532
    %536 = vst [vmem:[%s523 + $0x10] sm:$0xff] %v533
    %v537 = vsel %vm461, %v528, %v524
    %v538 = vsel %vm462, %v529, %v525
    %v539 = vsel %vm463, %v530, %v526
    %540 = vst [vmem:[%s527] sm:$0xff] %v537
    %541 = vst [vmem:[%s527 + $0x8] sm:$0xff] %v538
    %542 = vst [vmem:[%s527 + $0x10] sm:$0xff] %v539
    %v543 = vld [vmem:[#allocation8] sm:$0xff]
    %v544 = vld [vmem:[#allocation8 + $0x8] sm:$0xf]
    %v545 = vld [vmem:[#allocation8 + $0xc] sm:$0xff]
    %v546 = vld [vmem:[#allocation8 + $0x14] sm:$0xf]
    %v547 = vld [vmem:[#allocation8 + $0x18] sm:$0xff]
    %v548 = vld [vmem:[#allocation8 + $0x20] sm:$0xf]
    %v549 = vld [vmem:[#allocation8 + $0x24] sm:$0xff]
    %v550 = vld [vmem:[#allocation8 + $0x2c] sm:$0xf]
    %v551 = vld [vmem:[#allocation8 + $0x30] sm:$0xff]
    %v552 = vld [vmem:[#allocation8 + $0x38] sm:$0xf]
    %v553 = vld [vmem:[#allocation8 + $0x3c] sm:$0xff]
    %v554 = vld [vmem:[#allocation8 + $0x44] sm:$0xf]
    %v555 = vld [vmem:[#allocation8 + $0x48] sm:$0xff]
    %v556 = vld [vmem:[#allocation8 + $0x50] sm:$0xf]
    %v557 = vld [vmem:[#allocation8 + $0x54] sm:$0xff]
    %v558 = vld [vmem:[#allocation8 + $0x5c] sm:$0xf]
    %v559 = vld [vmem:[#allocation8 + $0x60] sm:$0xff]
    %v560 = vld [vmem:[#allocation8 + $0x68] sm:$0xf]
    %v561 = vld [vmem:[#allocation8 + $0x6c] sm:$0xff]
    %v562 = vld [vmem:[#allocation8 + $0x74] sm:$0xf]
    %v563 = vld [vmem:[#allocation8 + $0x78] sm:$0xff]
    %v564 = vld [vmem:[#allocation8 + $0x80] sm:$0xf]
    %v565 = vld [vmem:[#allocation8 + $0x84] sm:$0xff]
    %v566 = vld [vmem:[#allocation8 + $0x8c] sm:$0xf]
    %v567 = vld [vmem:[#allocation8 + $0x90] sm:$0xff]
    %v568 = vld [vmem:[#allocation8 + $0x98] sm:$0xf]
    %v569 = vld [vmem:[#allocation8 + $0x9c] sm:$0xff]
    %v570 = vld [vmem:[#allocation8 + $0xa4] sm:$0xf]
    %v571 = vld [vmem:[#allocation8 + $0xa8] sm:$0xff]
    %v572 = vld [vmem:[#allocation8 + $0xb0] sm:$0xf]
    %v573 = vld [vmem:[#allocation8 + $0xb4] sm:$0xff]
    %v574 = vld [vmem:[#allocation8 + $0xbc] sm:$0xf]
    %v575 = vld [vmem:[#allocation9] sm:$0x7]
    %v576 = vld [vmem:[%s1] sm:$0xff]
    %v577 = vld [vmem:[#allocation2] sm:$0xff]
    %v578 = vld [vmem:[#allocation2 + $0x8] sm:$0xff]
    %v579 = vld [vmem:[#allocation2 + $0x10] sm:$0xff]
    %v580 = vpack.c.bf16 %v576, %v576
    %v582 = vlaneseq
    %v583 = vshrl.u32 %v582, 7
    %v584 = vsub.s32 0, %v583
    %v585 = vrot.slane %v575, %v584
    %v586 = vlaneseq
    %v587 = vshrl.u32 %v586, 7
    %v588 = vsub.s32 1, %v587
    %v589 = vrot.slane %v575, %v588
    %v590 = vlaneseq
    %v591 = vshrl.u32 %v590, 7
    %v592 = vsub.s32 2, %v591
    %v593 = vrot.slane %v575, %v592
    %v629 = vunpack.c.l.b16 %v543
    %v630 = vunpack.c.h.b16 %v543
    %v631 = vunpack.c.l.b16 %v544
    %v632 = vunpack.c.l.b16 %v545
    %v633 = vunpack.c.h.b16 %v545
    %v634 = vunpack.c.l.b16 %v546
    %v635 = vunpack.c.l.b16 %v547
    %v636 = vunpack.c.h.b16 %v547
    %v637 = vunpack.c.l.b16 %v548
    %v638 = vunpack.c.l.b16 %v549
    %v639 = vunpack.c.h.b16 %v549
    %v640 = vunpack.c.l.b16 %v550
    %v641 = vunpack.c.l.b16 %v551
    %v642 = vunpack.c.h.b16 %v551
    %v643 = vunpack.c.l.b16 %v552
    %v644 = vunpack.c.l.b16 %v553
    %v645 = vunpack.c.h.b16 %v553
    %v646 = vunpack.c.l.b16 %v554
    %v647 = vunpack.c.l.b16 %v555
    %v648 = vunpack.c.h.b16 %v555
    %v649 = vunpack.c.l.b16 %v556
    %v650 = vunpack.c.l.b16 %v557
    %v651 = vunpack.c.h.b16 %v557
    %v652 = vunpack.c.l.b16 %v558
    %v653 = vunpack.c.l.b16 %v559
    %v654 = vunpack.c.h.b16 %v559
    %v655 = vunpack.c.l.b16 %v560
    %v656 = vunpack.c.l.b16 %v561
    %v657 = vunpack.c.h.b16 %v561
    %v658 = vunpack.c.l.b16 %v562
    %v659 = vunpack.c.l.b16 %v563
    %v660 = vunpack.c.h.b16 %v563
    %v661 = vunpack.c.l.b16 %v564
    %v662 = vunpack.c.l.b16 %v565
    %v663 = vunpack.c.h.b16 %v565
    %v664 = vunpack.c.l.b16 %v566
    %v665 = vunpack.c.l.b16 %v567
    %v666 = vunpack.c.h.b16 %v567
    %v667 = vunpack.c.l.b16 %v568
    %v668 = vunpack.c.l.b16 %v569
    %v669 = vunpack.c.h.b16 %v569
    %v670 = vunpack.c.l.b16 %v570
    %v671 = vunpack.c.l.b16 %v571
    %v672 = vunpack.c.h.b16 %v571
    %v673 = vunpack.c.l.b16 %v572
    %v674 = vunpack.c.l.b16 %v573
    %v675 = vunpack.c.h.b16 %v573
    %v676 = vunpack.c.l.b16 %v574
    %v677 = vpack.c.b16 %v632, %v629
    %v678 = vpack.c.b16 %v633, %v630
    %v679 = vpack.c.b16 %v634, %v631
    %v680 = vpack.c.b16 %v638, %v635
    %v681 = vpack.c.b16 %v639, %v636
    %v682 = vpack.c.b16 %v640, %v637
    %v683 = vpack.c.b16 %v644, %v641
    %v684 = vpack.c.b16 %v645, %v642
    %v685 = vpack.c.b16 %v646, %v643
    %v686 = vpack.c.b16 %v650, %v647
    %v687 = vpack.c.b16 %v651, %v648
    %v688 = vpack.c.b16 %v652, %v649
    %v689 = vpack.c.b16 %v656, %v653
    %v690 = vpack.c.b16 %v657, %v654
    %v691 = vpack.c.b16 %v658, %v655
    %v692 = vpack.c.b16 %v662, %v659
    %v693 = vpack.c.b16 %v663, %v660
    %v694 = vpack.c.b16 %v664, %v661
    %v695 = vpack.c.b16 %v668, %v665
    %v696 = vpack.c.b16 %v669, %v666
    %v697 = vpack.c.b16 %v670, %v667
    %v698 = vpack.c.b16 %v674, %v671
    %v699 = vpack.c.b16 %v675, %v672
    %v700 = vpack.c.b16 %v676, %v673
    %725 = vmatprep.subr.bf16.mxu0 %v678
    %726 = vmatpush1.bf16.msra.mxu0 %v677
    %727 = vmatprep.subr.bf16.mxu0 %v681
    %728 = vmatpush1.bf16.msra.mxu0 %v680
    %729 = vmatprep.subr.bf16.mxu0 %v684
    %730 = vmatpush1.bf16.msra.mxu0 %v683
    %731 = vmatprep.subr.bf16.mxu0 %v687
    %732 = vmatpush1.bf16.msra.mxu0 %v686
    %733 = vmatprep.subr.bf16.mxu0 %v690
    %734 = vmatpush1.bf16.msra.mxu0 %v689
    %735 = vmatprep.subr.bf16.mxu0 %v693
    %736 = vmatpush1.bf16.msra.mxu0 %v692
    %737 = vmatprep.subr.bf16.mxu0 %v696
    %738 = vmatpush1.bf16.msra.mxu0 %v695
    %739 = vmatprep.subr.bf16.mxu0 %v699
    %740 = vmatpush1.bf16.msra.mxu0 %v698
    %741 = vmatprep.subr.bf16.mxu0 0
    %742 = vmatpush1.bf16.msra.mxu0 0
    %743 = vmatprep.subr.bf16.mxu0 0
    %744 = vmatpush1.bf16.msra.mxu0 0
    %745 = vmatprep.subr.bf16.mxu0 0
    %746 = vmatpush1.bf16.msra.mxu0 0
    %747 = vmatprep.subr.bf16.mxu0 0
    %748 = vmatpush1.bf16.msra.mxu0 0
    %749 = vmatprep.subr.bf16.mxu0 0
    %750 = vmatpush1.bf16.msra.mxu0 0
    %751 = vmatprep.subr.bf16.mxu0 0
    %752 = vmatpush1.bf16.msra.mxu0 0
    %753 = vmatprep.subr.bf16.mxu0 0
    %754 = vmatpush1.bf16.msra.mxu0 0
    %755 = vmatprep.subr.bf16.mxu0 0
    %756 = vmatpush1.bf16.msra.mxu0 0
    %757 = vmatprep.mubr.bf16.mxu0 0
    %758 = vmatmul.mubr.bf16.gmra.mrb[0].mxu0 %v580
    %v759 = vpop.f32.mrb[0].mxu0
    %v760 = vadd.f32 %v585, %v759
    %v761 = vpop.f32.mrb[0].mxu0
    %v762 = vadd.f32 %v589, %v761
    %v763 = vpop.f32.mrb[0].mxu0
    %v764 = vpop.f32.mrb[0].mxu0
    %765 = vdwg.mxu0
    %766 = vmatprep.subr.bf16.mxu0 0
    %767 = vmatpush1.bf16.msra.mxu0 %v679
    %768 = vmatprep.subr.bf16.mxu0 0
    %769 = vmatpush1.bf16.msra.mxu0 %v682
    %770 = vmatprep.subr.bf16.mxu0 0
    %771 = vmatpush1.bf16.msra.mxu0 %v685
    %772 = vmatprep.subr.bf16.mxu0 0
    %773 = vmatpush1.bf16.msra.mxu0 %v688
    %774 = vmatprep.subr.bf16.mxu0 0
    %775 = vmatpush1.bf16.msra.mxu0 %v691
    %776 = vmatprep.subr.bf16.mxu0 0
    %777 = vmatpush1.bf16.msra.mxu0 %v694
    %778 = vmatprep.subr.bf16.mxu0 0
    %779 = vmatpush1.bf16.msra.mxu0 %v697
    %780 = vmatprep.subr.bf16.mxu0 0
    %781 = vmatpush1.bf16.msra.mxu0 %v700
    %782 = vmatprep.subr.bf16.mxu0 0
    %783 = vmatpush1.bf16.msra.mxu0 0
    %784 = vmatprep.subr.bf16.mxu0 0
    %785 = vmatpush1.bf16.msra.mxu0 0
    %786 = vmatprep.subr.bf16.mxu0 0
    %787 = vmatpush1.bf16.msra.mxu0 0
    %788 = vmatprep.subr.bf16.mxu0 0
    %789 = vmatpush1.bf16.msra.mxu0 0
    %790 = vmatprep.subr.bf16.mxu0 0
    %791 = vmatpush1.bf16.msra.mxu0 0
    %792 = vmatprep.subr.bf16.mxu0 0
    %793 = vmatpush1.bf16.msra.mxu0 0
    %794 = vmatprep.subr.bf16.mxu0 0
    %795 = vmatpush1.bf16.msra.mxu0 0
    %796 = vmatprep.subr.bf16.mxu0 0
    %797 = vmatpush1.bf16.msra.mxu0 0
    %798 = vmatprep.mubr.bf16.mxu0 0
    %799 = vmatmul.mubr.bf16.gmra.mrb[0].mxu0 %v580
    %v800 = vpop.f32.mrb[0].mxu0
    %v801 = vadd.f32 %v593, %v800
    %v802 = vpop.f32.mrb[0].mxu0
    %v803 = vpop.f32.mrb[0].mxu0
    %v804 = vpop.f32.mrb[0].mxu0
    %805 = vdwg.mxu0
    %v806 = vadd.f32 %v577, %v760
    %v807 = vxor.u32 %v806, 2147483648
    %v808 = vmul.f32 %v807, 1.442695
    %v809 = vpow.pop %v808
    %v810 = vadd.f32 %v809, 1.0
    %v811 = vrcp.pop %v810
    %v812 = vmul.f32 1.0, %v811
    %v813 = vadd.f32 %v578, %v762
    %v814 = vxor.u32 %v813, 2147483648
    %v815 = vmul.f32 %v814, 1.442695
    %v816 = vpow.pop %v815
    %v817 = vadd.f32 %v816, 1.0
    %v818 = vrcp.pop %v817
    %v819 = vmul.f32 1.0, %v818
    %v820 = vmul.f32 %v812, %v801
    %v821 = vadd.f32 %v579, %v820
    %v822 = vtanh.pop %v821
    %v823 = vsub.f32 1.0, %v819
    %v824 = vmul.f32 %v823, %v822
    %v825 = vmul.f32 %v819, %v576
    %v826 = vadd.f32 %v824, %v825
    %vm827 = vcmask 523264
    %828 = vst.msk [vmem:[#allocation3] sm:$0xff] %vm827, %v826
    %s829 = scalar_lea.vmem [#allocation3], 56
    %vm830 = vcmask 1048064
    %831 = vst.msk [vmem:[%s829] sm:$0xff] %vm830, %v826
    %v832 = vld [vmem:[%s483] sm:$0xff]
    %v833 = vld [vmem:[%s483 + $0x8] sm:$0xff]
    %v834 = vld [vmem:[%s483 + $0x10] sm:$0xff]
    %v835 = vpack.c.bf16 %v826, %v826
    %836 = vmatprep.subr.bf16.mxu0 %v678
    %837 = vmatpush1.bf16.msra.mxu0 %v677
    %838 = vmatprep.subr.bf16.mxu0 %v681
    %839 = vmatpush1.bf16.msra.mxu0 %v680
    %840 = vmatprep.subr.bf16.mxu0 %v684
    %841 = vmatpush1.bf16.msra.mxu0 %v683
    %842 = vmatprep.subr.bf16.mxu0 %v687
    %843 = vmatpush1.bf16.msra.mxu0 %v686
    %844 = vmatprep.subr.bf16.mxu0 %v690
    %845 = vmatpush1.bf16.msra.mxu0 %v689
    %846 = vmatprep.subr.bf16.mxu0 %v693
    %847 = vmatpush1.bf16.msra.mxu0 %v692
    %848 = vmatprep.subr.bf16.mxu0 %v696
    %849 = vmatpush1.bf16.msra.mxu0 %v695
    %850 = vmatprep.subr.bf16.mxu0 %v699
    %851 = vmatpush1.bf16.msra.mxu0 %v698
    %852 = vmatprep.subr.bf16.mxu0 0
    %853 = vmatpush1.bf16.msra.mxu0 0
    %854 = vmatprep.subr.bf16.mxu0 0
    %855 = vmatpush1.bf16.msra.mxu0 0
    %856 = vmatprep.subr.bf16.mxu0 0
    %857 = vmatpush1.bf16.msra.mxu0 0
    %858 = vmatprep.subr.bf16.mxu0 0
    %859 = vmatpush1.bf16.msra.mxu0 0
    %860 = vmatprep.subr.bf16.mxu0 0
    %861 = vmatpush1.bf16.msra.mxu0 0
    %862 = vmatprep.subr.bf16.mxu0 0
    %863 = vmatpush1.bf16.msra.mxu0 0
    %864 = vmatprep.subr.bf16.mxu0 0
    %865 = vmatpush1.bf16.msra.mxu0 0
    %866 = vmatprep.subr.bf16.mxu0 0
    %867 = vmatpush1.bf16.msra.mxu0 0
    %868 = vmatprep.mubr.bf16.mxu0 0
    %869 = vmatmul.mubr.bf16.gmra.mrb[0].mxu0 %v835
    %v870 = vpop.f32.mrb[0].mxu0
    %v871 = vadd.f32 %v585, %v870
    %v872 = vpop.f32.mrb[0].mxu0
    %v873 = vadd.f32 %v589, %v872
    %v874 = vpop.f32.mrb[0].mxu0
    %v875 = vpop.f32.mrb[0].mxu0
    %876 = vdwg.mxu0
    %877 = vmatprep.subr.bf16.mxu0 0
    %878 = vmatpush1.bf16.msra.mxu0 %v679
    %879 = vmatprep.subr.bf16.mxu0 0
    %880 = vmatpush1.bf16.msra.mxu0 %v682
    %881 = vmatprep.subr.bf16.mxu0 0
    %882 = vmatpush1.bf16.msra.mxu0 %v685
    %883 = vmatprep.subr.bf16.mxu0 0
    %884 = vmatpush1.bf16.msra.mxu0 %v688
    %885 = vmatprep.subr.bf16.mxu0 0
    %886 = vmatpush1.bf16.msra.mxu0 %v691
    %887 = vmatprep.subr.bf16.mxu0 0
    %888 = vmatpush1.bf16.msra.mxu0 %v694
    %889 = vmatprep.subr.bf16.mxu0 0
    %890 = vmatpush1.bf16.msra.mxu0 %v697
    %891 = vmatprep.subr.bf16.mxu0 0
    %892 = vmatpush1.bf16.msra.mxu0 %v700
    %893 = vmatprep.subr.bf16.mxu0 0
    %894 = vmatpush1.bf16.msra.mxu0 0
    %895 = vmatprep.subr.bf16.mxu0 0
    %896 = vmatpush1.bf16.msra.mxu0 0
    %897 = vmatprep.subr.bf16.mxu0 0
    %898 = vmatpush1.bf16.msra.mxu0 0
    %899 = vmatprep.subr.bf16.mxu0 0
    %900 = vmatpush1.bf16.msra.mxu0 0
    %901 = vmatprep.subr.bf16.mxu0 0
    %902 = vmatpush1.bf16.msra.mxu0 0
    %903 = vmatprep.subr.bf16.mxu0 0
    %904 = vmatpush1.bf16.msra.mxu0 0
    %905 = vmatprep.subr.bf16.mxu0 0
    %906 = vmatpush1.bf16.msra.mxu0 0
    %907 = vmatprep.subr.bf16.mxu0 0
    %908 = vmatpush1.bf16.msra.mxu0 0
    %909 = vmatprep.mubr.bf16.mxu0 0
    %910 = vmatmul.mubr.bf16.gmra.mrb[0].mxu0 %v835
    %v911 = vpop.f32.mrb[0].mxu0
    %v912 = vadd.f32 %v593, %v911
    %v913 = vpop.f32.mrb[0].mxu0
    %v914 = vpop.f32.mrb[0].mxu0
    %v915 = vpop.f32.mrb[0].mxu0
    %916 = vdwg.mxu0
    %v917 = vadd.f32 %v832, %v871
    %v918 = vxor.u32 %v917, 2147483648
    %v919 = vmul.f32 %v918, 1.442695
    %v920 = vpow.pop %v919
    %v921 = vadd.f32 %v920, 1.0
    %v922 = vrcp.pop %v921
    %v923 = vmul.f32 1.0, %v922
    %v924 = vadd.f32 %v833, %v873
    %v925 = vxor.u32 %v924, 2147483648
    %v926 = vmul.f32 %v925, 1.442695
    %v927 = vpow.pop %v926
    %v928 = vadd.f32 %v927, 1.0
    %v929 = vrcp.pop %v928
    %v930 = vmul.f32 1.0, %v929
    %v931 = vmul.f32 %v923, %v912
    %v932 = vadd.f32 %v834, %v931
    %v933 = vtanh.pop %v932
    %v934 = vsub.f32 1.0, %v930
    %v935 = vmul.f32 %v934, %v933
    %v936 = vmul.f32 %v930, %v826
    %v937 = vadd.f32 %v935, %v936
    %s938 = scalar_lea.vmem [#allocation3], 8
    %939 = vst.msk [vmem:[%s938] sm:$0xff] %vm827, %v937
    %s940 = scalar_lea.vmem [#allocation3], 48
    %941 = vst.msk [vmem:[%s940] sm:$0xff] %vm830, %v937
    %v942 = vld [vmem:[%s503] sm:$0xff]
    %v943 = vld [vmem:[%s503 + $0x8] sm:$0xff]
    %v944 = vld [vmem:[%s503 + $0x10] sm:$0xff]
    %v945 = vpack.c.bf16 %v937, %v937
    %946 = vmatprep.subr.bf16.mxu0 %v678
    %947 = vmatpush1.bf16.msra.mxu0 %v677
    %948 = vmatprep.subr.bf16.mxu0 %v681
    %949 = vmatpush1.bf16.msra.mxu0 %v680
    %950 = vmatprep.subr.bf16.mxu0 %v684
    %951 = vmatpush1.bf16.msra.mxu0 %v683
    %952 = vmatprep.subr.bf16.mxu0 %v687
    %953 = vmatpush1.bf16.msra.mxu0 %v686
    %954 = vmatprep.subr.bf16.mxu0 %v690
    %955 = vmatpush1.bf16.msra.mxu0 %v689
    %956 = vmatprep.subr.bf16.mxu0 %v693
    %957 = vmatpush1.bf16.msra.mxu0 %v692
    %958 = vmatprep.subr.bf16.mxu0 %v696
    %959 = vmatpush1.bf16.msra.mxu0 %v695
    %960 = vmatprep.subr.bf16.mxu0 %v699
    %961 = vmatpush1.bf16.msra.mxu0 %v698
    %962 = vmatprep.subr.bf16.mxu0 0
    %963 = vmatpush1.bf16.msra.mxu0 0
    %964 = vmatprep.subr.bf16.mxu0 0
    %965 = vmatpush1.bf16.msra.mxu0 0
    %966 = vmatprep.subr.bf16.mxu0 0
    %967 = vmatpush1.bf16.msra.mxu0 0
    %968 = vmatprep.subr.bf16.mxu0 0
    %969 = vmatpush1.bf16.msra.mxu0 0
    %970 = vmatprep.subr.bf16.mxu0 0
    %971 = vmatpush1.bf16.msra.mxu0 0
    %972 = vmatprep.subr.bf16.mxu0 0
    %973 = vmatpush1.bf16.msra.mxu0 0
    %974 = vmatprep.subr.bf16.mxu0 0
    %975 = vmatpush1.bf16.msra.mxu0 0
    %976 = vmatprep.subr.bf16.mxu0 0
    %977 = vmatpush1.bf16.msra.mxu0 0
    %978 = vmatprep.mubr.bf16.mxu0 0
    %979 = vmatmul.mubr.bf16.gmra.mrb[0].mxu0 %v945
    %v980 = vpop.f32.mrb[0].mxu0
    %v981 = vadd.f32 %v585, %v980
    %v982 = vpop.f32.mrb[0].mxu0
    %v983 = vadd.f32 %v589, %v982
    %v984 = vpop.f32.mrb[0].mxu0
    %v985 = vpop.f32.mrb[0].mxu0
    %986 = vdwg.mxu0
    %987 = vmatprep.subr.bf16.mxu0 0
    %988 = vmatpush1.bf16.msra.mxu0 %v679
    %989 = vmatprep.subr.bf16.mxu0 0
    %990 = vmatpush1.bf16.msra.mxu0 %v682
    %991 = vmatprep.subr.bf16.mxu0 0
    %992 = vmatpush1.bf16.msra.mxu0 %v685
    %993 = vmatprep.subr.bf16.mxu0 0
    %994 = vmatpush1.bf16.msra.mxu0 %v688
    %995 = vmatprep.subr.bf16.mxu0 0
    %996 = vmatpush1.bf16.msra.mxu0 %v691
    %997 = vmatprep.subr.bf16.mxu0 0
    %998 = vmatpush1.bf16.msra.mxu0 %v694
    %999 = vmatprep.subr.bf16.mxu0 0
    %1000 = vmatpush1.bf16.msra.mxu0 %v697
    %1001 = vmatprep.subr.bf16.mxu0 0
    %1002 = vmatpush1.bf16.msra.mxu0 %v700
    %1003 = vmatprep.subr.bf16.mxu0 0
    %1004 = vmatpush1.bf16.msra.mxu0 0
    %1005 = vmatprep.subr.bf16.mxu0 0
    %1006 = vmatpush1.bf16.msra.mxu0 0
    %1007 = vmatprep.subr.bf16.mxu0 0
    %1008 = vmatpush1.bf16.msra.mxu0 0
    %1009 = vmatprep.subr.bf16.mxu0 0
    %1010 = vmatpush1.bf16.msra.mxu0 0
    %1011 = vmatprep.subr.bf16.mxu0 0
    %1012 = vmatpush1.bf16.msra.mxu0 0
    %1013 = vmatprep.subr.bf16.mxu0 0
    %1014 = vmatpush1.bf16.msra.mxu0 0
    %1015 = vmatprep.subr.bf16.mxu0 0
    %1016 = vmatpush1.bf16.msra.mxu0 0
    %1017 = vmatprep.subr.bf16.mxu0 0
    %1018 = vmatpush1.bf16.msra.mxu0 0
    %1019 = vmatprep.mubr.bf16.mxu0 0
    %1020 = vmatmul.mubr.bf16.gmra.mrb[0].mxu0 %v945
    %v1021 = vpop.f32.mrb[0].mxu0
    %v1022 = vadd.f32 %v593, %v1021
    %v1023 = vpop.f32.mrb[0].mxu0
    %v1024 = vpop.f32.mrb[0].mxu0
    %v1025 = vpop.f32.mrb[0].mxu0
    %1026 = vdwg.mxu0
    %v1027 = vadd.f32 %v942, %v981
    %v1028 = vxor.u32 %v1027, 2147483648
    %v1029 = vmul.f32 %v1028, 1.442695
    %v1030 = vpow.pop %v1029
    %v1031 = vadd.f32 %v1030, 1.0
    %v1032 = vrcp.pop %v1031
    %v1033 = vmul.f32 1.0, %v1032
    %v1034 = vadd.f32 %v943, %v983
    %v1035 = vxor.u32 %v1034, 2147483648
    %v1036 = vmul.f32 %v1035, 1.442695
    %v1037 = vpow.pop %v1036
    %v1038 = vadd.f32 %v1037, 1.0
    %v1039 = vrcp.pop %v1038
    %v1040 = vmul.f32 1.0, %v1039
    %v1041 = vmul.f32 %v1033, %v1022
    %v1042 = vadd.f32 %v944, %v1041
    %v1043 = vtanh.pop %v1042
    %v1044 = vsub.f32 1.0, %v1040
    %v1045 = vmul.f32 %v1044, %v1043
    %v1046 = vmul.f32 %v1040, %v937
    %v1047 = vadd.f32 %v1045, %v1046
    %s1048 = scalar_lea.vmem [#allocation3], 16
    %1049 = vst.msk [vmem:[%s1048] sm:$0xff] %vm827, %v1047
    %s1050 = scalar_lea.vmem [#allocation3], 40
    %1051 = vst.msk [vmem:[%s1050] sm:$0xff] %vm830, %v1047
    %v1052 = vld [vmem:[%s523] sm:$0xff]
    %v1053 = vld [vmem:[%s523 + $0x8] sm:$0xff]
    %v1054 = vld [vmem:[%s523 + $0x10] sm:$0xff]
    %v1055 = vpack.c.bf16 %v1047, %v1047
    %1056 = vmatprep.subr.bf16.mxu0 %v678
    %1057 = vmatpush1.bf16.msra.mxu0 %v677
    %1058 = vmatprep.subr.bf16.mxu0 %v681
    %1059 = vmatpush1.bf16.msra.mxu0 %v680
    %1060 = vmatprep.subr.bf16.mxu0 %v684
    %1061 = vmatpush1.bf16.msra.mxu0 %v683
    %1062 = vmatprep.subr.bf16.mxu0 %v687
    %1063 = vmatpush1.bf16.msra.mxu0 %v686
    %1064 = vmatprep.subr.bf16.mxu0 %v690
    %1065 = vmatpush1.bf16.msra.mxu0 %v689
    %1066 = vmatprep.subr.bf16.mxu0 %v693
    %1067 = vmatpush1.bf16.msra.mxu0 %v692
    %1068 = vmatprep.subr.bf16.mxu0 %v696
    %1069 = vmatpush1.bf16.msra.mxu0 %v695
    %1070 = vmatprep.subr.bf16.mxu0 %v699
    %1071 = vmatpush1.bf16.msra.mxu0 %v698
    %1072 = vmatprep.subr.bf16.mxu0 0
    %1073 = vmatpush1.bf16.msra.mxu0 0
    %1074 = vmatprep.subr.bf16.mxu0 0
    %1075 = vmatpush1.bf16.msra.mxu0 0
    %1076 = vmatprep.subr.bf16.mxu0 0
    %1077 = vmatpush1.bf16.msra.mxu0 0
    %1078 = vmatprep.subr.bf16.mxu0 0
    %1079 = vmatpush1.bf16.msra.mxu0 0
    %1080 = vmatprep.subr.bf16.mxu0 0
    %1081 = vmatpush1.bf16.msra.mxu0 0
    %1082 = vmatprep.subr.bf16.mxu0 0
    %1083 = vmatpush1.bf16.msra.mxu0 0
    %1084 = vmatprep.subr.bf16.mxu0 0
    %1085 = vmatpush1.bf16.msra.mxu0 0
    %1086 = vmatprep.subr.bf16.mxu0 0
    %1087 = vmatpush1.bf16.msra.mxu0 0
    %1088 = vmatprep.mubr.bf16.mxu0 0
    %1089 = vmatmul.mubr.bf16.gmra.mrb[0].mxu0 %v1055
    %v1090 = vpop.f32.mrb[0].mxu0
    %v1091 = vadd.f32 %v585, %v1090
    %v1092 = vpop.f32.mrb[0].mxu0
    %v1093 = vadd.f32 %v589, %v1092
    %v1094 = vpop.f32.mrb[0].mxu0
    %v1095 = vpop.f32.mrb[0].mxu0
    %1096 = vdwg.mxu0
    %1097 = vmatprep.subr.bf16.mxu0 0
    %1098 = vmatpush1.bf16.msra.mxu0 %v679
    %1099 = vmatprep.subr.bf16.mxu0 0
    %1100 = vmatpush1.bf16.msra.mxu0 %v682
    %1101 = vmatprep.subr.bf16.mxu0 0
    %1102 = vmatpush1.bf16.msra.mxu0 %v685
    %1103 = vmatprep.subr.bf16.mxu0 0
    %1104 = vmatpush1.bf16.msra.mxu0 %v688
    %1105 = vmatprep.subr.bf16.mxu0 0
    %1106 = vmatpush1.bf16.msra.mxu0 %v691
    %1107 = vmatprep.subr.bf16.mxu0 0
    %1108 = vmatpush1.bf16.msra.mxu0 %v694
    %1109 = vmatprep.subr.bf16.mxu0 0
    %1110 = vmatpush1.bf16.msra.mxu0 %v697
    %1111 = vmatprep.subr.bf16.mxu0 0
    %1112 = vmatpush1.bf16.msra.mxu0 %v700
    %1113 = vmatprep.subr.bf16.mxu0 0
    %1114 = vmatpush1.bf16.msra.mxu0 0
    %1115 = vmatprep.subr.bf16.mxu0 0
    %1116 = vmatpush1.bf16.msra.mxu0 0
    %1117 = vmatprep.subr.bf16.mxu0 0
    %1118 = vmatpush1.bf16.msra.mxu0 0
    %1119 = vmatprep.subr.bf16.mxu0 0
    %1120 = vmatpush1.bf16.msra.mxu0 0
    %1121 = vmatprep.subr.bf16.mxu0 0
    %1122 = vmatpush1.bf16.msra.mxu0 0
    %1123 = vmatprep.subr.bf16.mxu0 0
    %1124 = vmatpush1.bf16.msra.mxu0 0
    %1125 = vmatprep.subr.bf16.mxu0 0
    %1126 = vmatpush1.bf16.msra.mxu0 0
    %1127 = vmatprep.subr.bf16.mxu0 0
    %1128 = vmatpush1.bf16.msra.mxu0 0
    %1129 = vmatprep.mubr.bf16.mxu0 0
    %1130 = vmatmul.mubr.bf16.gmra.mrb[0].mxu0 %v1055
    %v1131 = vpop.f32.mrb[0].mxu0
    %v1132 = vadd.f32 %v593, %v1131
    %v1133 = vpop.f32.mrb[0].mxu0
    %v1134 = vpop.f32.mrb[0].mxu0
    %v1135 = vpop.f32.mrb[0].mxu0
    %1136 = vdwg.mxu0
    %v1137 = vadd.f32 %v1052, %v1091
    %v1138 = vxor.u32 %v1137, 2147483648
    %v1139 = vmul.f32 %v1138, 1.442695
    %v1140 = vpow.pop %v1139
    %v1141 = vadd.f32 %v1140, 1.0
    %v1142 = vrcp.pop %v1141
    %v1143 = vmul.f32 1.0, %v1142
    %v1144 = vadd.f32 %v1053, %v1093
    %v1145 = vxor.u32 %v1144, 2147483648
    %v1146 = vmul.f32 %v1145, 1.442695
    %v1147 = vpow.pop %v1146
    %v1148 = vadd.f32 %v1147, 1.0
    %v1149 = vrcp.pop %v1148
    %v1150 = vmul.f32 1.0, %v1149
    %v1151 = vmul.f32 %v1143, %v1132
    %v1152 = vadd.f32 %v1054, %v1151
    %v1153 = vtanh.pop %v1152
    %v1154 = vsub.f32 1.0, %v1150
    %v1155 = vmul.f32 %v1154, %v1153
    %v1156 = vmul.f32 %v1150, %v1047
    %v1157 = vadd.f32 %v1155, %v1156
    %s1158 = scalar_lea.vmem [#allocation3], 24
    %1159 = vst.msk [vmem:[%s1158] sm:$0xff] %vm827, %v1157
    %s1160 = scalar_lea.vmem [#allocation3], 32
    %1161 = vst.msk [vmem:[%s1160] sm:$0xff] %vm830, %v1157
    %v1162 = vld [vmem:[%s527] sm:$0xff]
    %v1163 = vld [vmem:[%s527 + $0x8] sm:$0xff]
    %v1164 = vld [vmem:[%s527 + $0x10] sm:$0xff]
    %v1165 = vpack.c.bf16 %v1157, %v1157
    %1166 = vmatprep.subr.bf16.mxu0 %v678
    %1167 = vmatpush1.bf16.msra.mxu0 %v677
    %1168 = vmatprep.subr.bf16.mxu0 %v681
    %1169 = vmatpush1.bf16.msra.mxu0 %v680
    %1170 = vmatprep.subr.bf16.mxu0 %v684
    %1171 = vmatpush1.bf16.msra.mxu0 %v683
    %1172 = vmatprep.subr.bf16.mxu0 %v687
    %1173 = vmatpush1.bf16.msra.mxu0 %v686
    %1174 = vmatprep.subr.bf16.mxu0 %v690
    %1175 = vmatpush1.bf16.msra.mxu0 %v689
    %1176 = vmatprep.subr.bf16.mxu0 %v693
    %1177 = vmatpush1.bf16.msra.mxu0 %v692
    %1178 = vmatprep.subr.bf16.mxu0 %v696
    %1179 = vmatpush1.bf16.msra.mxu0 %v695
    %1180 = vmatprep.subr.bf16.mxu0 %v699
    %1181 = vmatpush1.bf16.msra.mxu0 %v698
    %1182 = vmatprep.subr.bf16.mxu0 0
    %1183 = vmatpush1.bf16.msra.mxu0 0
    %1184 = vmatprep.subr.bf16.mxu0 0
    %1185 = vmatpush1.bf16.msra.mxu0 0
    %1186 = vmatprep.subr.bf16.mxu0 0
    %1187 = vmatpush1.bf16.msra.mxu0 0
    %1188 = vmatprep.subr.bf16.mxu0 0
    %1189 = vmatpush1.bf16.msra.mxu0 0
    %1190 = vmatprep.subr.bf16.mxu0 0
    %1191 = vmatpush1.bf16.msra.mxu0 0
    %1192 = vmatprep.subr.bf16.mxu0 0
    %1193 = vmatpush1.bf16.msra.mxu0 0
    %1194 = vmatprep.subr.bf16.mxu0 0
    %1195 = vmatpush1.bf16.msra.mxu0 0
    %1196 = vmatprep.subr.bf16.mxu0 0
    %1197 = vmatpush1.bf16.msra.mxu0 0
    %1198 = vmatprep.mubr.bf16.mxu0 0
    %1199 = vmatmul.mubr.bf16.gmra.mrb[0].mxu0 %v1165
    %v1200 = vpop.f32.mrb[0].mxu0
    %v1201 = vadd.f32 %v585, %v1200
    %v1202 = vpop.f32.mrb[0].mxu0
    %v1203 = vadd.f32 %v589, %v1202
    %v1204 = vpop.f32.mrb[0].mxu0
    %v1205 = vpop.f32.mrb[0].mxu0
    %1206 = vdwg.mxu0
    %1207 = vmatprep.subr.bf16.mxu0 0
    %1208 = vmatpush1.bf16.msra.mxu0 %v679
    %1209 = vmatprep.subr.bf16.mxu0 0
    %1210 = vmatpush1.bf16.msra.mxu0 %v682
    %1211 = vmatprep.subr.bf16.mxu0 0
    %1212 = vmatpush1.bf16.msra.mxu0 %v685
    %1213 = vmatprep.subr.bf16.mxu0 0
    %1214 = vmatpush1.bf16.msra.mxu0 %v688
    %1215 = vmatprep.subr.bf16.mxu0 0
    %1216 = vmatpush1.bf16.msra.mxu0 %v691
    %1217 = vmatprep.subr.bf16.mxu0 0
    %1218 = vmatpush1.bf16.msra.mxu0 %v694
    %1219 = vmatprep.subr.bf16.mxu0 0
    %1220 = vmatpush1.bf16.msra.mxu0 %v697
    %1221 = vmatprep.subr.bf16.mxu0 0
    %1222 = vmatpush1.bf16.msra.mxu0 %v700
    %1223 = vmatprep.subr.bf16.mxu0 0
    %1224 = vmatpush1.bf16.msra.mxu0 0
    %1225 = vmatprep.subr.bf16.mxu0 0
    %1226 = vmatpush1.bf16.msra.mxu0 0
    %1227 = vmatprep.subr.bf16.mxu0 0
    %1228 = vmatpush1.bf16.msra.mxu0 0
    %1229 = vmatprep.subr.bf16.mxu0 0
    %1230 = vmatpush1.bf16.msra.mxu0 0
    %1231 = vmatprep.subr.bf16.mxu0 0
    %1232 = vmatpush1.bf16.msra.mxu0 0
    %1233 = vmatprep.subr.bf16.mxu0 0
    %1234 = vmatpush1.bf16.msra.mxu0 0
    %1235 = vmatprep.subr.bf16.mxu0 0
    %1236 = vmatpush1.bf16.msra.mxu0 0
    %1237 = vmatprep.subr.bf16.mxu0 0
    %1238 = vmatpush1.bf16.msra.mxu0 0
    %1239 = vmatprep.mubr.bf16.mxu0 0
    %1240 = vmatmul.mubr.bf16.gmra.mrb[0].mxu0 %v1165
    %v1241 = vpop.f32.mrb[0].mxu0
    %v1242 = vadd.f32 %v593, %v1241
    %v1243 = vpop.f32.mrb[0].mxu0
    %v1244 = vpop.f32.mrb[0].mxu0
    %v1245 = vpop.f32.mrb[0].mxu0
    %1246 = vdwg.mxu0
    %v1247 = vadd.f32 %v1162, %v1201
    %v1248 = vxor.u32 %v1247, 2147483648
    %v1249 = vmul.f32 %v1248, 1.442695
    %v1250 = vpow.pop %v1249
    %v1251 = vadd.f32 %v1250, 1.0
    %v1252 = vrcp.pop %v1251
    %v1253 = vmul.f32 1.0, %v1252
    %v1254 = vadd.f32 %v1163, %v1203
    %v1255 = vxor.u32 %v1254, 2147483648
    %v1256 = vmul.f32 %v1255, 1.442695
    %v1257 = vpow.pop %v1256
    %v1258 = vadd.f32 %v1257, 1.0
    %v1259 = vrcp.pop %v1258
    %v1260 = vmul.f32 1.0, %v1259
    %v1261 = vmul.f32 %v1253, %v1242
    %v1262 = vadd.f32 %v1164, %v1261
    %v1263 = vtanh.pop %v1262
    %v1264 = vsub.f32 1.0, %v1260
    %v1265 = vmul.f32 %v1264, %v1263
    %v1266 = vmul.f32 %v1260, %v1157
    %v1267 = vadd.f32 %v1265, %v1266
    %1268 = vst.msk [vmem:[%s1160] sm:$0xff] %vm827, %v1267
    %1269 = vst.msk [vmem:[%s1158] sm:$0xff] %vm830, %v1267
    %v1270 = vld [vmem:[%s507] sm:$0xff]
    %v1271 = vld [vmem:[%s507 + $0x8] sm:$0xff]
    %v1272 = vld [vmem:[%s507 + $0x10] sm:$0xff]
    %v1273 = vpack.c.bf16 %v1267, %v1267
    %1274 = vmatprep.subr.bf16.mxu0 %v678
    %1275 = vmatpush1.bf16.msra.mxu0 %v677
    %1276 = vmatprep.subr.bf16.mxu0 %v681
    %1277 = vmatpush1.bf16.msra.mxu0 %v680
    %1278 = vmatprep.subr.bf16.mxu0 %v684
    %1279 = vmatpush1.bf16.msra.mxu0 %v683
    %1280 = vmatprep.subr.bf16.mxu0 %v687
    %1281 = vmatpush1.bf16.msra.mxu0 %v686
    %1282 = vmatprep.subr.bf16.mxu0 %v690
    %1283 = vmatpush1.bf16.msra.mxu0 %v689
    %1284 = vmatprep.subr.bf16.mxu0 %v693
    %1285 = vmatpush1.bf16.msra.mxu0 %v692
    %1286 = vmatprep.subr.bf16.mxu0 %v696
    %1287 = vmatpush1.bf16.msra.mxu0 %v695
    %1288 = vmatprep.subr.bf16.mxu0 %v699
    %1289 = vmatpush1.bf16.msra.mxu0 %v698
    %1290 = vmatprep.subr.bf16.mxu0 0
    %1291 = vmatpush1.bf16.msra.mxu0 0
    %1292 = vmatprep.subr.bf16.mxu0 0
    %1293 = vmatpush1.bf16.msra.mxu0 0
    %1294 = vmatprep.subr.bf16.mxu0 0
    %1295 = vmatpush1.bf16.msra.mxu0 0
    %1296 = vmatprep.subr.bf16.mxu0 0
    %1297 = vmatpush1.bf16.msra.mxu0 0
    %1298 = vmatprep.subr.bf16.mxu0 0
    %1299 = vmatpush1.bf16.msra.mxu0 0
    %1300 = vmatprep.subr.bf16.mxu0 0
    %1301 = vmatpush1.bf16.msra.mxu0 0
    %1302 = vmatprep.subr.bf16.mxu0 0
    %1303 = vmatpush1.bf16.msra.mxu0 0
    %1304 = vmatprep.subr.bf16.mxu0 0
    %1305 = vmatpush1.bf16.msra.mxu0 0
    %1306 = vmatprep.mubr.bf16.mxu0 0
    %1307 = vmatmul.mubr.bf16.gmra.mrb[0].mxu0 %v1273
    %v1308 = vpop.f32.mrb[0].mxu0
    %v1309 = vadd.f32 %v585, %v1308
    %v1310 = vpop.f32.mrb[0].mxu0
    %v1311 = vadd.f32 %v589, %v1310
    %v1312 = vpop.f32.mrb[0].mxu0
    %v1313 = vpop.f32.mrb[0].mxu0
    %1314 = vdwg.mxu0
    %1315 = vmatprep.subr.bf16.mxu0 0
    %1316 = vmatpush1.bf16.msra.mxu0 %v679
    %1317 = vmatprep.subr.bf16.mxu0 0
    %1318 = vmatpush1.bf16.msra.mxu0 %v682
    %1319 = vmatprep.subr.bf16.mxu0 0
    %1320 = vmatpush1.bf16.msra.mxu0 %v685
    %1321 = vmatprep.subr.bf16.mxu0 0
    %1322 = vmatpush1.bf16.msra.mxu0 %v688
    %1323 = vmatprep.subr.bf16.mxu0 0
    %1324 = vmatpush1.bf16.msra.mxu0 %v691
    %1325 = vmatprep.subr.bf16.mxu0 0
    %1326 = vmatpush1.bf16.msra.mxu0 %v694
    %1327 = vmatprep.subr.bf16.mxu0 0
    %1328 = vmatpush1.bf16.msra.mxu0 %v697
    %1329 = vmatprep.subr.bf16.mxu0 0
    %1330 = vmatpush1.bf16.msra.mxu0 %v700
    %1331 = vmatprep.subr.bf16.mxu0 0
    %1332 = vmatpush1.bf16.msra.mxu0 0
    %1333 = vmatprep.subr.bf16.mxu0 0
    %1334 = vmatpush1.bf16.msra.mxu0 0
    %1335 = vmatprep.subr.bf16.mxu0 0
    %1336 = vmatpush1.bf16.msra.mxu0 0
    %1337 = vmatprep.subr.bf16.mxu0 0
    %1338 = vmatpush1.bf16.msra.mxu0 0
    %1339 = vmatprep.subr.bf16.mxu0 0
    %1340 = vmatpush1.bf16.msra.mxu0 0
    %1341 = vmatprep.subr.bf16.mxu0 0
    %1342 = vmatpush1.bf16.msra.mxu0 0
    %1343 = vmatprep.subr.bf16.mxu0 0
    %1344 = vmatpush1.bf16.msra.mxu0 0
    %1345 = vmatprep.subr.bf16.mxu0 0
    %1346 = vmatpush1.bf16.msra.mxu0 0
    %1347 = vmatprep.mubr.bf16.mxu0 0
    %1348 = vmatmul.mubr.bf16.gmra.mrb[0].mxu0 %v1273
    %v1349 = vpop.f32.mrb[0].mxu0
    %v1350 = vadd.f32 %v593, %v1349
    %v1351 = vpop.f32.mrb[0].mxu0
    %v1352 = vpop.f32.mrb[0].mxu0
    %v1353 = vpop.f32.mrb[0].mxu0
    %1354 = vdwg.mxu0
    %v1355 = vadd.f32 %v1270, %v1309
    %v1356 = vxor.u32 %v1355, 2147483648
    %v1357 = vmul.f32 %v1356, 1.442695
    %v1358 = vpow.pop %v1357
    %v1359 = vadd.f32 %v1358, 1.0
    %v1360 = vrcp.pop %v1359
    %v1361 = vmul.f32 1.0, %v1360
    %v1362 = vadd.f32 %v1271, %v1311
    %v1363 = vxor.u32 %v1362, 2147483648
    %v1364 = vmul.f32 %v1363, 1.442695
    %v1365 = vpow.pop %v1364
    %v1366 = vadd.f32 %v1365, 1.0
    %v1367 = vrcp.pop %v1366
    %v1368 = vmul.f32 1.0, %v1367
    %v1369 = vmul.f32 %v1361, %v1350
    %v1370 = vadd.f32 %v1272, %v1369
    %v1371 = vtanh.pop %v1370
    %v1372 = vsub.f32 1.0, %v1368
    %v1373 = vmul.f32 %v1372, %v1371
    %v1374 = vmul.f32 %v1368, %v1267
    %v1375 = vadd.f32 %v1373, %v1374
    %1376 = vst.msk [vmem:[%s1050] sm:$0xff] %vm827, %v1375
    %1377 = vst.msk [vmem:[%s1048] sm:$0xff] %vm830, %v1375
    %v1378 = vld [vmem:[%s487] sm:$0xff]
    %v1379 = vld [vmem:[%s487 + $0x8] sm:$0xff]
    %v1380 = vld [vmem:[%s487 + $0x10] sm:$0xff]
    %v1381 = vpack.c.bf16 %v1375, %v1375
    %1382 = vmatprep.subr.bf16.mxu0 %v678
    %1383 = vmatpush1.bf16.msra.mxu0 %v677
    %1384 = vmatprep.subr.bf16.mxu0 %v681
    %1385 = vmatpush1.bf16.msra.mxu0 %v680
    %1386 = vmatprep.subr.bf16.mxu0 %v684
    %1387 = vmatpush1.bf16.msra.mxu0 %v683
    %1388 = vmatprep.subr.bf16.mxu0 %v687
    %1389 = vmatpush1.bf16.msra.mxu0 %v686
    %1390 = vmatprep.subr.bf16.mxu0 %v690
    %1391 = vmatpush1.bf16.msra.mxu0 %v689
    %1392 = vmatprep.subr.bf16.mxu0 %v693
    %1393 = vmatpush1.bf16.msra.mxu0 %v692
    %1394 = vmatprep.subr.bf16.mxu0 %v696
    %1395 = vmatpush1.bf16.msra.mxu0 %v695
    %1396 = vmatprep.subr.bf16.mxu0 %v699
    %1397 = vmatpush1.bf16.msra.mxu0 %v698
    %1398 = vmatprep.subr.bf16.mxu0 0
    %1399 = vmatpush1.bf16.msra.mxu0 0
    %1400 = vmatprep.subr.bf16.mxu0 0
    %1401 = vmatpush1.bf16.msra.mxu0 0
    %1402 = vmatprep.subr.bf16.mxu0 0
    %1403 = vmatpush1.bf16.msra.mxu0 0
    %1404 = vmatprep.subr.bf16.mxu0 0
    %1405 = vmatpush1.bf16.msra.mxu0 0
    %1406 = vmatprep.subr.bf16.mxu0 0
    %1407 = vmatpush1.bf16.msra.mxu0 0
    %1408 = vmatprep.subr.bf16.mxu0 0
    %1409 = vmatpush1.bf16.msra.mxu0 0
    %1410 = vmatprep.subr.bf16.mxu0 0
    %1411 = vmatpush1.bf16.msra.mxu0 0
    %1412 = vmatprep.subr.bf16.mxu0 0
    %1413 = vmatpush1.bf16.msra.mxu0 0
    %1414 = vmatprep.mubr.bf16.mxu0 0
    %1415 = vmatmul.mubr.bf16.gmra.mrb[0].mxu0 %v1381
    %v1416 = vpop.f32.mrb[0].mxu0
    %v1417 = vadd.f32 %v585, %v1416
    %v1418 = vpop.f32.mrb[0].mxu0
    %v1419 = vadd.f32 %v589, %v1418
    %v1420 = vpop.f32.mrb[0].mxu0
    %v1421 = vpop.f32.mrb[0].mxu0
    %1422 = vdwg.mxu0
    %1423 = vmatprep.subr.bf16.mxu0 0
    %1424 = vmatpush1.bf16.msra.mxu0 %v679
    %1425 = vmatprep.subr.bf16.mxu0 0
    %1426 = vmatpush1.bf16.msra.mxu0 %v682
    %1427 = vmatprep.subr.bf16.mxu0 0
    %1428 = vmatpush1.bf16.msra.mxu0 %v685
    %1429 = vmatprep.subr.bf16.mxu0 0
    %1430 = vmatpush1.bf16.msra.mxu0 %v688
    %1431 = vmatprep.subr.bf16.mxu0 0
    %1432 = vmatpush1.bf16.msra.mxu0 %v691
    %1433 = vmatprep.subr.bf16.mxu0 0
    %1434 = vmatpush1.bf16.msra.mxu0 %v694
    %1435 = vmatprep.subr.bf16.mxu0 0
    %1436 = vmatpush1.bf16.msra.mxu0 %v697
    %1437 = vmatprep.subr.bf16.mxu0 0
    %1438 = vmatpush1.bf16.msra.mxu0 %v700
    %1439 = vmatprep.subr.bf16.mxu0 0
    %1440 = vmatpush1.bf16.msra.mxu0 0
    %1441 = vmatprep.subr.bf16.mxu0 0
    %1442 = vmatpush1.bf16.msra.mxu0 0
    %1443 = vmatprep.subr.bf16.mxu0 0
    %1444 = vmatpush1.bf16.msra.mxu0 0
    %1445 = vmatprep.subr.bf16.mxu0 0
    %1446 = vmatpush1.bf16.msra.mxu0 0
    %1447 = vmatprep.subr.bf16.mxu0 0
    %1448 = vmatpush1.bf16.msra.mxu0 0
    %1449 = vmatprep.subr.bf16.mxu0 0
    %1450 = vmatpush1.bf16.msra.mxu0 0
    %1451 = vmatprep.subr.bf16.mxu0 0
    %1452 = vmatpush1.bf16.msra.mxu0 0
    %1453 = vmatprep.subr.bf16.mxu0 0
    %1454 = vmatpush1.bf16.msra.mxu0 0
    %1455 = vmatprep.mubr.bf16.mxu0 0
    %1456 = vmatmul.mubr.bf16.gmra.mrb[0].mxu0 %v1381
    %v1457 = vpop.f32.mrb[0].mxu0
    %v1458 = vadd.f32 %v593, %v1457
    %v1459 = vpop.f32.mrb[0].mxu0
    %v1460 = vpop.f32.mrb[0].mxu0
    %v1461 = vpop.f32.mrb[0].mxu0
    %1462 = vdwg.mxu0
    %v1463 = vadd.f32 %v1378, %v1417
    %v1464 = vxor.u32 %v1463, 2147483648
    %v1465 = vmul.f32 %v1464, 1.442695
    %v1466 = vpow.pop %v1465
    %v1467 = vadd.f32 %v1466, 1.0
    %v1468 = vrcp.pop %v1467
    %v1469 = vmul.f32 1.0, %v1468
    %v1470 = vadd.f32 %v1379, %v1419
    %v1471 = vxor.u32 %v1470, 2147483648
    %v1472 = vmul.f32 %v1471, 1.442695
    %v1473 = vpow.pop %v1472
    %v1474 = vadd.f32 %v1473, 1.0
    %v1475 = vrcp.pop %v1474
    %v1476 = vmul.f32 1.0, %v1475
    %v1477 = vmul.f32 %v1469, %v1458
    %v1478 = vadd.f32 %v1380, %v1477
    %v1479 = vtanh.pop %v1478
    %v1480 = vsub.f32 1.0, %v1476
    %v1481 = vmul.f32 %v1480, %v1479
    %v1482 = vmul.f32 %v1476, %v1375
    %v1483 = vadd.f32 %v1481, %v1482
    %1484 = vst.msk [vmem:[%s940] sm:$0xff] %vm827, %v1483
    %1485 = vst.msk [vmem:[%s938] sm:$0xff] %vm830, %v1483
    %v1486 = vld [vmem:[%s467] sm:$0xff]
    %v1487 = vld [vmem:[%s467 + $0x8] sm:$0xff]
    %v1488 = vld [vmem:[%s467 + $0x10] sm:$0xff]
    %v1489 = vpack.c.bf16 %v1483, %v1483
    %1490 = vmatprep.subr.bf16.mxu0 %v678
    %1491 = vmatpush1.bf16.msra.mxu0 %v677
    %1492 = vmatprep.subr.bf16.mxu0 %v681
    %1493 = vmatpush1.bf16.msra.mxu0 %v680
    %1494 = vmatprep.subr.bf16.mxu0 %v684
    %1495 = vmatpush1.bf16.msra.mxu0 %v683
    %1496 = vmatprep.subr.bf16.mxu0 %v687
    %1497 = vmatpush1.bf16.msra.mxu0 %v686
    %1498 = vmatprep.subr.bf16.mxu0 %v690
    %1499 = vmatpush1.bf16.msra.mxu0 %v689
    %1500 = vmatprep.subr.bf16.mxu0 %v693
    %1501 = vmatpush1.bf16.msra.mxu0 %v692
    %1502 = vmatprep.subr.bf16.mxu0 %v696
    %1503 = vmatpush1.bf16.msra.mxu0 %v695
    %1504 = vmatprep.subr.bf16.mxu0 %v699
    %1505 = vmatpush1.bf16.msra.mxu0 %v698
    %1506 = vmatprep.subr.bf16.mxu0 0
    %1507 = vmatpush1.bf16.msra.mxu0 0
    %1508 = vmatprep.subr.bf16.mxu0 0
    %1509 = vmatpush1.bf16.msra.mxu0 0
    %1510 = vmatprep.subr.bf16.mxu0 0
    %1511 = vmatpush1.bf16.msra.mxu0 0
    %1512 = vmatprep.subr.bf16.mxu0 0
    %1513 = vmatpush1.bf16.msra.mxu0 0
    %1514 = vmatprep.subr.bf16.mxu0 0
    %1515 = vmatpush1.bf16.msra.mxu0 0
    %1516 = vmatprep.subr.bf16.mxu0 0
    %1517 = vmatpush1.bf16.msra.mxu0 0
    %1518 = vmatprep.subr.bf16.mxu0 0
    %1519 = vmatpush1.bf16.msra.mxu0 0
    %1520 = vmatprep.subr.bf16.mxu0 0
    %1521 = vmatpush1.bf16.msra.mxu0 0
    %1522 = vmatprep.mubr.bf16.mxu0 0
    %1523 = vmatmul.mubr.bf16.gmra.mrb[0].mxu0 %v1489
    %v1524 = vpop.f32.mrb[0].mxu0
    %v1525 = vadd.f32 %v585, %v1524
    %v1526 = vpop.f32.mrb[0].mxu0
    %v1527 = vadd.f32 %v589, %v1526
    %v1528 = vpop.f32.mrb[0].mxu0
    %v1529 = vpop.f32.mrb[0].mxu0
    %1530 = vdwg.mxu0
    %1531 = vmatprep.subr.bf16.mxu0 0
    %1532 = vmatpush1.bf16.msra.mxu0 %v679
    %1533 = vmatprep.subr.bf16.mxu0 0
    %1534 = vmatpush1.bf16.msra.mxu0 %v682
    %1535 = vmatprep.subr.bf16.mxu0 0
    %1536 = vmatpush1.bf16.msra.mxu0 %v685
    %1537 = vmatprep.subr.bf16.mxu0 0
    %1538 = vmatpush1.bf16.msra.mxu0 %v688
    %1539 = vmatprep.subr.bf16.mxu0 0
    %1540 = vmatpush1.bf16.msra.mxu0 %v691
    %1541 = vmatprep.subr.bf16.mxu0 0
    %1542 = vmatpush1.bf16.msra.mxu0 %v694
    %1543 = vmatprep.subr.bf16.mxu0 0
    %1544 = vmatpush1.bf16.msra.mxu0 %v697
    %1545 = vmatprep.subr.bf16.mxu0 0
    %1546 = vmatpush1.bf16.msra.mxu0 %v700
    %1547 = vmatprep.subr.bf16.mxu0 0
    %1548 = vmatpush1.bf16.msra.mxu0 0
    %1549 = vmatprep.subr.bf16.mxu0 0
    %1550 = vmatpush1.bf16.msra.mxu0 0
    %1551 = vmatprep.subr.bf16.mxu0 0
    %1552 = vmatpush1.bf16.msra.mxu0 0
    %1553 = vmatprep.subr.bf16.mxu0 0
    %1554 = vmatpush1.bf16.msra.mxu0 0
    %1555 = vmatprep.subr.bf16.mxu0 0
    %1556 = vmatpush1.bf16.msra.mxu0 0
    %1557 = vmatprep.subr.bf16.mxu0 0
    %1558 = vmatpush1.bf16.msra.mxu0 0
    %1559 = vmatprep.subr.bf16.mxu0 0
    %1560 = vmatpush1.bf16.msra.mxu0 0
    %1561 = vmatprep.subr.bf16.mxu0 0
    %1562 = vmatpush1.bf16.msra.mxu0 0
    %1563 = vmatprep.mubr.bf16.mxu0 0
    %1564 = vmatmul.mubr.bf16.gmra.mrb[0].mxu0 %v1489
    %v1565 = vpop.f32.mrb[0].mxu0
    %v1566 = vadd.f32 %v593, %v1565
    %v1567 = vpop.f32.mrb[0].mxu0
    %v1568 = vpop.f32.mrb[0].mxu0
    %v1569 = vpop.f32.mrb[0].mxu0
    %1570 = vdwg.mxu0
    %v1571 = vadd.f32 %v1486, %v1525
    %v1572 = vxor.u32 %v1571, 2147483648
    %v1573 = vmul.f32 %v1572, 1.442695
    %v1574 = vpow.pop %v1573
    %v1575 = vadd.f32 %v1574, 1.0
    %v1576 = vrcp.pop %v1575
    %v1577 = vmul.f32 1.0, %v1576
    %v1578 = vadd.f32 %v1487, %v1527
    %v1579 = vxor.u32 %v1578, 2147483648
    %v1580 = vmul.f32 %v1579, 1.442695
    %v1581 = vpow.pop %v1580
    %v1582 = vadd.f32 %v1581, 1.0
    %v1583 = vrcp.pop %v1582
    %v1584 = vmul.f32 1.0, %v1583
    %v1585 = vmul.f32 %v1577, %v1566
    %v1586 = vadd.f32 %v1488, %v1585
    %v1587 = vtanh.pop %v1586
    %v1588 = vsub.f32 1.0, %v1584
    %v1589 = vmul.f32 %v1588, %v1587
    %v1590 = vmul.f32 %v1584, %v1483
    %v1591 = vadd.f32 %v1589, %v1590
    %1592 = vst.msk [vmem:[%s829] sm:$0xff] %vm827, %v1591
    %1593 = vst.msk [vmem:[#allocation3] sm:$0xff] %vm830, %v1591
    %v1594 = vld [vmem:[#allocation3] sm:$0xff]
    %v1595 = vld [vmem:[#allocation3 + $0x8] sm:$0xff]
    %v1596 = vld [vmem:[#allocation3 + $0x10] sm:$0xff]
    %v1597 = vld [vmem:[#allocation3 + $0x18] sm:$0xff]
    %v1598 = vld [vmem:[#allocation3 + $0x20] sm:$0xff]
    %v1599 = vld [vmem:[#allocation3 + $0x28] sm:$0xff]
    %v1600 = vld [vmem:[#allocation3 + $0x30] sm:$0xff]
    %v1601 = vld [vmem:[#allocation3 + $0x38] sm:$0xff]
    %v1602 = vpack.c.bf16 %v1595, %v1594
    %v1603 = vpack.c.bf16 %v1597, %v1596
    %v1604 = vpack.c.bf16 %v1599, %v1598
    %v1605 = vpack.c.bf16 %v1601, %v1600
    %v1606 = vld [vmem:[#allocation11] sm:$0xf]
    %v1607 = vld [vmem:[#allocation11 + $0x4] sm:$0xf]
    %v1608 = vld [vmem:[#allocation11 + $0x8] sm:$0xf]
    %v1609 = vld [vmem:[#allocation11 + $0xc] sm:$0xf]
    %v1610 = vld [vmem:[#allocation11 + $0x10] sm:$0xf]
    %v1611 = vld [vmem:[#allocation11 + $0x14] sm:$0xf]
    %v1612 = vld [vmem:[#allocation11 + $0x18] sm:$0xf]
    %v1613 = vld [vmem:[#allocation11 + $0x1c] sm:$0xf]
    %v1614 = vld [vmem:[#allocation11 + $0x20] sm:$0xf]
    %v1615 = vld [vmem:[#allocation11 + $0x24] sm:$0xf]
    %v1616 = vld [vmem:[#allocation11 + $0x28] sm:$0xf]
    %v1617 = vld [vmem:[#allocation11 + $0x2c] sm:$0xf]
    %v1618 = vld [vmem:[#allocation11 + $0x30] sm:$0xf]
    %v1619 = vld [vmem:[#allocation11 + $0x34] sm:$0xf]
    %v1620 = vld [vmem:[#allocation11 + $0x38] sm:$0xf]
    %v1621 = vld [vmem:[#allocation11 + $0x3c] sm:$0xf]
    %v1622 = vld [vmem:[%s7] sm:$0x1]
    %v1624 = vlaneseq
    %v1625 = vshrl.u32 %v1624, 7
    %v1626 = vsub.s32 0, %v1625
    %v1627 = vrot.slane %v1622, %v1626
    %v1645 = vunpack.c.l.b16 %v1606
    %v1646 = vunpack.c.l.b16 %v1607
    %v1647 = vunpack.c.l.b16 %v1608
    %v1648 = vunpack.c.l.b16 %v1609
    %v1649 = vunpack.c.l.b16 %v1610
    %v1650 = vunpack.c.l.b16 %v1611
    %v1651 = vunpack.c.l.b16 %v1612
    %v1652 = vunpack.c.l.b16 %v1613
    %v1653 = vunpack.c.l.b16 %v1614
    %v1654 = vunpack.c.l.b16 %v1615
    %v1655 = vunpack.c.l.b16 %v1616
    %v1656 = vunpack.c.l.b16 %v1617
    %v1657 = vunpack.c.l.b16 %v1618
    %v1658 = vunpack.c.l.b16 %v1619
    %v1659 = vunpack.c.l.b16 %v1620
    %v1660 = vunpack.c.l.b16 %v1621
    %v1661 = vpack.c.b16 %v1646, %v1645
    %v1662 = vpack.c.b16 %v1648, %v1647
    %v1663 = vpack.c.b16 %v1650, %v1649
    %v1664 = vpack.c.b16 %v1652, %v1651
    %v1665 = vpack.c.b16 %v1654, %v1653
    %v1666 = vpack.c.b16 %v1656, %v1655
    %v1667 = vpack.c.b16 %v1658, %v1657
    %v1668 = vpack.c.b16 %v1660, %v1659
    %1677 = vmatprep.subr.bf16.mxu0 0
    %1678 = vmatpush1.bf16.msra.mxu0 %v1661
    %1679 = vmatprep.subr.bf16.mxu0 0
    %1680 = vmatpush1.bf16.msra.mxu0 %v1662
    %1681 = vmatprep.subr.bf16.mxu0 0
    %1682 = vmatpush1.bf16.msra.mxu0 %v1663
    %1683 = vmatprep.subr.bf16.mxu0 0
    %1684 = vmatpush1.bf16.msra.mxu0 %v1664
    %1685 = vmatprep.subr.bf16.mxu0 0
    %1686 = vmatpush1.bf16.msra.mxu0 %v1665
    %1687 = vmatprep.subr.bf16.mxu0 0
    %1688 = vmatpush1.bf16.msra.mxu0 %v1666
    %1689 = vmatprep.subr.bf16.mxu0 0
    %1690 = vmatpush1.bf16.msra.mxu0 %v1667
    %1691 = vmatprep.subr.bf16.mxu0 0
    %1692 = vmatpush1.bf16.msra.mxu0 %v1668
    %1693 = vmatprep.subr.bf16.mxu0 0
    %1694 = vmatpush1.bf16.msra.mxu0 0
    %1695 = vmatprep.subr.bf16.mxu0 0
    %1696 = vmatpush1.bf16.msra.mxu0 0
    %1697 = vmatprep.subr.bf16.mxu0 0
    %1698 = vmatpush1.bf16.msra.mxu0 0
    %1699 = vmatprep.subr.bf16.mxu0 0
    %1700 = vmatpush1.bf16.msra.mxu0 0
    %1701 = vmatprep.subr.bf16.mxu0 0
    %1702 = vmatpush1.bf16.msra.mxu0 0
    %1703 = vmatprep.subr.bf16.mxu0 0
    %1704 = vmatpush1.bf16.msra.mxu0 0
    %1705 = vmatprep.subr.bf16.mxu0 0
    %1706 = vmatpush1.bf16.msra.mxu0 0
    %1707 = vmatprep.subr.bf16.mxu0 0
    %1708 = vmatpush1.bf16.msra.mxu0 0
    %1709 = vmatprep.mubr.bf16.mxu0 0
    %1710 = vmatmul.mubr.bf16.gmra.mrb[0].mxu0 %v1602
    %v1711 = vpop.f32.mrb[0].mxu0
    %v1712 = vadd.f32 %v1627, %v1711
    %v1713 = vpop.f32.mrb[0].mxu0
    %v1714 = vpop.f32.mrb[0].mxu0
    %v1715 = vadd.f32 %v1627, %v1714
    %v1716 = vpop.f32.mrb[0].mxu0
    %1717 = vmatprep.mubr.bf16.mxu0 0
    %1718 = vmatmul.mubr.bf16.gmra.mrb[0].mxu0 %v1603
    %v1719 = vpop.f32.mrb[0].mxu0
    %v1720 = vadd.f32 %v1627, %v1719
    %v1721 = vpop.f32.mrb[0].mxu0
    %v1722 = vpop.f32.mrb[0].mxu0
    %v1723 = vadd.f32 %v1627, %v1722
    %v1724 = vpop.f32.mrb[0].mxu0
    %1725 = vmatprep.mubr.bf16.mxu0 0
    %1726 = vmatmul.mubr.bf16.gmra.mrb[0].mxu0 %v1604
    %v1727 = vpop.f32.mrb[0].mxu0
    %v1728 = vadd.f32 %v1627, %v1727
    %v1729 = vpop.f32.mrb[0].mxu0
    %v1730 = vpop.f32.mrb[0].mxu0
    %v1731 = vadd.f32 %v1627, %v1730
    %v1732 = vpop.f32.mrb[0].mxu0
    %1733 = vmatprep.mubr.bf16.mxu0 0
    %1734 = vmatmul.mubr.bf16.gmra.mrb[0].mxu0 %v1605
    %v1735 = vpop.f32.mrb[0].mxu0
    %v1736 = vadd.f32 %v1627, %v1735
    %v1737 = vpop.f32.mrb[0].mxu0
    %v1738 = vpop.f32.mrb[0].mxu0
    %v1739 = vadd.f32 %v1627, %v1738
    %v1740 = vpop.f32.mrb[0].mxu0
    %1741 = vdwg.mxu0
    %v1742 = vtanh.pop %v1712
    %v1743 = vtanh.pop %v1715
    %v1744 = vtanh.pop %v1720
    %v1745 = vtanh.pop %v1723
    %v1746 = vtanh.pop %v1728
    %v1747 = vtanh.pop %v1731
    %v1748 = vtanh.pop %v1736
    %v1749 = vtanh.pop %v1739
    %v1750 = vld [vmem:[#allocation12] sm:$0x1]
    %v1752 = vlaneseq
    %v1753 = vshrl.u32 %v1752, 7
    %v1754 = vsub.s32 0, %v1753
    %v1755 = vrot.slane %v1750, %v1754
    %v1757 = vmul.f32 %v1742, %v1755
    %v1758 = vmul.f32 %v1743, %v1755
    %v1759 = vmul.f32 %v1744, %v1755
    %v1760 = vmul.f32 %v1745, %v1755
    %v1761 = vmul.f32 %v1746, %v1755
    %v1762 = vmul.f32 %v1747, %v1755
    %v1763 = vmul.f32 %v1748, %v1755
    %v1764 = vmul.f32 %v1749, %v1755
    %1765 = vadd.xlane.f32.xlu0 %v1757
    %v1766 = vpop.xlane.xlu0 %1765
    %1767 = vadd.xlane.f32.xlu0 %v1758
    %v1768 = vpop.xlane.xlu0 %1767
    %1769 = vadd.xlane.f32.xlu0 %v1759
    %v1770 = vpop.xlane.xlu0 %1769
    %1771 = vadd.xlane.f32.xlu0 %v1760
    %v1772 = vpop.xlane.xlu0 %1771
    %1773 = vadd.xlane.f32.xlu0 %v1761
    %v1774 = vpop.xlane.xlu0 %1773
    %1775 = vadd.xlane.f32.xlu0 %v1762
    %v1776 = vpop.xlane.xlu0 %1775
    %1777 = vadd.xlane.f32.xlu0 %v1763
    %v1778 = vpop.xlane.xlu0 %1777
    %1779 = vadd.xlane.f32.xlu0 %v1764
    %v1780 = vpop.xlane.xlu0 %1779
    %v1781 = vmax.f32 %v1766, %v1774
    %v1782 = vmax.f32 %v1768, %v1776
    %v1783 = vmax.f32 %v1770, %v1778
    %v1784 = vmax.f32 %v1772, %v1780
    %v1785 = vmax.f32 %v1781, %v1782
    %v1786 = vmax.f32 %v1783, %v1784
    %v1787 = vmax.f32 %v1785, %v1786
    %v1788 = vsub.f32 %v1766, %v1787
    %v1789 = vsub.f32 %v1768, %v1787
    %v1790 = vsub.f32 %v1770, %v1787
    %v1791 = vsub.f32 %v1772, %v1787
    %v1792 = vsub.f32 %v1774, %v1787
    %v1793 = vsub.f32 %v1776, %v1787
    %v1794 = vsub.f32 %v1778, %v1787
    %v1795 = vsub.f32 %v1780, %v1787
    %v1796 = vmul.f32 %v1788, 1.442695
    %v1797 = vpow.pop %v1796
    %v1798 = vmul.f32 %v1789, 1.442695
    %v1799 = vpow.pop %v1798
    %v1800 = vmul.f32 %v1790, 1.442695
    %v1801 = vpow.pop %v1800
    %v1802 = vmul.f32 %v1791, 1.442695
    %v1803 = vpow.pop %v1802
    %v1804 = vmul.f32 %v1792, 1.442695
    %v1805 = vpow.pop %v1804
    %v1806 = vmul.f32 %v1793, 1.442695
    %v1807 = vpow.pop %v1806
    %v1808 = vmul.f32 %v1794, 1.442695
    %v1809 = vpow.pop %v1808
    %v1810 = vmul.f32 %v1795, 1.442695
    %v1811 = vpow.pop %v1810
    %v1812 = vadd.f32 %v1797, %v1799
    %v1813 = vadd.f32 %v1812, %v1801
    %v1814 = vadd.f32 %v1813, %v1803
    %v1815 = vadd.f32 %v1814, %v1805
    %v1816 = vadd.f32 %v1815, %v1807
    %v1817 = vadd.f32 %v1816, %v1809
    %v1818 = vadd.f32 %v1817, %v1811
    %v1819 = vrcp.pop %v1818
    %v1820 = vmul.f32 %v1797, %v1819
    %v1821 = vmul.f32 %v1799, %v1819
    %v1822 = vmul.f32 %v1801, %v1819
    %v1823 = vmul.f32 %v1803, %v1819
    %v1824 = vmul.f32 %v1805, %v1819
    %v1825 = vmul.f32 %v1807, %v1819
    %v1826 = vmul.f32 %v1809, %v1819
    %v1827 = vmul.f32 %v1811, %v1819
    %vm1828 = vcmp.eq.s32.totalorder %v422, 0
    %vm1829 = vcmp.eq.s32.totalorder %v422, 1
    %vm1830 = vcmp.eq.s32.totalorder %v422, 2
    %vm1831 = vcmp.eq.s32.totalorder %v422, 3
    %vm1832 = vcmp.eq.s32.totalorder %v422, 4
    %vm1833 = vcmp.eq.s32.totalorder %v422, 5
    %vm1834 = vcmp.eq.s32.totalorder %v422, 6
    %vm1835 = vcmp.eq.s32.totalorder %v422, 7
    %v1836 = vsel %vm1828, 1, 0
    %v1837 = vsel %vm1829, 1, 0
    %v1838 = vsel %vm1830, 1, 0
    %v1839 = vsel %vm1831, 1, 0
    %v1840 = vsel %vm1832, 1, 0
    %v1841 = vsel %vm1833, 1, 0
    %v1842 = vsel %vm1834, 1, 0
    %v1843 = vsel %vm1835, 1, 0
    %v1844 = vcvt.s32.f32 %v1836
    %v1845 = vcvt.s32.f32 %v1837
    %v1846 = vcvt.s32.f32 %v1838
    %v1847 = vcvt.s32.f32 %v1839
    %v1848 = vcvt.s32.f32 %v1840
    %v1849 = vcvt.s32.f32 %v1841
    %v1850 = vcvt.s32.f32 %v1842
    %v1851 = vcvt.s32.f32 %v1843
    %v1852 = vmul.f32 %v1820, %v1844
    %v1853 = vmul.f32 %v1821, %v1845
    %v1854 = vmul.f32 %v1822, %v1846
    %v1855 = vmul.f32 %v1823, %v1847
    %v1856 = vmul.f32 %v1824, %v1848
    %v1857 = vmul.f32 %v1825, %v1849
    %v1858 = vmul.f32 %v1826, %v1850
    %v1859 = vmul.f32 %v1827, %v1851
    %v1860 = vadd.f32 %v1852, %v1853
    %v1861 = vadd.f32 %v1860, %v1854
    %v1862 = vadd.f32 %v1861, %v1855
    %v1863 = vadd.f32 %v1862, %v1856
    %v1864 = vadd.f32 %v1863, %v1857
    %v1865 = vadd.f32 %v1864, %v1858
    %v1866 = vadd.f32 %v1865, %v1859
    %1867 = vst [vmem:[%s17] sm:$0xff] %v1866
    %v1868 = vmul.f32 %v1820, %v1594
    %v1869 = vmul.f32 %v1821, %v1595
    %v1870 = vmul.f32 %v1822, %v1596
    %v1871 = vmul.f32 %v1823, %v1597
    %v1872 = vmul.f32 %v1824, %v1598
    %v1873 = vmul.f32 %v1825, %v1599
    %v1874 = vmul.f32 %v1826, %v1600
    %v1875 = vmul.f32 %v1827, %v1601
    %v1876 = vadd.f32 %v1868, %v1869
    %v1877 = vadd.f32 %v1876, %v1870
    %v1878 = vadd.f32 %v1877, %v1871
    %v1879 = vadd.f32 %v1878, %v1872
    %v1880 = vadd.f32 %v1879, %v1873
    %v1881 = vadd.f32 %v1880, %v1874
    %v1882 = vadd.f32 %v1881, %v1875
    %1883 = vst [vmem:[%s18] sm:$0xff] %v1882
    %v1884 = vpack.c.bf16 %v1882, %v1882
    %v1885 = vld [vmem:[%s9] sm:$0xff]
    %v1886 = vld [vmem:[%s9 + $0x8] sm:$0xff]
    %v1887 = vld [vmem:[%s9 + $0x10] sm:$0xff]
    %v1888 = vld [vmem:[%s9 + $0x18] sm:$0xff]
    %v1889 = vld [vmem:[%s9 + $0x20] sm:$0xff]
    %v1890 = vld [vmem:[%s9 + $0x28] sm:$0xff]
    %v1891 = vld [vmem:[%s9 + $0x30] sm:$0xff]
    %v1892 = vld [vmem:[%s9 + $0x38] sm:$0xff]
    %v1893 = vld [vmem:[%s9 + $0x40] sm:$0xff]
    %v1894 = vld [vmem:[%s9 + $0x48] sm:$0xff]
    %v1895 = vld [vmem:[%s9 + $0x50] sm:$0xff]
    %v1896 = vld [vmem:[%s9 + $0x58] sm:$0xff]
    %v1897 = vld [vmem:[%s9 + $0x60] sm:$0xff]
    %v1898 = vld [vmem:[%s9 + $0x68] sm:$0xff]
    %v1899 = vld [vmem:[%s9 + $0x70] sm:$0xff]
    %v1900 = vld [vmem:[%s9 + $0x78] sm:$0xff]
    %v1901 = vld [vmem:[%s9 + $0x80] sm:$0xff]
    %v1902 = vld [vmem:[%s9 + $0x88] sm:$0xff]
    %v1903 = vld [vmem:[%s9 + $0x90] sm:$0xff]
    %v1904 = vld [vmem:[%s9 + $0x98] sm:$0xff]
    %v1905 = vld [vmem:[%s9 + $0xa0] sm:$0xff]
    %v1906 = vld [vmem:[%s9 + $0xa8] sm:$0xff]
    %v1907 = vld [vmem:[%s9 + $0xb0] sm:$0xff]
    %v1908 = vld [vmem:[%s9 + $0xb8] sm:$0xff]
    %v1909 = vld [vmem:[%s9 + $0xc0] sm:$0xff]
    %v1910 = vld [vmem:[%s9 + $0xc8] sm:$0xff]
    %v1911 = vld [vmem:[%s9 + $0xd0] sm:$0xff]
    %v1912 = vld [vmem:[%s9 + $0xd8] sm:$0xff]
    %v1913 = vld [vmem:[%s9 + $0xe0] sm:$0xff]
    %v1914 = vld [vmem:[%s9 + $0xe8] sm:$0xff]
    %v1915 = vld [vmem:[%s9 + $0xf0] sm:$0xff]
    %v1916 = vld [vmem:[%s9 + $0xf8] sm:$0xff]
    %v1917 = vld [vmem:[%s10] sm:$0xf]
    %v1919 = vlaneseq
    %v1920 = vshrl.u32 %v1919, 7
    %v1921 = vsub.s32 0, %v1920
    %v1922 = vrot.slane %v1917, %v1921
    %v1923 = vlaneseq
    %v1924 = vshrl.u32 %v1923, 7
    %v1925 = vsub.s32 1, %v1924
    %v1926 = vrot.slane %v1917, %v1925
    %v1927 = vlaneseq
    %v1928 = vshrl.u32 %v1927, 7
    %v1929 = vsub.s32 2, %v1928
    %v1930 = vrot.slane %v1917, %v1929
    %v1931 = vlaneseq
    %v1932 = vshrl.u32 %v1931, 7
    %v1933 = vsub.s32 3, %v1932
    %v1934 = vrot.slane %v1917, %v1933
    %v1971 = vunpack.c.l.b16 %v1885
    %v1972 = vunpack.c.h.b16 %v1885
    %v1973 = vunpack.c.l.b16 %v1886
    %v1974 = vunpack.c.h.b16 %v1886
    %v1975 = vunpack.c.l.b16 %v1887
    %v1976 = vunpack.c.h.b16 %v1887
    %v1977 = vunpack.c.l.b16 %v1888
    %v1978 = vunpack.c.h.b16 %v1888
    %v1979 = vunpack.c.l.b16 %v1889
    %v1980 = vunpack.c.h.b16 %v1889
    %v1981 = vunpack.c.l.b16 %v1890
    %v1982 = vunpack.c.h.b16 %v1890
    %v1983 = vunpack.c.l.b16 %v1891
    %v1984 = vunpack.c.h.b16 %v1891
    %v1985 = vunpack.c.l.b16 %v1892
    %v1986 = vunpack.c.h.b16 %v1892
    %v1987 = vunpack.c.l.b16 %v1893
    %v1988 = vunpack.c.h.b16 %v1893
    %v1989 = vunpack.c.l.b16 %v1894
    %v1990 = vunpack.c.h.b16 %v1894
    %v1991 = vunpack.c.l.b16 %v1895
    %v1992 = vunpack.c.h.b16 %v1895
    %v1993 = vunpack.c.l.b16 %v1896
    %v1994 = vunpack.c.h.b16 %v1896
    %v1995 = vunpack.c.l.b16 %v1897
    %v1996 = vunpack.c.h.b16 %v1897
    %v1997 = vunpack.c.l.b16 %v1898
    %v1998 = vunpack.c.h.b16 %v1898
    %v1999 = vunpack.c.l.b16 %v1899
    %v2000 = vunpack.c.h.b16 %v1899
    %v2001 = vunpack.c.l.b16 %v1900
    %v2002 = vunpack.c.h.b16 %v1900
    %v2003 = vunpack.c.l.b16 %v1901
    %v2004 = vunpack.c.h.b16 %v1901
    %v2005 = vunpack.c.l.b16 %v1902
    %v2006 = vunpack.c.h.b16 %v1902
    %v2007 = vunpack.c.l.b16 %v1903
    %v2008 = vunpack.c.h.b16 %v1903
    %v2009 = vunpack.c.l.b16 %v1904
    %v2010 = vunpack.c.h.b16 %v1904
    %v2011 = vunpack.c.l.b16 %v1905
    %v2012 = vunpack.c.h.b16 %v1905
    %v2013 = vunpack.c.l.b16 %v1906
    %v2014 = vunpack.c.h.b16 %v1906
    %v2015 = vunpack.c.l.b16 %v1907
    %v2016 = vunpack.c.h.b16 %v1907
    %v2017 = vunpack.c.l.b16 %v1908
    %v2018 = vunpack.c.h.b16 %v1908
    %v2019 = vunpack.c.l.b16 %v1909
    %v2020 = vunpack.c.h.b16 %v1909
    %v2021 = vunpack.c.l.b16 %v1910
    %v2022 = vunpack.c.h.b16 %v1910
    %v2023 = vunpack.c.l.b16 %v1911
    %v2024 = vunpack.c.h.b16 %v1911
    %v2025 = vunpack.c.l.b16 %v1912
    %v2026 = vunpack.c.h.b16 %v1912
    %v2027 = vunpack.c.l.b16 %v1913
    %v2028 = vunpack.c.h.b16 %v1913
    %v2029 = vunpack.c.l.b16 %v1914
    %v2030 = vunpack.c.h.b16 %v1914
    %v2031 = vunpack.c.l.b16 %v1915
    %v2032 = vunpack.c.h.b16 %v1915
    %v2033 = vunpack.c.l.b16 %v1916
    %v2034 = vunpack.c.h.b16 %v1916
    %v2035 = vpack.c.b16 %v1975, %v1971
    %v2036 = vpack.c.b16 %v1976, %v1972
    %v2037 = vpack.c.b16 %v1977, %v1973
    %v2038 = vpack.c.b16 %v1978, %v1974
    %v2039 = vpack.c.b16 %v1983, %v1979
    %v2040 = vpack.c.b16 %v1984, %v1980
    %v2041 = vpack.c.b16 %v1985, %v1981
    %v2042 = vpack.c.b16 %v1986, %v1982
    %v2043 = vpack.c.b16 %v1991, %v1987
    %v2044 = vpack.c.b16 %v1992, %v1988
    %v2045 = vpack.c.b16 %v1993, %v1989
    %v2046 = vpack.c.b16 %v1994, %v1990
    %v2047 = vpack.c.b16 %v1999, %v1995
    %v2048 = vpack.c.b16 %v2000, %v1996
    %v2049 = vpack.c.b16 %v2001, %v1997
    %v2050 = vpack.c.b16 %v2002, %v1998
    %v2051 = vpack.c.b16 %v2007, %v2003
    %v2052 = vpack.c.b16 %v2008, %v2004
    %v2053 = vpack.c.b16 %v2009, %v2005
    %v2054 = vpack.c.b16 %v2010, %v2006
    %v2055 = vpack.c.b16 %v2015, %v2011
    %v2056 = vpack.c.b16 %v2016, %v2012
    %v2057 = vpack.c.b16 %v2017, %v2013
    %v2058 = vpack.c.b16 %v2018, %v2014
    %v2059 = vpack.c.b16 %v2023, %v2019
    %v2060 = vpack.c.b16 %v2024, %v2020
    %v2061 = vpack.c.b16 %v2025, %v2021
    %v2062 = vpack.c.b16 %v2026, %v2022
    %v2063 = vpack.c.b16 %v2031, %v2027
    %v2064 = vpack.c.b16 %v2032, %v2028
    %v2065 = vpack.c.b16 %v2033, %v2029
    %v2066 = vpack.c.b16 %v2034, %v2030
    %2099 = vmatprep.subr.bf16.mxu0 %v2036
    %2100 = vmatpush1.bf16.msra.mxu0 %v2035
    %2101 = vmatprep.subr.bf16.mxu0 %v2040
    %2102 = vmatpush1.bf16.msra.mxu0 %v2039
    %2103 = vmatprep.subr.bf16.mxu0 %v2044
    %2104 = vmatpush1.bf16.msra.mxu0 %v2043
    %2105 = vmatprep.subr.bf16.mxu0 %v2048
    %2106 = vmatpush1.bf16.msra.mxu0 %v2047
    %2107 = vmatprep.subr.bf16.mxu0 %v2052
    %2108 = vmatpush1.bf16.msra.mxu0 %v2051
    %2109 = vmatprep.subr.bf16.mxu0 %v2056
    %2110 = vmatpush1.bf16.msra.mxu0 %v2055
    %2111 = vmatprep.subr.bf16.mxu0 %v2060
    %2112 = vmatpush1.bf16.msra.mxu0 %v2059
    %2113 = vmatprep.subr.bf16.mxu0 %v2064
    %2114 = vmatpush1.bf16.msra.mxu0 %v2063
    %2115 = vmatprep.subr.bf16.mxu0 0
    %2116 = vmatpush1.bf16.msra.mxu0 0
    %2117 = vmatprep.subr.bf16.mxu0 0
    %2118 = vmatpush1.bf16.msra.mxu0 0
    %2119 = vmatprep.subr.bf16.mxu0 0
    %2120 = vmatpush1.bf16.msra.mxu0 0
    %2121 = vmatprep.subr.bf16.mxu0 0
    %2122 = vmatpush1.bf16.msra.mxu0 0
    %2123 = vmatprep.subr.bf16.mxu0 0
    %2124 = vmatpush1.bf16.msra.mxu0 0
    %2125 = vmatprep.subr.bf16.mxu0 0
    %2126 = vmatpush1.bf16.msra.mxu0 0
    %2127 = vmatprep.subr.bf16.mxu0 0
    %2128 = vmatpush1.bf16.msra.mxu0 0
    %2129 = vmatprep.subr.bf16.mxu0 0
    %2130 = vmatpush1.bf16.msra.mxu0 0
    %2131 = vmatprep.mubr.bf16.mxu0 0
    %2132 = vmatmul.mubr.bf16.gmra.mrb[0].mxu0 %v1884
    %v2133 = vpop.f32.mrb[0].mxu0
    %v2134 = vadd.f32 %v1922, %v2133
    %v2135 = vpop.f32.mrb[0].mxu0
    %v2136 = vadd.f32 %v1926, %v2135
    %v2137 = vpop.f32.mrb[0].mxu0
    %v2138 = vpop.f32.mrb[0].mxu0
    %2139 = vdwg.mxu0
    %2140 = vmatprep.subr.bf16.mxu0 %v2038
    %2141 = vmatpush1.bf16.msra.mxu0 %v2037
    %2142 = vmatprep.subr.bf16.mxu0 %v2042
    %2143 = vmatpush1.bf16.msra.mxu0 %v2041
    %2144 = vmatprep.subr.bf16.mxu0 %v2046
    %2145 = vmatpush1.bf16.msra.mxu0 %v2045
    %2146 = vmatprep.subr.bf16.mxu0 %v2050
    %2147 = vmatpush1.bf16.msra.mxu0 %v2049
    %2148 = vmatprep.subr.bf16.mxu0 %v2054
    %2149 = vmatpush1.bf16.msra.mxu0 %v2053
    %2150 = vmatprep.subr.bf16.mxu0 %v2058
    %2151 = vmatpush1.bf16.msra.mxu0 %v2057
    %2152 = vmatprep.subr.bf16.mxu0 %v2062
    %2153 = vmatpush1.bf16.msra.mxu0 %v2061
    %2154 = vmatprep.subr.bf16.mxu0 %v2066
    %2155 = vmatpush1.bf16.msra.mxu0 %v2065
    %2156 = vmatprep.subr.bf16.mxu0 0
    %2157 = vmatpush1.bf16.msra.mxu0 0
    %2158 = vmatprep.subr.bf16.mxu0 0
    %2159 = vmatpush1.bf16.msra.mxu0 0
    %2160 = vmatprep.subr.bf16.mxu0 0
    %2161 = vmatpush1.bf16.msra.mxu0 0
    %2162 = vmatprep.subr.bf16.mxu0 0
    %2163 = vmatpush1.bf16.msra.mxu0 0
    %2164 = vmatprep.subr.bf16.mxu0 0
    %2165 = vmatpush1.bf16.msra.mxu0 0
    %2166 = vmatprep.subr.bf16.mxu0 0
    %2167 = vmatpush1.bf16.msra.mxu0 0
    %2168 = vmatprep.subr.bf16.mxu0 0
    %2169 = vmatpush1.bf16.msra.mxu0 0
    %2170 = vmatprep.subr.bf16.mxu0 0
    %2171 = vmatpush1.bf16.msra.mxu0 0
    %2172 = vmatprep.mubr.bf16.mxu0 0
    %2173 = vmatmul.mubr.bf16.gmra.mrb[0].mxu0 %v1884
    %v2174 = vpop.f32.mrb[0].mxu0
    %v2175 = vadd.f32 %v1930, %v2174
    %v2176 = vpop.f32.mrb[0].mxu0
    %v2177 = vadd.f32 %v1934, %v2176
    %v2178 = vpop.f32.mrb[0].mxu0
    %v2179 = vpop.f32.mrb[0].mxu0
    %2180 = vdwg.mxu0
    %v2181 = vmax.f32 %v2134, 0.0
    %v2182 = vmax.f32 %v2136, 0.0
    %v2183 = vmax.f32 %v2175, 0.0
    %v2184 = vmax.f32 %v2177, 0.0
    %v2185 = vpack.c.bf16 %v2181, %v2181
    %v2186 = vpack.c.bf16 %v2182, %v2182
    %v2187 = vpack.c.bf16 %v2183, %v2183
    %v2188 = vpack.c.bf16 %v2184, %v2184
    %v2189 = vld [vmem:[#allocation14] sm:$0xff]
    %v2190 = vld [vmem:[#allocation14 + $0x8] sm:$0xff]
    %v2191 = vld [vmem:[#allocation14 + $0x10] sm:$0xff]
    %v2192 = vld [vmem:[#allocation14 + $0x18] sm:$0xff]
    %v2193 = vld [vmem:[#allocation14 + $0x20] sm:$0xff]
    %v2194 = vld [vmem:[#allocation14 + $0x28] sm:$0xff]
    %v2195 = vld [vmem:[#allocation14 + $0x30] sm:$0xff]
    %v2196 = vld [vmem:[#allocation14 + $0x38] sm:$0xff]
    %v2197 = vld [vmem:[#allocation14 + $0x40] sm:$0xff]
    %v2198 = vld [vmem:[#allocation14 + $0x48] sm:$0xff]
    %v2199 = vld [vmem:[#allocation14 + $0x50] sm:$0xff]
    %v2200 = vld [vmem:[#allocation14 + $0x58] sm:$0xff]
    %v2201 = vld [vmem:[#allocation14 + $0x60] sm:$0xff]
    %v2202 = vld [vmem:[#allocation14 + $0x68] sm:$0xff]
    %v2203 = vld [vmem:[#allocation14 + $0x70] sm:$0xff]
    %v2204 = vld [vmem:[#allocation14 + $0x78] sm:$0xff]
    %v2205 = vld [vmem:[#allocation14 + $0x80] sm:$0xff]
    %v2206 = vld [vmem:[#allocation14 + $0x88] sm:$0xff]
    %v2207 = vld [vmem:[#allocation14 + $0x90] sm:$0xff]
    %v2208 = vld [vmem:[#allocation14 + $0x98] sm:$0xff]
    %v2209 = vld [vmem:[#allocation14 + $0xa0] sm:$0xff]
    %v2210 = vld [vmem:[#allocation14 + $0xa8] sm:$0xff]
    %v2211 = vld [vmem:[#allocation14 + $0xb0] sm:$0xff]
    %v2212 = vld [vmem:[#allocation14 + $0xb8] sm:$0xff]
    %v2213 = vld [vmem:[#allocation14 + $0xc0] sm:$0xff]
    %v2214 = vld [vmem:[#allocation14 + $0xc8] sm:$0xff]
    %v2215 = vld [vmem:[#allocation14 + $0xd0] sm:$0xff]
    %v2216 = vld [vmem:[#allocation14 + $0xd8] sm:$0xff]
    %v2217 = vld [vmem:[#allocation14 + $0xe0] sm:$0xff]
    %v2218 = vld [vmem:[#allocation14 + $0xe8] sm:$0xff]
    %v2219 = vld [vmem:[#allocation14 + $0xf0] sm:$0xff]
    %v2220 = vld [vmem:[#allocation14 + $0xf8] sm:$0xff]
    %v2221 = vld [vmem:[#allocation14 + $0x100] sm:$0xff]
    %v2222 = vld [vmem:[#allocation14 + $0x108] sm:$0xff]
    %v2223 = vld [vmem:[#allocation14 + $0x110] sm:$0xff]
    %v2224 = vld [vmem:[#allocation14 + $0x118] sm:$0xff]
    %v2225 = vld [vmem:[#allocation14 + $0x120] sm:$0xff]
    %v2226 = vld [vmem:[#allocation14 + $0x128] sm:$0xff]
    %v2227 = vld [vmem:[#allocation14 + $0x130] sm:$0xff]
    %v2228 = vld [vmem:[#allocation14 + $0x138] sm:$0xff]
    %v2229 = vld [vmem:[#allocation14 + $0x140] sm:$0xff]
    %v2230 = vld [vmem:[#allocation14 + $0x148] sm:$0xff]
    %v2231 = vld [vmem:[#allocation14 + $0x150] sm:$0xff]
    %v2232 = vld [vmem:[#allocation14 + $0x158] sm:$0xff]
    %v2233 = vld [vmem:[#allocation14 + $0x160] sm:$0xff]
    %v2234 = vld [vmem:[#allocation14 + $0x168] sm:$0xff]
    %v2235 = vld [vmem:[#allocation14 + $0x170] sm:$0xff]
    %v2236 = vld [vmem:[#allocation14 + $0x178] sm:$0xff]
    %v2237 = vld [vmem:[#allocation14 + $0x180] sm:$0xff]
    %v2238 = vld [vmem:[#allocation14 + $0x188] sm:$0xff]
    %v2239 = vld [vmem:[#allocation14 + $0x190] sm:$0xff]
    %v2240 = vld [vmem:[#allocation14 + $0x198] sm:$0xff]
    %v2241 = vld [vmem:[#allocation14 + $0x1a0] sm:$0xff]
    %v2242 = vld [vmem:[#allocation14 + $0x1a8] sm:$0xff]
    %v2243 = vld [vmem:[#allocation14 + $0x1b0] sm:$0xff]
    %v2244 = vld [vmem:[#allocation14 + $0x1b8] sm:$0xff]
    %v2245 = vld [vmem:[#allocation14 + $0x1c0] sm:$0xff]
    %v2246 = vld [vmem:[#allocation14 + $0x1c8] sm:$0xff]
    %v2247 = vld [vmem:[#allocation14 + $0x1d0] sm:$0xff]
    %v2248 = vld [vmem:[#allocation14 + $0x1d8] sm:$0xff]
    %v2249 = vld [vmem:[#allocation14 + $0x1e0] sm:$0xff]
    %v2250 = vld [vmem:[#allocation14 + $0x1e8] sm:$0xff]
    %v2251 = vld [vmem:[#allocation14 + $0x1f0] sm:$0xff]
    %v2252 = vld [vmem:[#allocation14 + $0x1f8] sm:$0xff]
    %v2253 = vld [vmem:[#allocation14 + $0x200] sm:$0xff]
    %v2254 = vld [vmem:[#allocation14 + $0x208] sm:$0xff]
    %v2255 = vld [vmem:[#allocation14 + $0x210] sm:$0xff]
    %v2256 = vld [vmem:[#allocation14 + $0x218] sm:$0xff]
    %v2257 = vld [vmem:[#allocation14 + $0x220] sm:$0xff]
    %v2258 = vld [vmem:[#allocation14 + $0x228] sm:$0xff]
    %v2259 = vld [vmem:[#allocation14 + $0x230] sm:$0xff]
    %v2260 = vld [vmem:[#allocation14 + $0x238] sm:$0xff]
    %v2261 = vld [vmem:[#allocation14 + $0x240] sm:$0xff]
    %v2262 = vld [vmem:[#allocation14 + $0x248] sm:$0xff]
    %v2263 = vld [vmem:[#allocation14 + $0x250] sm:$0xff]
    %v2264 = vld [vmem:[#allocation14 + $0x258] sm:$0xff]
    %v2265 = vld [vmem:[#allocation14 + $0x260] sm:$0xff]
    %v2266 = vld [vmem:[#allocation14 + $0x268] sm:$0xff]
    %v2267 = vld [vmem:[#allocation14 + $0x270] sm:$0xff]
    %v2268 = vld [vmem:[#allocation14 + $0x278] sm:$0xff]
    %v2269 = vld [vmem:[#allocation14 + $0x280] sm:$0xff]
    %v2270 = vld [vmem:[#allocation14 + $0x288] sm:$0xff]
    %v2271 = vld [vmem:[#allocation14 + $0x290] sm:$0xff]
    %v2272 = vld [vmem:[#allocation14 + $0x298] sm:$0xff]
    %v2273 = vld [vmem:[#allocation14 + $0x2a0] sm:$0xff]
    %v2274 = vld [vmem:[#allocation14 + $0x2a8] sm:$0xff]
    %v2275 = vld [vmem:[#allocation14 + $0x2b0] sm:$0xff]
    %v2276 = vld [vmem:[#allocation14 + $0x2b8] sm:$0xff]
    %v2277 = vld [vmem:[#allocation14 + $0x2c0] sm:$0xff]
    %v2278 = vld [vmem:[#allocation14 + $0x2c8] sm:$0xff]
    %v2279 = vld [vmem:[#allocation14 + $0x2d0] sm:$0xff]
    %v2280 = vld [vmem:[#allocation14 + $0x2d8] sm:$0xff]
    %v2281 = vld [vmem:[#allocation14 + $0x2e0] sm:$0xff]
    %v2282 = vld [vmem:[#allocation14 + $0x2e8] sm:$0xff]
    %v2283 = vld [vmem:[#allocation14 + $0x2f0] sm:$0xff]
    %v2284 = vld [vmem:[#allocation14 + $0x2f8] sm:$0xff]
    %v2285 = vld [vmem:[#allocation14 + $0x300] sm:$0xff]
    %v2286 = vld [vmem:[#allocation14 + $0x308] sm:$0xff]
    %v2287 = vld [vmem:[#allocation14 + $0x310] sm:$0xff]
    %v2288 = vld [vmem:[#allocation14 + $0x318] sm:$0xff]
    %v2289 = vld [vmem:[#allocation14 + $0x320] sm:$0xff]
    %v2290 = vld [vmem:[#allocation14 + $0x328] sm:$0xff]
    %v2291 = vld [vmem:[#allocation14 + $0x330] sm:$0xff]
    %v2292 = vld [vmem:[#allocation14 + $0x338] sm:$0xff]
    %v2293 = vld [vmem:[#allocation14 + $0x340] sm:$0xff]
    %v2294 = vld [vmem:[#allocation14 + $0x348] sm:$0xff]
    %v2295 = vld [vmem:[#allocation14 + $0x350] sm:$0xff]
    %v2296 = vld [vmem:[#allocation14 + $0x358] sm:$0xff]
    %v2297 = vld [vmem:[#allocation14 + $0x360] sm:$0xff]
    %v2298 = vld [vmem:[#allocation14 + $0x368] sm:$0xff]
    %v2299 = vld [vmem:[#allocation14 + $0x370] sm:$0xff]
    %v2300 = vld [vmem:[#allocation14 + $0x378] sm:$0xff]
    %v2301 = vld [vmem:[#allocation14 + $0x380] sm:$0xff]
    %v2302 = vld [vmem:[#allocation14 + $0x388] sm:$0xff]
    %v2303 = vld [vmem:[#allocation14 + $0x390] sm:$0xff]
    %v2304 = vld [vmem:[#allocation14 + $0x398] sm:$0xff]
    %v2305 = vld [vmem:[#allocation14 + $0x3a0] sm:$0xff]
    %v2306 = vld [vmem:[#allocation14 + $0x3a8] sm:$0xff]
    %v2307 = vld [vmem:[#allocation14 + $0x3b0] sm:$0xff]
    %v2308 = vld [vmem:[#allocation14 + $0x3b8] sm:$0xff]
    %v2309 = vld [vmem:[#allocation14 + $0x3c0] sm:$0xff]
    %v2310 = vld [vmem:[#allocation14 + $0x3c8] sm:$0xff]
    %v2311 = vld [vmem:[#allocation14 + $0x3d0] sm:$0xff]
    %v2312 = vld [vmem:[#allocation14 + $0x3d8] sm:$0xff]
    %v2313 = vld [vmem:[#allocation14 + $0x3e0] sm:$0xff]
    %v2314 = vld [vmem:[#allocation14 + $0x3e8] sm:$0xff]
    %v2315 = vld [vmem:[#allocation14 + $0x3f0] sm:$0xff]
    %v2316 = vld [vmem:[#allocation14 + $0x3f8] sm:$0xff]
    %v2317 = vld [vmem:[#allocation14 + $0x400] sm:$0xff]
    %v2318 = vld [vmem:[#allocation14 + $0x408] sm:$0xff]
    %v2319 = vld [vmem:[#allocation14 + $0x410] sm:$0xff]
    %v2320 = vld [vmem:[#allocation14 + $0x418] sm:$0xff]
    %v2321 = vld [vmem:[#allocation14 + $0x420] sm:$0xff]
    %v2322 = vld [vmem:[#allocation14 + $0x428] sm:$0xff]
    %v2323 = vld [vmem:[#allocation14 + $0x430] sm:$0xff]
    %v2324 = vld [vmem:[#allocation14 + $0x438] sm:$0xff]
    %v2325 = vld [vmem:[#allocation14 + $0x440] sm:$0xff]
    %v2326 = vld [vmem:[#allocation14 + $0x448] sm:$0xff]
    %v2327 = vld [vmem:[#allocation14 + $0x450] sm:$0xff]
    %v2328 = vld [vmem:[#allocation14 + $0x458] sm:$0xff]
    %v2329 = vld [vmem:[#allocation14 + $0x460] sm:$0xff]
    %v2330 = vld [vmem:[#allocation14 + $0x468] sm:$0xff]
    %v2331 = vld [vmem:[#allocation14 + $0x470] sm:$0xff]
    %v2332 = vld [vmem:[#allocation14 + $0x478] sm:$0xff]
    %v2333 = vld [vmem:[#allocation14 + $0x480] sm:$0xff]
    %v2334 = vld [vmem:[#allocation14 + $0x488] sm:$0xff]
    %v2335 = vld [vmem:[#allocation14 + $0x490] sm:$0xff]
    %v2336 = vld [vmem:[#allocation14 + $0x498] sm:$0xff]
    %v2337 = vld [vmem:[#allocation14 + $0x4a0] sm:$0xff]
    %v2338 = vld [vmem:[#allocation14 + $0x4a8] sm:$0xff]
    %v2339 = vld [vmem:[#allocation14 + $0x4b0] sm:$0xff]
    %v2340 = vld [vmem:[#allocation14 + $0x4b8] sm:$0xff]
    %v2341 = vld [vmem:[#allocation14 + $0x4c0] sm:$0xff]
    %v2342 = vld [vmem:[#allocation14 + $0x4c8] sm:$0xff]
    %v2343 = vld [vmem:[#allocation14 + $0x4d0] sm:$0xff]
    %v2344 = vld [vmem:[#allocation14 + $0x4d8] sm:$0xff]
    %v2345 = vld [vmem:[#allocation14 + $0x4e0] sm:$0xff]
    %v2346 = vld [vmem:[#allocation14 + $0x4e8] sm:$0xff]
    %v2347 = vld [vmem:[#allocation14 + $0x4f0] sm:$0xff]
    %v2348 = vld [vmem:[#allocation14 + $0x4f8] sm:$0xff]
    %v2349 = vld [vmem:[#allocation14 + $0x500] sm:$0xff]
    %v2350 = vld [vmem:[#allocation14 + $0x508] sm:$0xff]
    %v2351 = vld [vmem:[#allocation14 + $0x510] sm:$0xff]
    %v2352 = vld [vmem:[#allocation14 + $0x518] sm:$0xff]
    %v2353 = vld [vmem:[#allocation14 + $0x520] sm:$0xff]
    %v2354 = vld [vmem:[#allocation14 + $0x528] sm:$0xff]
    %v2355 = vld [vmem:[#allocation14 + $0x530] sm:$0xff]
    %v2356 = vld [vmem:[#allocation14 + $0x538] sm:$0xff]
    %v2357 = vld [vmem:[#allocation14 + $0x540] sm:$0xff]
    %v2358 = vld [vmem:[#allocation14 + $0x548] sm:$0xff]
    %v2359 = vld [vmem:[#allocation14 + $0x550] sm:$0xff]
    %v2360 = vld [vmem:[#allocation14 + $0x558] sm:$0xff]
    %v2361 = vld [vmem:[#allocation14 + $0x560] sm:$0xff]
    %v2362 = vld [vmem:[#allocation14 + $0x568] sm:$0xff]
    %v2363 = vld [vmem:[#allocation14 + $0x570] sm:$0xff]
    %v2364 = vld [vmem:[#allocation14 + $0x578] sm:$0xff]
    %v2365 = vld [vmem:[#allocation14 + $0x580] sm:$0xff]
    %v2366 = vld [vmem:[#allocation14 + $0x588] sm:$0xff]
    %v2367 = vld [vmem:[#allocation14 + $0x590] sm:$0xff]
    %v2368 = vld [vmem:[#allocation14 + $0x598] sm:$0xff]
    %v2369 = vld [vmem:[#allocation14 + $0x5a0] sm:$0xff]
    %v2370 = vld [vmem:[#allocation14 + $0x5a8] sm:$0xff]
    %v2371 = vld [vmem:[#allocation14 + $0x5b0] sm:$0xff]
    %v2372 = vld [vmem:[#allocation14 + $0x5b8] sm:$0xff]
    %v2373 = vld [vmem:[#allocation14 + $0x5c0] sm:$0xff]
    %v2374 = vld [vmem:[#allocation14 + $0x5c8] sm:$0xff]
    %v2375 = vld [vmem:[#allocation14 + $0x5d0] sm:$0xff]
    %v2376 = vld [vmem:[#allocation14 + $0x5d8] sm:$0xff]
    %v2377 = vld [vmem:[#allocation14 + $0x5e0] sm:$0xff]
    %v2378 = vld [vmem:[#allocation14 + $0x5e8] sm:$0xff]
    %v2379 = vld [vmem:[#allocation14 + $0x5f0] sm:$0xff]
    %v2380 = vld [vmem:[#allocation14 + $0x5f8] sm:$0xff]
    %v2381 = vld [vmem:[#allocation14 + $0x600] sm:$0xff]
    %v2382 = vld [vmem:[#allocation14 + $0x608] sm:$0xff]
    %v2383 = vld [vmem:[#allocation14 + $0x610] sm:$0xff]
    %v2384 = vld [vmem:[#allocation14 + $0x618] sm:$0xff]
    %v2385 = vld [vmem:[#allocation14 + $0x620] sm:$0xff]
    %v2386 = vld [vmem:[#allocation14 + $0x628] sm:$0xff]
    %v2387 = vld [vmem:[#allocation14 + $0x630] sm:$0xff]
    %v2388 = vld [vmem:[#allocation14 + $0x638] sm:$0xff]
    %v2389 = vld [vmem:[#allocation14 + $0x640] sm:$0xff]
    %v2390 = vld [vmem:[#allocation14 + $0x648] sm:$0xff]
    %v2391 = vld [vmem:[#allocation14 + $0x650] sm:$0xff]
    %v2392 = vld [vmem:[#allocation14 + $0x658] sm:$0xff]
    %v2393 = vld [vmem:[#allocation14 + $0x660] sm:$0xff]
    %v2394 = vld [vmem:[#allocation14 + $0x668] sm:$0xff]
    %v2395 = vld [vmem:[#allocation14 + $0x670] sm:$0xff]
    %v2396 = vld [vmem:[#allocation14 + $0x678] sm:$0xff]
    %v2397 = vld [vmem:[#allocation14 + $0x680] sm:$0xff]
    %v2398 = vld [vmem:[#allocation14 + $0x688] sm:$0xff]
    %v2399 = vld [vmem:[#allocation14 + $0x690] sm:$0xff]
    %v2400 = vld [vmem:[#allocation14 + $0x698] sm:$0xff]
    %v2401 = vld [vmem:[#allocation14 + $0x6a0] sm:$0xff]
    %v2402 = vld [vmem:[#allocation14 + $0x6a8] sm:$0xff]
    %v2403 = vld [vmem:[#allocation14 + $0x6b0] sm:$0xff]
    %v2404 = vld [vmem:[#allocation14 + $0x6b8] sm:$0xff]
    %v2405 = vld [vmem:[#allocation14 + $0x6c0] sm:$0xff]
    %v2406 = vld [vmem:[#allocation14 + $0x6c8] sm:$0xff]
    %v2407 = vld [vmem:[#allocation14 + $0x6d0] sm:$0xff]
    %v2408 = vld [vmem:[#allocation14 + $0x6d8] sm:$0xff]
    %v2409 = vld [vmem:[#allocation14 + $0x6e0] sm:$0xff]
    %v2410 = vld [vmem:[#allocation14 + $0x6e8] sm:$0xff]
    %v2411 = vld [vmem:[#allocation14 + $0x6f0] sm:$0xff]
    %v2412 = vld [vmem:[#allocation14 + $0x6f8] sm:$0xff]
    %v2413 = vld [vmem:[#allocation14 + $0x700] sm:$0xff]
    %v2414 = vld [vmem:[#allocation14 + $0x708] sm:$0xff]
    %v2415 = vld [vmem:[#allocation14 + $0x710] sm:$0xff]
    %v2416 = vld [vmem:[#allocation14 + $0x718] sm:$0xff]
    %v2417 = vld [vmem:[#allocation14 + $0x720] sm:$0xff]
    %v2418 = vld [vmem:[#allocation14 + $0x728] sm:$0xff]
    %v2419 = vld [vmem:[#allocation14 + $0x730] sm:$0xff]
    %v2420 = vld [vmem:[#allocation14 + $0x738] sm:$0xff]
    %v2421 = vld [vmem:[#allocation14 + $0x740] sm:$0xff]
    %v2422 = vld [vmem:[#allocation14 + $0x748] sm:$0xff]
    %v2423 = vld [vmem:[#allocation14 + $0x750] sm:$0xff]
    %v2424 = vld [vmem:[#allocation14 + $0x758] sm:$0xff]
    %v2425 = vld [vmem:[#allocation14 + $0x760] sm:$0xff]
    %v2426 = vld [vmem:[#allocation14 + $0x768] sm:$0xff]
    %v2427 = vld [vmem:[#allocation14 + $0x770] sm:$0xff]
    %v2428 = vld [vmem:[#allocation14 + $0x778] sm:$0xff]
    %v2429 = vld [vmem:[#allocation14 + $0x780] sm:$0xff]
    %v2430 = vld [vmem:[#allocation14 + $0x788] sm:$0xff]
    %v2431 = vld [vmem:[#allocation14 + $0x790] sm:$0xff]
    %v2432 = vld [vmem:[#allocation14 + $0x798] sm:$0xff]
    %v2433 = vld [vmem:[#allocation14 + $0x7a0] sm:$0xff]
    %v2434 = vld [vmem:[#allocation14 + $0x7a8] sm:$0xff]
    %v2435 = vld [vmem:[#allocation14 + $0x7b0] sm:$0xff]
    %v2436 = vld [vmem:[#allocation14 + $0x7b8] sm:$0xff]
    %v2437 = vld [vmem:[#allocation14 + $0x7c0] sm:$0xff]
    %v2438 = vld [vmem:[#allocation14 + $0x7c8] sm:$0xff]
    %v2439 = vld [vmem:[#allocation14 + $0x7d0] sm:$0xff]
    %v2440 = vld [vmem:[#allocation14 + $0x7d8] sm:$0xff]
    %v2441 = vld [vmem:[#allocation14 + $0x7e0] sm:$0xff]
    %v2442 = vld [vmem:[#allocation14 + $0x7e8] sm:$0xff]
    %v2443 = vld [vmem:[#allocation14 + $0x7f0] sm:$0xff]
    %v2444 = vld [vmem:[#allocation14 + $0x7f8] sm:$0xff]
    %v2445 = vld [vmem:[%s12] sm:$0xff]
    %v2447 = vlaneseq
    %v2448 = vshrl.u32 %v2447, 7
    %v2449 = vsub.s32 0, %v2448
    %v2450 = vrot.slane %v2445, %v2449
    %v2451 = vlaneseq
    %v2452 = vshrl.u32 %v2451, 7
    %v2453 = vsub.s32 1, %v2452
    %v2454 = vrot.slane %v2445, %v2453
    %v2455 = vlaneseq
    %v2456 = vshrl.u32 %v2455, 7
    %v2457 = vsub.s32 2, %v2456
    %v2458 = vrot.slane %v2445, %v2457
    %v2459 = vlaneseq
    %v2460 = vshrl.u32 %v2459, 7
    %v2461 = vsub.s32 3, %v2460
    %v2462 = vrot.slane %v2445, %v2461
    %v2463 = vlaneseq
    %v2464 = vshrl.u32 %v2463, 7
    %v2465 = vsub.s32 4, %v2464
    %v2466 = vrot.slane %v2445, %v2465
    %v2467 = vlaneseq
    %v2468 = vshrl.u32 %v2467, 7
    %v2469 = vsub.s32 5, %v2468
    %v2470 = vrot.slane %v2445, %v2469
    %v2471 = vlaneseq
    %v2472 = vshrl.u32 %v2471, 7
    %v2473 = vsub.s32 6, %v2472
    %v2474 = vrot.slane %v2445, %v2473
    %v2475 = vlaneseq
    %v2476 = vshrl.u32 %v2475, 7
    %v2477 = vsub.s32 7, %v2476
    %v2478 = vrot.slane %v2445, %v2477
    %v2743 = vunpack.c.l.b16 %v2189
    %v2744 = vunpack.c.h.b16 %v2189
    %v2745 = vunpack.c.l.b16 %v2190
    %v2746 = vunpack.c.h.b16 %v2190
    %v2747 = vunpack.c.l.b16 %v2191
    %v2748 = vunpack.c.h.b16 %v2191
    %v2749 = vunpack.c.l.b16 %v2192
    %v2750 = vunpack.c.h.b16 %v2192
    %v2751 = vunpack.c.l.b16 %v2193
    %v2752 = vunpack.c.h.b16 %v2193
    %v2753 = vunpack.c.l.b16 %v2194
    %v2754 = vunpack.c.h.b16 %v2194
    %v2755 = vunpack.c.l.b16 %v2195
    %v2756 = vunpack.c.h.b16 %v2195
    %v2757 = vunpack.c.l.b16 %v2196
    %v2758 = vunpack.c.h.b16 %v2196
    %v2759 = vunpack.c.l.b16 %v2197
    %v2760 = vunpack.c.h.b16 %v2197
    %v2761 = vunpack.c.l.b16 %v2198
    %v2762 = vunpack.c.h.b16 %v2198
    %v2763 = vunpack.c.l.b16 %v2199
    %v2764 = vunpack.c.h.b16 %v2199
    %v2765 = vunpack.c.l.b16 %v2200
    %v2766 = vunpack.c.h.b16 %v2200
    %v2767 = vunpack.c.l.b16 %v2201
    %v2768 = vunpack.c.h.b16 %v2201
    %v2769 = vunpack.c.l.b16 %v2202
    %v2770 = vunpack.c.h.b16 %v2202
    %v2771 = vunpack.c.l.b16 %v2203
    %v2772 = vunpack.c.h.b16 %v2203
    %v2773 = vunpack.c.l.b16 %v2204
    %v2774 = vunpack.c.h.b16 %v2204
    %v2775 = vunpack.c.l.b16 %v2205
    %v2776 = vunpack.c.h.b16 %v2205
    %v2777 = vunpack.c.l.b16 %v2206
    %v2778 = vunpack.c.h.b16 %v2206
    %v2779 = vunpack.c.l.b16 %v2207
    %v2780 = vunpack.c.h.b16 %v2207
    %v2781 = vunpack.c.l.b16 %v2208
    %v2782 = vunpack.c.h.b16 %v2208
    %v2783 = vunpack.c.l.b16 %v2209
    %v2784 = vunpack.c.h.b16 %v2209
    %v2785 = vunpack.c.l.b16 %v2210
    %v2786 = vunpack.c.h.b16 %v2210
    %v2787 = vunpack.c.l.b16 %v2211
    %v2788 = vunpack.c.h.b16 %v2211
    %v2789 = vunpack.c.l.b16 %v2212
    %v2790 = vunpack.c.h.b16 %v2212
    %v2791 = vunpack.c.l.b16 %v2213
    %v2792 = vunpack.c.h.b16 %v2213
    %v2793 = vunpack.c.l.b16 %v2214
    %v2794 = vunpack.c.h.b16 %v2214
    %v2795 = vunpack.c.l.b16 %v2215
    %v2796 = vunpack.c.h.b16 %v2215
    %v2797 = vunpack.c.l.b16 %v2216
    %v2798 = vunpack.c.h.b16 %v2216
    %v2799 = vunpack.c.l.b16 %v2217
    %v2800 = vunpack.c.h.b16 %v2217
    %v2801 = vunpack.c.l.b16 %v2218
    %v2802 = vunpack.c.h.b16 %v2218
    %v2803 = vunpack.c.l.b16 %v2219
    %v2804 = vunpack.c.h.b16 %v2219
    %v2805 = vunpack.c.l.b16 %v2220
    %v2806 = vunpack.c.h.b16 %v2220
    %v2807 = vunpack.c.l.b16 %v2221
    %v2808 = vunpack.c.h.b16 %v2221
    %v2809 = vunpack.c.l.b16 %v2222
    %v2810 = vunpack.c.h.b16 %v2222
    %v2811 = vunpack.c.l.b16 %v2223
    %v2812 = vunpack.c.h.b16 %v2223
    %v2813 = vunpack.c.l.b16 %v2224
    %v2814 = vunpack.c.h.b16 %v2224
    %v2815 = vunpack.c.l.b16 %v2225
    %v2816 = vunpack.c.h.b16 %v2225
    %v2817 = vunpack.c.l.b16 %v2226
    %v2818 = vunpack.c.h.b16 %v2226
    %v2819 = vunpack.c.l.b16 %v2227
    %v2820 = vunpack.c.h.b16 %v2227
    %v2821 = vunpack.c.l.b16 %v2228
    %v2822 = vunpack.c.h.b16 %v2228
    %v2823 = vunpack.c.l.b16 %v2229
    %v2824 = vunpack.c.h.b16 %v2229
    %v2825 = vunpack.c.l.b16 %v2230
    %v2826 = vunpack.c.h.b16 %v2230
    %v2827 = vunpack.c.l.b16 %v2231
    %v2828 = vunpack.c.h.b16 %v2231
    %v2829 = vunpack.c.l.b16 %v2232
    %v2830 = vunpack.c.h.b16 %v2232
    %v2831 = vunpack.c.l.b16 %v2233
    %v2832 = vunpack.c.h.b16 %v2233
    %v2833 = vunpack.c.l.b16 %v2234
    %v2834 = vunpack.c.h.b16 %v2234
    %v2835 = vunpack.c.l.b16 %v2235
    %v2836 = vunpack.c.h.b16 %v2235
    %v2837 = vunpack.c.l.b16 %v2236
    %v2838 = vunpack.c.h.b16 %v2236
    %v2839 = vunpack.c.l.b16 %v2237
    %v2840 = vunpack.c.h.b16 %v2237
    %v2841 = vunpack.c.l.b16 %v2238
    %v2842 = vunpack.c.h.b16 %v2238
    %v2843 = vunpack.c.l.b16 %v2239
    %v2844 = vunpack.c.h.b16 %v2239
    %v2845 = vunpack.c.l.b16 %v2240
    %v2846 = vunpack.c.h.b16 %v2240
    %v2847 = vunpack.c.l.b16 %v2241
    %v2848 = vunpack.c.h.b16 %v2241
    %v2849 = vunpack.c.l.b16 %v2242
    %v2850 = vunpack.c.h.b16 %v2242
    %v2851 = vunpack.c.l.b16 %v2243
    %v2852 = vunpack.c.h.b16 %v2243
    %v2853 = vunpack.c.l.b16 %v2244
    %v2854 = vunpack.c.h.b16 %v2244
    %v2855 = vunpack.c.l.b16 %v2245
    %v2856 = vunpack.c.h.b16 %v2245
    %v2857 = vunpack.c.l.b16 %v2246
    %v2858 = vunpack.c.h.b16 %v2246
    %v2859 = vunpack.c.l.b16 %v2247
    %v2860 = vunpack.c.h.b16 %v2247
    %v2861 = vunpack.c.l.b16 %v2248
    %v2862 = vunpack.c.h.b16 %v2248
    %v2863 = vunpack.c.l.b16 %v2249
    %v2864 = vunpack.c.h.b16 %v2249
    %v2865 = vunpack.c.l.b16 %v2250
    %v2866 = vunpack.c.h.b16 %v2250
    %v2867 = vunpack.c.l.b16 %v2251
    %v2868 = vunpack.c.h.b16 %v2251
    %v2869 = vunpack.c.l.b16 %v2252
    %v2870 = vunpack.c.h.b16 %v2252
    %v2871 = vunpack.c.l.b16 %v2253
    %v2872 = vunpack.c.h.b16 %v2253
    %v2873 = vunpack.c.l.b16 %v2254
    %v2874 = vunpack.c.h.b16 %v2254
    %v2875 = vunpack.c.l.b16 %v2255
    %v2876 = vunpack.c.h.b16 %v2255
    %v2877 = vunpack.c.l.b16 %v2256
    %v2878 = vunpack.c.h.b16 %v2256
    %v2879 = vunpack.c.l.b16 %v2257
    %v2880 = vunpack.c.h.b16 %v2257
    %v2881 = vunpack.c.l.b16 %v2258
    %v2882 = vunpack.c.h.b16 %v2258
    %v2883 = vunpack.c.l.b16 %v2259
    %v2884 = vunpack.c.h.b16 %v2259
    %v2885 = vunpack.c.l.b16 %v2260
    %v2886 = vunpack.c.h.b16 %v2260
    %v2887 = vunpack.c.l.b16 %v2261
    %v2888 = vunpack.c.h.b16 %v2261
    %v2889 = vunpack.c.l.b16 %v2262
    %v2890 = vunpack.c.h.b16 %v2262
    %v2891 = vunpack.c.l.b16 %v2263
    %v2892 = vunpack.c.h.b16 %v2263
    %v2893 = vunpack.c.l.b16 %v2264
    %v2894 = vunpack.c.h.b16 %v2264
    %v2895 = vunpack.c.l.b16 %v2265
    %v2896 = vunpack.c.h.b16 %v2265
    %v2897 = vunpack.c.l.b16 %v2266
    %v2898 = vunpack.c.h.b16 %v2266
    %v2899 = vunpack.c.l.b16 %v2267
    %v2900 = vunpack.c.h.b16 %v2267
    %v2901 = vunpack.c.l.b16 %v2268
    %v2902 = vunpack.c.h.b16 %v2268
    %v2903 = vunpack.c.l.b16 %v2269
    %v2904 = vunpack.c.h.b16 %v2269
    %v2905 = vunpack.c.l.b16 %v2270
    %v2906 = vunpack.c.h.b16 %v2270
    %v2907 = vunpack.c.l.b16 %v2271
    %v2908 = vunpack.c.h.b16 %v2271
    %v2909 = vunpack.c.l.b16 %v2272
    %v2910 = vunpack.c.h.b16 %v2272
    %v2911 = vunpack.c.l.b16 %v2273
    %v2912 = vunpack.c.h.b16 %v2273
    %v2913 = vunpack.c.l.b16 %v2274
    %v2914 = vunpack.c.h.b16 %v2274
    %v2915 = vunpack.c.l.b16 %v2275
    %v2916 = vunpack.c.h.b16 %v2275
    %v2917 = vunpack.c.l.b16 %v2276
    %v2918 = vunpack.c.h.b16 %v2276
    %v2919 = vunpack.c.l.b16 %v2277
    %v2920 = vunpack.c.h.b16 %v2277
    %v2921 = vunpack.c.l.b16 %v2278
    %v2922 = vunpack.c.h.b16 %v2278
    %v2923 = vunpack.c.l.b16 %v2279
    %v2924 = vunpack.c.h.b16 %v2279
    %v2925 = vunpack.c.l.b16 %v2280
    %v2926 = vunpack.c.h.b16 %v2280
    %v2927 = vunpack.c.l.b16 %v2281
    %v2928 = vunpack.c.h.b16 %v2281
    %v2929 = vunpack.c.l.b16 %v2282
    %v2930 = vunpack.c.h.b16 %v2282
    %v2931 = vunpack.c.l.b16 %v2283
    %v2932 = vunpack.c.h.b16 %v2283
    %v2933 = vunpack.c.l.b16 %v2284
    %v2934 = vunpack.c.h.b16 %v2284
    %v2935 = vunpack.c.l.b16 %v2285
    %v2936 = vunpack.c.h.b16 %v2285
    %v2937 = vunpack.c.l.b16 %v2286
    %v2938 = vunpack.c.h.b16 %v2286
    %v2939 = vunpack.c.l.b16 %v2287
    %v2940 = vunpack.c.h.b16 %v2287
    %v2941 = vunpack.c.l.b16 %v2288
    %v2942 = vunpack.c.h.b16 %v2288
    %v2943 = vunpack.c.l.b16 %v2289
    %v2944 = vunpack.c.h.b16 %v2289
    %v2945 = vunpack.c.l.b16 %v2290
    %v2946 = vunpack.c.h.b16 %v2290
    %v2947 = vunpack.c.l.b16 %v2291
    %v2948 = vunpack.c.h.b16 %v2291
    %v2949 = vunpack.c.l.b16 %v2292
    %v2950 = vunpack.c.h.b16 %v2292
    %v2951 = vunpack.c.l.b16 %v2293
    %v2952 = vunpack.c.h.b16 %v2293
    %v2953 = vunpack.c.l.b16 %v2294
    %v2954 = vunpack.c.h.b16 %v2294
    %v2955 = vunpack.c.l.b16 %v2295
    %v2956 = vunpack.c.h.b16 %v2295
    %v2957 = vunpack.c.l.b16 %v2296
    %v2958 = vunpack.c.h.b16 %v2296
    %v2959 = vunpack.c.l.b16 %v2297
    %v2960 = vunpack.c.h.b16 %v2297
    %v2961 = vunpack.c.l.b16 %v2298
    %v2962 = vunpack.c.h.b16 %v2298
    %v2963 = vunpack.c.l.b16 %v2299
    %v2964 = vunpack.c.h.b16 %v2299
    %v2965 = vunpack.c.l.b16 %v2300
    %v2966 = vunpack.c.h.b16 %v2300
    %v2967 = vunpack.c.l.b16 %v2301
    %v2968 = vunpack.c.h.b16 %v2301
    %v2969 = vunpack.c.l.b16 %v2302
    %v2970 = vunpack.c.h.b16 %v2302
    %v2971 = vunpack.c.l.b16 %v2303
    %v2972 = vunpack.c.h.b16 %v2303
    %v2973 = vunpack.c.l.b16 %v2304
    %v2974 = vunpack.c.h.b16 %v2304
    %v2975 = vunpack.c.l.b16 %v2305
    %v2976 = vunpack.c.h.b16 %v2305
    %v2977 = vunpack.c.l.b16 %v2306
    %v2978 = vunpack.c.h.b16 %v2306
    %v2979 = vunpack.c.l.b16 %v2307
    %v2980 = vunpack.c.h.b16 %v2307
    %v2981 = vunpack.c.l.b16 %v2308
    %v2982 = vunpack.c.h.b16 %v2308
    %v2983 = vunpack.c.l.b16 %v2309
    %v2984 = vunpack.c.h.b16 %v2309
    %v2985 = vunpack.c.l.b16 %v2310
    %v2986 = vunpack.c.h.b16 %v2310
    %v2987 = vunpack.c.l.b16 %v2311
    %v2988 = vunpack.c.h.b16 %v2311
    %v2989 = vunpack.c.l.b16 %v2312
    %v2990 = vunpack.c.h.b16 %v2312
    %v2991 = vunpack.c.l.b16 %v2313
    %v2992 = vunpack.c.h.b16 %v2313
    %v2993 = vunpack.c.l.b16 %v2314
    %v2994 = vunpack.c.h.b16 %v2314
    %v2995 = vunpack.c.l.b16 %v2315
    %v2996 = vunpack.c.h.b16 %v2315
    %v2997 = vunpack.c.l.b16 %v2316
    %v2998 = vunpack.c.h.b16 %v2316
    %v2999 = vunpack.c.l.b16 %v2317
    %v3000 = vunpack.c.h.b16 %v2317
    %v3001 = vunpack.c.l.b16 %v2318
    %v3002 = vunpack.c.h.b16 %v2318
    %v3003 = vunpack.c.l.b16 %v2319
    %v3004 = vunpack.c.h.b16 %v2319
    %v3005 = vunpack.c.l.b16 %v2320
    %v3006 = vunpack.c.h.b16 %v2320
    %v3007 = vunpack.c.l.b16 %v2321
    %v3008 = vunpack.c.h.b16 %v2321
    %v3009 = vunpack.c.l.b16 %v2322
    %v3010 = vunpack.c.h.b16 %v2322
    %v3011 = vunpack.c.l.b16 %v2323
    %v3012 = vunpack.c.h.b16 %v2323
    %v3013 = vunpack.c.l.b16 %v2324
    %v3014 = vunpack.c.h.b16 %v2324
    %v3015 = vunpack.c.l.b16 %v2325
    %v3016 = vunpack.c.h.b16 %v2325
    %v3017 = vunpack.c.l.b16 %v2326
    %v3018 = vunpack.c.h.b16 %v2326
    %v3019 = vunpack.c.l.b16 %v2327
    %v3020 = vunpack.c.h.b16 %v2327
    %v3021 = vunpack.c.l.b16 %v2328
    %v3022 = vunpack.c.h.b16 %v2328
    %v3023 = vunpack.c.l.b16 %v2329
    %v3024 = vunpack.c.h.b16 %v2329
    %v3025 = vunpack.c.l.b16 %v2330
    %v3026 = vunpack.c.h.b16 %v2330
    %v3027 = vunpack.c.l.b16 %v2331
    %v3028 = vunpack.c.h.b16 %v2331
    %v3029 = vunpack.c.l.b16 %v2332
    %v3030 = vunpack.c.h.b16 %v2332
    %v3031 = vunpack.c.l.b16 %v2333
    %v3032 = vunpack.c.h.b16 %v2333
    %v3033 = vunpack.c.l.b16 %v2334
    %v3034 = vunpack.c.h.b16 %v2334
    %v3035 = vunpack.c.l.b16 %v2335
    %v3036 = vunpack.c.h.b16 %v2335
    %v3037 = vunpack.c.l.b16 %v2336
    %v3038 = vunpack.c.h.b16 %v2336
    %v3039 = vunpack.c.l.b16 %v2337
    %v3040 = vunpack.c.h.b16 %v2337
    %v3041 = vunpack.c.l.b16 %v2338
    %v3042 = vunpack.c.h.b16 %v2338
    %v3043 = vunpack.c.l.b16 %v2339
    %v3044 = vunpack.c.h.b16 %v2339
    %v3045 = vunpack.c.l.b16 %v2340
    %v3046 = vunpack.c.h.b16 %v2340
    %v3047 = vunpack.c.l.b16 %v2341
    %v3048 = vunpack.c.h.b16 %v2341
    %v3049 = vunpack.c.l.b16 %v2342
    %v3050 = vunpack.c.h.b16 %v2342
    %v3051 = vunpack.c.l.b16 %v2343
    %v3052 = vunpack.c.h.b16 %v2343
    %v3053 = vunpack.c.l.b16 %v2344
    %v3054 = vunpack.c.h.b16 %v2344
    %v3055 = vunpack.c.l.b16 %v2345
    %v3056 = vunpack.c.h.b16 %v2345
    %v3057 = vunpack.c.l.b16 %v2346
    %v3058 = vunpack.c.h.b16 %v2346
    %v3059 = vunpack.c.l.b16 %v2347
    %v3060 = vunpack.c.h.b16 %v2347
    %v3061 = vunpack.c.l.b16 %v2348
    %v3062 = vunpack.c.h.b16 %v2348
    %v3063 = vunpack.c.l.b16 %v2349
    %v3064 = vunpack.c.h.b16 %v2349
    %v3065 = vunpack.c.l.b16 %v2350
    %v3066 = vunpack.c.h.b16 %v2350
    %v3067 = vunpack.c.l.b16 %v2351
    %v3068 = vunpack.c.h.b16 %v2351
    %v3069 = vunpack.c.l.b16 %v2352
    %v3070 = vunpack.c.h.b16 %v2352
    %v3071 = vunpack.c.l.b16 %v2353
    %v3072 = vunpack.c.h.b16 %v2353
    %v3073 = vunpack.c.l.b16 %v2354
    %v3074 = vunpack.c.h.b16 %v2354
    %v3075 = vunpack.c.l.b16 %v2355
    %v3076 = vunpack.c.h.b16 %v2355
    %v3077 = vunpack.c.l.b16 %v2356
    %v3078 = vunpack.c.h.b16 %v2356
    %v3079 = vunpack.c.l.b16 %v2357
    %v3080 = vunpack.c.h.b16 %v2357
    %v3081 = vunpack.c.l.b16 %v2358
    %v3082 = vunpack.c.h.b16 %v2358
    %v3083 = vunpack.c.l.b16 %v2359
    %v3084 = vunpack.c.h.b16 %v2359
    %v3085 = vunpack.c.l.b16 %v2360
    %v3086 = vunpack.c.h.b16 %v2360
    %v3087 = vunpack.c.l.b16 %v2361
    %v3088 = vunpack.c.h.b16 %v2361
    %v3089 = vunpack.c.l.b16 %v2362
    %v3090 = vunpack.c.h.b16 %v2362
    %v3091 = vunpack.c.l.b16 %v2363
    %v3092 = vunpack.c.h.b16 %v2363
    %v3093 = vunpack.c.l.b16 %v2364
    %v3094 = vunpack.c.h.b16 %v2364
    %v3095 = vunpack.c.l.b16 %v2365
    %v3096 = vunpack.c.h.b16 %v2365
    %v3097 = vunpack.c.l.b16 %v2366
    %v3098 = vunpack.c.h.b16 %v2366
    %v3099 = vunpack.c.l.b16 %v2367
    %v3100 = vunpack.c.h.b16 %v2367
    %v3101 = vunpack.c.l.b16 %v2368
    %v3102 = vunpack.c.h.b16 %v2368
    %v3103 = vunpack.c.l.b16 %v2369
    %v3104 = vunpack.c.h.b16 %v2369
    %v3105 = vunpack.c.l.b16 %v2370
    %v3106 = vunpack.c.h.b16 %v2370
    %v3107 = vunpack.c.l.b16 %v2371
    %v3108 = vunpack.c.h.b16 %v2371
    %v3109 = vunpack.c.l.b16 %v2372
    %v3110 = vunpack.c.h.b16 %v2372
    %v3111 = vunpack.c.l.b16 %v2373
    %v3112 = vunpack.c.h.b16 %v2373
    %v3113 = vunpack.c.l.b16 %v2374
    %v3114 = vunpack.c.h.b16 %v2374
    %v3115 = vunpack.c.l.b16 %v2375
    %v3116 = vunpack.c.h.b16 %v2375
    %v3117 = vunpack.c.l.b16 %v2376
    %v3118 = vunpack.c.h.b16 %v2376
    %v3119 = vunpack.c.l.b16 %v2377
    %v3120 = vunpack.c.h.b16 %v2377
    %v3121 = vunpack.c.l.b16 %v2378
    %v3122 = vunpack.c.h.b16 %v2378
    %v3123 = vunpack.c.l.b16 %v2379
    %v3124 = vunpack.c.h.b16 %v2379
    %v3125 = vunpack.c.l.b16 %v2380
    %v3126 = vunpack.c.h.b16 %v2380
    %v3127 = vunpack.c.l.b16 %v2381
    %v3128 = vunpack.c.h.b16 %v2381
    %v3129 = vunpack.c.l.b16 %v2382
    %v3130 = vunpack.c.h.b16 %v2382
    %v3131 = vunpack.c.l.b16 %v2383
    %v3132 = vunpack.c.h.b16 %v2383
    %v3133 = vunpack.c.l.b16 %v2384
    %v3134 = vunpack.c.h.b16 %v2384
    %v3135 = vunpack.c.l.b16 %v2385
    %v3136 = vunpack.c.h.b16 %v2385
    %v3137 = vunpack.c.l.b16 %v2386
    %v3138 = vunpack.c.h.b16 %v2386
    %v3139 = vunpack.c.l.b16 %v2387
    %v3140 = vunpack.c.h.b16 %v2387
    %v3141 = vunpack.c.l.b16 %v2388
    %v3142 = vunpack.c.h.b16 %v2388
    %v3143 = vunpack.c.l.b16 %v2389
    %v3144 = vunpack.c.h.b16 %v2389
    %v3145 = vunpack.c.l.b16 %v2390
    %v3146 = vunpack.c.h.b16 %v2390
    %v3147 = vunpack.c.l.b16 %v2391
    %v3148 = vunpack.c.h.b16 %v2391
    %v3149 = vunpack.c.l.b16 %v2392
    %v3150 = vunpack.c.h.b16 %v2392
    %v3151 = vunpack.c.l.b16 %v2393
    %v3152 = vunpack.c.h.b16 %v2393
    %v3153 = vunpack.c.l.b16 %v2394
    %v3154 = vunpack.c.h.b16 %v2394
    %v3155 = vunpack.c.l.b16 %v2395
    %v3156 = vunpack.c.h.b16 %v2395
    %v3157 = vunpack.c.l.b16 %v2396
    %v3158 = vunpack.c.h.b16 %v2396
    %v3159 = vunpack.c.l.b16 %v2397
    %v3160 = vunpack.c.h.b16 %v2397
    %v3161 = vunpack.c.l.b16 %v2398
    %v3162 = vunpack.c.h.b16 %v2398
    %v3163 = vunpack.c.l.b16 %v2399
    %v3164 = vunpack.c.h.b16 %v2399
    %v3165 = vunpack.c.l.b16 %v2400
    %v3166 = vunpack.c.h.b16 %v2400
    %v3167 = vunpack.c.l.b16 %v2401
    %v3168 = vunpack.c.h.b16 %v2401
    %v3169 = vunpack.c.l.b16 %v2402
    %v3170 = vunpack.c.h.b16 %v2402
    %v3171 = vunpack.c.l.b16 %v2403
    %v3172 = vunpack.c.h.b16 %v2403
    %v3173 = vunpack.c.l.b16 %v2404
    %v3174 = vunpack.c.h.b16 %v2404
    %v3175 = vunpack.c.l.b16 %v2405
    %v3176 = vunpack.c.h.b16 %v2405
    %v3177 = vunpack.c.l.b16 %v2406
    %v3178 = vunpack.c.h.b16 %v2406
    %v3179 = vunpack.c.l.b16 %v2407
    %v3180 = vunpack.c.h.b16 %v2407
    %v3181 = vunpack.c.l.b16 %v2408
    %v3182 = vunpack.c.h.b16 %v2408
    %v3183 = vunpack.c.l.b16 %v2409
    %v3184 = vunpack.c.h.b16 %v2409
    %v3185 = vunpack.c.l.b16 %v2410
    %v3186 = vunpack.c.h.b16 %v2410
    %v3187 = vunpack.c.l.b16 %v2411
    %v3188 = vunpack.c.h.b16 %v2411
    %v3189 = vunpack.c.l.b16 %v2412
    %v3190 = vunpack.c.h.b16 %v2412
    %v3191 = vunpack.c.l.b16 %v2413
    %v3192 = vunpack.c.h.b16 %v2413
    %v3193 = vunpack.c.l.b16 %v2414
    %v3194 = vunpack.c.h.b16 %v2414
    %v3195 = vunpack.c.l.b16 %v2415
    %v3196 = vunpack.c.h.b16 %v2415
    %v3197 = vunpack.c.l.b16 %v2416
    %v3198 = vunpack.c.h.b16 %v2416
    %v3199 = vunpack.c.l.b16 %v2417
    %v3200 = vunpack.c.h.b16 %v2417
    %v3201 = vunpack.c.l.b16 %v2418
    %v3202 = vunpack.c.h.b16 %v2418
    %v3203 = vunpack.c.l.b16 %v2419
    %v3204 = vunpack.c.h.b16 %v2419
    %v3205 = vunpack.c.l.b16 %v2420
    %v3206 = vunpack.c.h.b16 %v2420
    %v3207 = vunpack.c.l.b16 %v2421
    %v3208 = vunpack.c.h.b16 %v2421
    %v3209 = vunpack.c.l.b16 %v2422
    %v3210 = vunpack.c.h.b16 %v2422
    %v3211 = vunpack.c.l.b16 %v2423
    %v3212 = vunpack.c.h.b16 %v2423
    %v3213 = vunpack.c.l.b16 %v2424
    %v3214 = vunpack.c.h.b16 %v2424
    %v3215 = vunpack.c.l.b16 %v2425
    %v3216 = vunpack.c.h.b16 %v2425
    %v3217 = vunpack.c.l.b16 %v2426
    %v3218 = vunpack.c.h.b16 %v2426
    %v3219 = vunpack.c.l.b16 %v2427
    %v3220 = vunpack.c.h.b16 %v2427
    %v3221 = vunpack.c.l.b16 %v2428
    %v3222 = vunpack.c.h.b16 %v2428
    %v3223 = vunpack.c.l.b16 %v2429
    %v3224 = vunpack.c.h.b16 %v2429
    %v3225 = vunpack.c.l.b16 %v2430
    %v3226 = vunpack.c.h.b16 %v2430
    %v3227 = vunpack.c.l.b16 %v2431
    %v3228 = vunpack.c.h.b16 %v2431
    %v3229 = vunpack.c.l.b16 %v2432
    %v3230 = vunpack.c.h.b16 %v2432
    %v3231 = vunpack.c.l.b16 %v2433
    %v3232 = vunpack.c.h.b16 %v2433
    %v3233 = vunpack.c.l.b16 %v2434
    %v3234 = vunpack.c.h.b16 %v2434
    %v3235 = vunpack.c.l.b16 %v2435
    %v3236 = vunpack.c.h.b16 %v2435
    %v3237 = vunpack.c.l.b16 %v2436
    %v3238 = vunpack.c.h.b16 %v2436
    %v3239 = vunpack.c.l.b16 %v2437
    %v3240 = vunpack.c.h.b16 %v2437
    %v3241 = vunpack.c.l.b16 %v2438
    %v3242 = vunpack.c.h.b16 %v2438
    %v3243 = vunpack.c.l.b16 %v2439
    %v3244 = vunpack.c.h.b16 %v2439
    %v3245 = vunpack.c.l.b16 %v2440
    %v3246 = vunpack.c.h.b16 %v2440
    %v3247 = vunpack.c.l.b16 %v2441
    %v3248 = vunpack.c.h.b16 %v2441
    %v3249 = vunpack.c.l.b16 %v2442
    %v3250 = vunpack.c.h.b16 %v2442
    %v3251 = vunpack.c.l.b16 %v2443
    %v3252 = vunpack.c.h.b16 %v2443
    %v3253 = vunpack.c.l.b16 %v2444
    %v3254 = vunpack.c.h.b16 %v2444
    %v3255 = vpack.c.b16 %v2751, %v2743
    %v3256 = vpack.c.b16 %v2752, %v2744
    %v3257 = vpack.c.b16 %v2753, %v2745
    %v3258 = vpack.c.b16 %v2754, %v2746
    %v3259 = vpack.c.b16 %v2755, %v2747
    %v3260 = vpack.c.b16 %v2756, %v2748
    %v3261 = vpack.c.b16 %v2757, %v2749
    %v3262 = vpack.c.b16 %v2758, %v2750
    %v3263 = vpack.c.b16 %v2767, %v2759
    %v3264 = vpack.c.b16 %v2768, %v2760
    %v3265 = vpack.c.b16 %v2769, %v2761
    %v3266 = vpack.c.b16 %v2770, %v2762
    %v3267 = vpack.c.b16 %v2771, %v2763
    %v3268 = vpack.c.b16 %v2772, %v2764
    %v3269 = vpack.c.b16 %v2773, %v2765
    %v3270 = vpack.c.b16 %v2774, %v2766
    %v3271 = vpack.c.b16 %v2783, %v2775
    %v3272 = vpack.c.b16 %v2784, %v2776
    %v3273 = vpack.c.b16 %v2785, %v2777
    %v3274 = vpack.c.b16 %v2786, %v2778
    %v3275 = vpack.c.b16 %v2787, %v2779
    %v3276 = vpack.c.b16 %v2788, %v2780
    %v3277 = vpack.c.b16 %v2789, %v2781
    %v3278 = vpack.c.b16 %v2790, %v2782
    %v3279 = vpack.c.b16 %v2799, %v2791
    %v3280 = vpack.c.b16 %v2800, %v2792
    %v3281 = vpack.c.b16 %v2801, %v2793
    %v3282 = vpack.c.b16 %v2802, %v2794
    %v3283 = vpack.c.b16 %v2803, %v2795
    %v3284 = vpack.c.b16 %v2804, %v2796
    %v3285 = vpack.c.b16 %v2805, %v2797
    %v3286 = vpack.c.b16 %v2806, %v2798
    %v3287 = vpack.c.b16 %v2815, %v2807
    %v3288 = vpack.c.b16 %v2816, %v2808
    %v3289 = vpack.c.b16 %v2817, %v2809
    %v3290 = vpack.c.b16 %v2818, %v2810
    %v3291 = vpack.c.b16 %v2819, %v2811
    %v3292 = vpack.c.b16 %v2820, %v2812
    %v3293 = vpack.c.b16 %v2821, %v2813
    %v3294 = vpack.c.b16 %v2822, %v2814
    %v3295 = vpack.c.b16 %v2831, %v2823
    %v3296 = vpack.c.b16 %v2832, %v2824
    %v3297 = vpack.c.b16 %v2833, %v2825
    %v3298 = vpack.c.b16 %v2834, %v2826
    %v3299 = vpack.c.b16 %v2835, %v2827
    %v3300 = vpack.c.b16 %v2836, %v2828
    %v3301 = vpack.c.b16 %v2837, %v2829
    %v3302 = vpack.c.b16 %v2838, %v2830
    %v3303 = vpack.c.b16 %v2847, %v2839
    %v3304 = vpack.c.b16 %v2848, %v2840
    %v3305 = vpack.c.b16 %v2849, %v2841
    %v3306 = vpack.c.b16 %v2850, %v2842
    %v3307 = vpack.c.b16 %v2851, %v2843
    %v3308 = vpack.c.b16 %v2852, %v2844
    %v3309 = vpack.c.b16 %v2853, %v2845
    %v3310 = vpack.c.b16 %v2854, %v2846
    %v3311 = vpack.c.b16 %v2863, %v2855
    %v3312 = vpack.c.b16 %v2864, %v2856
    %v3313 = vpack.c.b16 %v2865, %v2857
    %v3314 = vpack.c.b16 %v2866, %v2858
    %v3315 = vpack.c.b16 %v2867, %v2859
    %v3316 = vpack.c.b16 %v2868, %v2860
    %v3317 = vpack.c.b16 %v2869, %v2861
    %v3318 = vpack.c.b16 %v2870, %v2862
    %v3319 = vpack.c.b16 %v2879, %v2871
    %v3320 = vpack.c.b16 %v2880, %v2872
    %v3321 = vpack.c.b16 %v2881, %v2873
    %v3322 = vpack.c.b16 %v2882, %v2874
    %v3323 = vpack.c.b16 %v2883, %v2875
    %v3324 = vpack.c.b16 %v2884, %v2876
    %v3325 = vpack.c.b16 %v2885, %v2877
    %v3326 = vpack.c.b16 %v2886, %v2878
    %v3327 = vpack.c.b16 %v2895, %v2887
    %v3328 = vpack.c.b16 %v2896, %v2888
    %v3329 = vpack.c.b16 %v2897, %v2889
    %v3330 = vpack.c.b16 %v2898, %v2890
    %v3331 = vpack.c.b16 %v2899, %v2891
    %v3332 = vpack.c.b16 %v2900, %v2892
    %v3333 = vpack.c.b16 %v2901, %v2893
    %v3334 = vpack.c.b16 %v2902, %v2894
    %v3335 = vpack.c.b16 %v2911, %v2903
    %v3336 = vpack.c.b16 %v2912, %v2904
    %v3337 = vpack.c.b16 %v2913, %v2905
    %v3338 = vpack.c.b16 %v2914, %v2906
    %v3339 = vpack.c.b16 %v2915, %v2907
    %v3340 = vpack.c.b16 %v2916, %v2908
    %v3341 = vpack.c.b16 %v2917, %v2909
    %v3342 = vpack.c.b16 %v2918, %v2910
    %v3343 = vpack.c.b16 %v2927, %v2919
    %v3344 = vpack.c.b16 %v2928, %v2920
    %v3345 = vpack.c.b16 %v2929, %v2921
    %v3346 = vpack.c.b16 %v2930, %v2922
    %v3347 = vpack.c.b16 %v2931, %v2923
    %v3348 = vpack.c.b16 %v2932, %v2924
    %v3349 = vpack.c.b16 %v2933, %v2925
    %v3350 = vpack.c.b16 %v2934, %v2926
    %v3351 = vpack.c.b16 %v2943, %v2935
    %v3352 = vpack.c.b16 %v2944, %v2936
    %v3353 = vpack.c.b16 %v2945, %v2937
    %v3354 = vpack.c.b16 %v2946, %v2938
    %v3355 = vpack.c.b16 %v2947, %v2939
    %v3356 = vpack.c.b16 %v2948, %v2940
    %v3357 = vpack.c.b16 %v2949, %v2941
    %v3358 = vpack.c.b16 %v2950, %v2942
    %v3359 = vpack.c.b16 %v2959, %v2951
    %v3360 = vpack.c.b16 %v2960, %v2952
    %v3361 = vpack.c.b16 %v2961, %v2953
    %v3362 = vpack.c.b16 %v2962, %v2954
    %v3363 = vpack.c.b16 %v2963, %v2955
    %v3364 = vpack.c.b16 %v2964, %v2956
    %v3365 = vpack.c.b16 %v2965, %v2957
    %v3366 = vpack.c.b16 %v2966, %v2958
    %v3367 = vpack.c.b16 %v2975, %v2967
    %v3368 = vpack.c.b16 %v2976, %v2968
    %v3369 = vpack.c.b16 %v2977, %v2969
    %v3370 = vpack.c.b16 %v2978, %v2970
    %v3371 = vpack.c.b16 %v2979, %v2971
    %v3372 = vpack.c.b16 %v2980, %v2972
    %v3373 = vpack.c.b16 %v2981, %v2973
    %v3374 = vpack.c.b16 %v2982, %v2974
    %v3375 = vpack.c.b16 %v2991, %v2983
    %v3376 = vpack.c.b16 %v2992, %v2984
    %v3377 = vpack.c.b16 %v2993, %v2985
    %v3378 = vpack.c.b16 %v2994, %v2986
    %v3379 = vpack.c.b16 %v2995, %v2987
    %v3380 = vpack.c.b16 %v2996, %v2988
    %v3381 = vpack.c.b16 %v2997, %v2989
    %v3382 = vpack.c.b16 %v2998, %v2990
    %v3383 = vpack.c.b16 %v3007, %v2999
    %v3384 = vpack.c.b16 %v3008, %v3000
    %v3385 = vpack.c.b16 %v3009, %v3001
    %v3386 = vpack.c.b16 %v3010, %v3002
    %v3387 = vpack.c.b16 %v3011, %v3003
    %v3388 = vpack.c.b16 %v3012, %v3004
    %v3389 = vpack.c.b16 %v3013, %v3005
    %v3390 = vpack.c.b16 %v3014, %v3006
    %v3391 = vpack.c.b16 %v3023, %v3015
    %v3392 = vpack.c.b16 %v3024, %v3016
    %v3393 = vpack.c.b16 %v3025, %v3017
    %v3394 = vpack.c.b16 %v3026, %v3018
    %v3395 = vpack.c.b16 %v3027, %v3019
    %v3396 = vpack.c.b16 %v3028, %v3020
    %v3397 = vpack.c.b16 %v3029, %v3021
    %v3398 = vpack.c.b16 %v3030, %v3022
    %v3399 = vpack.c.b16 %v3039, %v3031
    %v3400 = vpack.c.b16 %v3040, %v3032
    %v3401 = vpack.c.b16 %v3041, %v3033
    %v3402 = vpack.c.b16 %v3042, %v3034
    %v3403 = vpack.c.b16 %v3043, %v3035
    %v3404 = vpack.c.b16 %v3044, %v3036
    %v3405 = vpack.c.b16 %v3045, %v3037
    %v3406 = vpack.c.b16 %v3046, %v3038
    %v3407 = vpack.c.b16 %v3055, %v3047
    %v3408 = vpack.c.b16 %v3056, %v3048
    %v3409 = vpack.c.b16 %v3057, %v3049
    %v3410 = vpack.c.b16 %v3058, %v3050
    %v3411 = vpack.c.b16 %v3059, %v3051
    %v3412 = vpack.c.b16 %v3060, %v3052
    %v3413 = vpack.c.b16 %v3061, %v3053
    %v3414 = vpack.c.b16 %v3062, %v3054
    %v3415 = vpack.c.b16 %v3071, %v3063
    %v3416 = vpack.c.b16 %v3072, %v3064
    %v3417 = vpack.c.b16 %v3073, %v3065
    %v3418 = vpack.c.b16 %v3074, %v3066
    %v3419 = vpack.c.b16 %v3075, %v3067
    %v3420 = vpack.c.b16 %v3076, %v3068
    %v3421 = vpack.c.b16 %v3077, %v3069
    %v3422 = vpack.c.b16 %v3078, %v3070
    %v3423 = vpack.c.b16 %v3087, %v3079
    %v3424 = vpack.c.b16 %v3088, %v3080
    %v3425 = vpack.c.b16 %v3089, %v3081
    %v3426 = vpack.c.b16 %v3090, %v3082
    %v3427 = vpack.c.b16 %v3091, %v3083
    %v3428 = vpack.c.b16 %v3092, %v3084
    %v3429 = vpack.c.b16 %v3093, %v3085
    %v3430 = vpack.c.b16 %v3094, %v3086
    %v3431 = vpack.c.b16 %v3103, %v3095
    %v3432 = vpack.c.b16 %v3104, %v3096
    %v3433 = vpack.c.b16 %v3105, %v3097
    %v3434 = vpack.c.b16 %v3106, %v3098
    %v3435 = vpack.c.b16 %v3107, %v3099
    %v3436 = vpack.c.b16 %v3108, %v3100
    %v3437 = vpack.c.b16 %v3109, %v3101
    %v3438 = vpack.c.b16 %v3110, %v3102
    %v3439 = vpack.c.b16 %v3119, %v3111
    %v3440 = vpack.c.b16 %v3120, %v3112
    %v3441 = vpack.c.b16 %v3121, %v3113
    %v3442 = vpack.c.b16 %v3122, %v3114
    %v3443 = vpack.c.b16 %v3123, %v3115
    %v3444 = vpack.c.b16 %v3124, %v3116
    %v3445 = vpack.c.b16 %v3125, %v3117
    %v3446 = vpack.c.b16 %v3126, %v3118
    %v3447 = vpack.c.b16 %v3135, %v3127
    %v3448 = vpack.c.b16 %v3136, %v3128
    %v3449 = vpack.c.b16 %v3137, %v3129
    %v3450 = vpack.c.b16 %v3138, %v3130
    %v3451 = vpack.c.b16 %v3139, %v3131
    %v3452 = vpack.c.b16 %v3140, %v3132
    %v3453 = vpack.c.b16 %v3141, %v3133
    %v3454 = vpack.c.b16 %v3142, %v3134
    %v3455 = vpack.c.b16 %v3151, %v3143
    %v3456 = vpack.c.b16 %v3152, %v3144
    %v3457 = vpack.c.b16 %v3153, %v3145
    %v3458 = vpack.c.b16 %v3154, %v3146
    %v3459 = vpack.c.b16 %v3155, %v3147
    %v3460 = vpack.c.b16 %v3156, %v3148
    %v3461 = vpack.c.b16 %v3157, %v3149
    %v3462 = vpack.c.b16 %v3158, %v3150
    %v3463 = vpack.c.b16 %v3167, %v3159
    %v3464 = vpack.c.b16 %v3168, %v3160
    %v3465 = vpack.c.b16 %v3169, %v3161
    %v3466 = vpack.c.b16 %v3170, %v3162
    %v3467 = vpack.c.b16 %v3171, %v3163
    %v3468 = vpack.c.b16 %v3172, %v3164
    %v3469 = vpack.c.b16 %v3173, %v3165
    %v3470 = vpack.c.b16 %v3174, %v3166
    %v3471 = vpack.c.b16 %v3183, %v3175
    %v3472 = vpack.c.b16 %v3184, %v3176
    %v3473 = vpack.c.b16 %v3185, %v3177
    %v3474 = vpack.c.b16 %v3186, %v3178
    %v3475 = vpack.c.b16 %v3187, %v3179
    %v3476 = vpack.c.b16 %v3188, %v3180
    %v3477 = vpack.c.b16 %v3189, %v3181
    %v3478 = vpack.c.b16 %v3190, %v3182
    %v3479 = vpack.c.b16 %v3199, %v3191
    %v3480 = vpack.c.b16 %v3200, %v3192
    %v3481 = vpack.c.b16 %v3201, %v3193
    %v3482 = vpack.c.b16 %v3202, %v3194
    %v3483 = vpack.c.b16 %v3203, %v3195
    %v3484 = vpack.c.b16 %v3204, %v3196
    %v3485 = vpack.c.b16 %v3205, %v3197
    %v3486 = vpack.c.b16 %v3206, %v3198
    %v3487 = vpack.c.b16 %v3215, %v3207
    %v3488 = vpack.c.b16 %v3216, %v3208
    %v3489 = vpack.c.b16 %v3217, %v3209
    %v3490 = vpack.c.b16 %v3218, %v3210
    %v3491 = vpack.c.b16 %v3219, %v3211
    %v3492 = vpack.c.b16 %v3220, %v3212
    %v3493 = vpack.c.b16 %v3221, %v3213
    %v3494 = vpack.c.b16 %v3222, %v3214
    %v3495 = vpack.c.b16 %v3231, %v3223
    %v3496 = vpack.c.b16 %v3232, %v3224
    %v3497 = vpack.c.b16 %v3233, %v3225
    %v3498 = vpack.c.b16 %v3234, %v3226
    %v3499 = vpack.c.b16 %v3235, %v3227
    %v3500 = vpack.c.b16 %v3236, %v3228
    %v3501 = vpack.c.b16 %v3237, %v3229
    %v3502 = vpack.c.b16 %v3238, %v3230
    %v3503 = vpack.c.b16 %v3247, %v3239
    %v3504 = vpack.c.b16 %v3248, %v3240
    %v3505 = vpack.c.b16 %v3249, %v3241
    %v3506 = vpack.c.b16 %v3250, %v3242
    %v3507 = vpack.c.b16 %v3251, %v3243
    %v3508 = vpack.c.b16 %v3252, %v3244
    %v3509 = vpack.c.b16 %v3253, %v3245
    %v3510 = vpack.c.b16 %v3254, %v3246
    %3767 = vmatprep.subr.bf16.mxu0 %v3256
    %3768 = vmatpush1.bf16.msra.mxu0 %v3255
    %3769 = vmatprep.subr.bf16.mxu0 %v3264
    %3770 = vmatpush1.bf16.msra.mxu0 %v3263
    %3771 = vmatprep.subr.bf16.mxu0 %v3272
    %3772 = vmatpush1.bf16.msra.mxu0 %v3271
    %3773 = vmatprep.subr.bf16.mxu0 %v3280
    %3774 = vmatpush1.bf16.msra.mxu0 %v3279
    %3775 = vmatprep.subr.bf16.mxu0 %v3288
    %3776 = vmatpush1.bf16.msra.mxu0 %v3287
    %3777 = vmatprep.subr.bf16.mxu0 %v3296
    %3778 = vmatpush1.bf16.msra.mxu0 %v3295
    %3779 = vmatprep.subr.bf16.mxu0 %v3304
    %3780 = vmatpush1.bf16.msra.mxu0 %v3303
    %3781 = vmatprep.subr.bf16.mxu0 %v3312
    %3782 = vmatpush1.bf16.msra.mxu0 %v3311
    %3783 = vmatprep.subr.bf16.mxu0 %v3320
    %3784 = vmatpush1.bf16.msra.mxu0 %v3319
    %3785 = vmatprep.subr.bf16.mxu0 %v3328
    %3786 = vmatpush1.bf16.msra.mxu0 %v3327
    %3787 = vmatprep.subr.bf16.mxu0 %v3336
    %3788 = vmatpush1.bf16.msra.mxu0 %v3335
    %3789 = vmatprep.subr.bf16.mxu0 %v3344
    %3790 = vmatpush1.bf16.msra.mxu0 %v3343
    %3791 = vmatprep.subr.bf16.mxu0 %v3352
    %3792 = vmatpush1.bf16.msra.mxu0 %v3351
    %3793 = vmatprep.subr.bf16.mxu0 %v3360
    %3794 = vmatpush1.bf16.msra.mxu0 %v3359
    %3795 = vmatprep.subr.bf16.mxu0 %v3368
    %3796 = vmatpush1.bf16.msra.mxu0 %v3367
    %3797 = vmatprep.subr.bf16.mxu0 %v3376
    %3798 = vmatpush1.bf16.msra.mxu0 %v3375
    %3799 = vmatprep.mubr.bf16.mxu0 %v2186
    %3800 = vmatmul.mubr.bf16.gmra.mrb[0].mxu0 %v2185
    %v3801 = vpop.f32.mrb[0].mxu0
    %v3802 = vadd.f32 %v2450, %v3801
    %v3803 = vpop.f32.mrb[0].mxu0
    %v3804 = vadd.f32 %v2454, %v3803
    %v3805 = vpop.f32.mrb[0].mxu0
    %v3806 = vpop.f32.mrb[0].mxu0
    %3807 = vdwg.mxu0
    %3808 = vmatprep.subr.bf16.mxu0 %v3384
    %3809 = vmatpush1.bf16.msra.mxu0 %v3383
    %3810 = vmatprep.subr.bf16.mxu0 %v3392
    %3811 = vmatpush1.bf16.msra.mxu0 %v3391
    %3812 = vmatprep.subr.bf16.mxu0 %v3400
    %3813 = vmatpush1.bf16.msra.mxu0 %v3399
    %3814 = vmatprep.subr.bf16.mxu0 %v3408
    %3815 = vmatpush1.bf16.msra.mxu0 %v3407
    %3816 = vmatprep.subr.bf16.mxu0 %v3416
    %3817 = vmatpush1.bf16.msra.mxu0 %v3415
    %3818 = vmatprep.subr.bf16.mxu0 %v3424
    %3819 = vmatpush1.bf16.msra.mxu0 %v3423
    %3820 = vmatprep.subr.bf16.mxu0 %v3432
    %3821 = vmatpush1.bf16.msra.mxu0 %v3431
    %3822 = vmatprep.subr.bf16.mxu0 %v3440
    %3823 = vmatpush1.bf16.msra.mxu0 %v3439
    %3824 = vmatprep.subr.bf16.mxu0 %v3448
    %3825 = vmatpush1.bf16.msra.mxu0 %v3447
    %3826 = vmatprep.subr.bf16.mxu0 %v3456
    %3827 = vmatpush1.bf16.msra.mxu0 %v3455
    %3828 = vmatprep.subr.bf16.mxu0 %v3464
    %3829 = vmatpush1.bf16.msra.mxu0 %v3463
    %3830 = vmatprep.subr.bf16.mxu0 %v3472
    %3831 = vmatpush1.bf16.msra.mxu0 %v3471
    %3832 = vmatprep.subr.bf16.mxu0 %v3480
    %3833 = vmatpush1.bf16.msra.mxu0 %v3479
    %3834 = vmatprep.subr.bf16.mxu0 %v3488
    %3835 = vmatpush1.bf16.msra.mxu0 %v3487
    %3836 = vmatprep.subr.bf16.mxu0 %v3496
    %3837 = vmatpush1.bf16.msra.mxu0 %v3495
    %3838 = vmatprep.subr.bf16.mxu0 %v3504
    %3839 = vmatpush1.bf16.msra.mxu0 %v3503
    %3840 = vmatprep.mubr.bf16.mxu0 %v2188
    %3841 = vmatmul.mubr.bf16.gmra.mrb[0].mxu0 %v2187
    %v3842 = vpop.f32.mrb[0].mxu0
    %v3843 = vadd.f32 %v3802, %v3842
    %v3844 = vpop.f32.mrb[0].mxu0
    %v3845 = vadd.f32 %v3804, %v3844
    %v3846 = vpop.f32.mrb[0].mxu0
    %v3847 = vpop.f32.mrb[0].mxu0
    %3848 = vdwg.mxu0
    %3849 = vmatprep.subr.bf16.mxu0 %v3258
    %3850 = vmatpush1.bf16.msra.mxu0 %v3257
    %3851 = vmatprep.subr.bf16.mxu0 %v3266
    %3852 = vmatpush1.bf16.msra.mxu0 %v3265
    %3853 = vmatprep.subr.bf16.mxu0 %v3274
    %3854 = vmatpush1.bf16.msra.mxu0 %v3273
    %3855 = vmatprep.subr.bf16.mxu0 %v3282
    %3856 = vmatpush1.bf16.msra.mxu0 %v3281
    %3857 = vmatprep.subr.bf16.mxu0 %v3290
    %3858 = vmatpush1.bf16.msra.mxu0 %v3289
    %3859 = vmatprep.subr.bf16.mxu0 %v3298
    %3860 = vmatpush1.bf16.msra.mxu0 %v3297
    %3861 = vmatprep.subr.bf16.mxu0 %v3306
    %3862 = vmatpush1.bf16.msra.mxu0 %v3305
    %3863 = vmatprep.subr.bf16.mxu0 %v3314
    %3864 = vmatpush1.bf16.msra.mxu0 %v3313
    %3865 = vmatprep.subr.bf16.mxu0 %v3322
    %3866 = vmatpush1.bf16.msra.mxu0 %v3321
    %3867 = vmatprep.subr.bf16.mxu0 %v3330
    %3868 = vmatpush1.bf16.msra.mxu0 %v3329
    %3869 = vmatprep.subr.bf16.mxu0 %v3338
    %3870 = vmatpush1.bf16.msra.mxu0 %v3337
    %3871 = vmatprep.subr.bf16.mxu0 %v3346
    %3872 = vmatpush1.bf16.msra.mxu0 %v3345
    %3873 = vmatprep.subr.bf16.mxu0 %v3354
    %3874 = vmatpush1.bf16.msra.mxu0 %v3353
    %3875 = vmatprep.subr.bf16.mxu0 %v3362
    %3876 = vmatpush1.bf16.msra.mxu0 %v3361
    %3877 = vmatprep.subr.bf16.mxu0 %v3370
    %3878 = vmatpush1.bf16.msra.mxu0 %v3369
    %3879 = vmatprep.subr.bf16.mxu0 %v3378
    %3880 = vmatpush1.bf16.msra.mxu0 %v3377
    %3881 = vmatprep.mubr.bf16.mxu0 %v2186
    %3882 = vmatmul.mubr.bf16.gmra.mrb[0].mxu0 %v2185
    %v3883 = vpop.f32.mrb[0].mxu0
    %v3884 = vadd.f32 %v2458, %v3883
    %v3885 = vpop.f32.mrb[0].mxu0
    %v3886 = vadd.f32 %v2462, %v3885
    %v3887 = vpop.f32.mrb[0].mxu0
    %v3888 = vpop.f32.mrb[0].mxu0
    %3889 = vdwg.mxu0
    %3890 = vmatprep.subr.bf16.mxu0 %v3386
    %3891 = vmatpush1.bf16.msra.mxu0 %v3385
    %3892 = vmatprep.subr.bf16.mxu0 %v3394
    %3893 = vmatpush1.bf16.msra.mxu0 %v3393
    %3894 = vmatprep.subr.bf16.mxu0 %v3402
    %3895 = vmatpush1.bf16.msra.mxu0 %v3401
    %3896 = vmatprep.subr.bf16.mxu0 %v3410
    %3897 = vmatpush1.bf16.msra.mxu0 %v3409
    %3898 = vmatprep.subr.bf16.mxu0 %v3418
    %3899 = vmatpush1.bf16.msra.mxu0 %v3417
    %3900 = vmatprep.subr.bf16.mxu0 %v3426
    %3901 = vmatpush1.bf16.msra.mxu0 %v3425
    %3902 = vmatprep.subr.bf16.mxu0 %v3434
    %3903 = vmatpush1.bf16.msra.mxu0 %v3433
    %3904 = vmatprep.subr.bf16.mxu0 %v3442
    %3905 = vmatpush1.bf16.msra.mxu0 %v3441
    %3906 = vmatprep.subr.bf16.mxu0 %v3450
    %3907 = vmatpush1.bf16.msra.mxu0 %v3449
    %3908 = vmatprep.subr.bf16.mxu0 %v3458
    %3909 = vmatpush1.bf16.msra.mxu0 %v3457
    %3910 = vmatprep.subr.bf16.mxu0 %v3466
    %3911 = vmatpush1.bf16.msra.mxu0 %v3465
    %3912 = vmatprep.subr.bf16.mxu0 %v3474
    %3913 = vmatpush1.bf16.msra.mxu0 %v3473
    %3914 = vmatprep.subr.bf16.mxu0 %v3482
    %3915 = vmatpush1.bf16.msra.mxu0 %v3481
    %3916 = vmatprep.subr.bf16.mxu0 %v3490
    %3917 = vmatpush1.bf16.msra.mxu0 %v3489
    %3918 = vmatprep.subr.bf16.mxu0 %v3498
    %3919 = vmatpush1.bf16.msra.mxu0 %v3497
    %3920 = vmatprep.subr.bf16.mxu0 %v3506
    %3921 = vmatpush1.bf16.msra.mxu0 %v3505
    %3922 = vmatprep.mubr.bf16.mxu0 %v2188
    %3923 = vmatmul.mubr.bf16.gmra.mrb[0].mxu0 %v2187
    %v3924 = vpop.f32.mrb[0].mxu0
    %v3925 = vadd.f32 %v3884, %v3924
    %v3926 = vpop.f32.mrb[0].mxu0
    %v3927 = vadd.f32 %v3886, %v3926
    %v3928 = vpop.f32.mrb[0].mxu0
    %v3929 = vpop.f32.mrb[0].mxu0
    %3930 = vdwg.mxu0
    %3931 = vmatprep.subr.bf16.mxu0 %v3260
    %3932 = vmatpush1.bf16.msra.mxu0 %v3259
    %3933 = vmatprep.subr.bf16.mxu0 %v3268
    %3934 = vmatpush1.bf16.msra.mxu0 %v3267
    %3935 = vmatprep.subr.bf16.mxu0 %v3276
    %3936 = vmatpush1.bf16.msra.mxu0 %v3275
    %3937 = vmatprep.subr.bf16.mxu0 %v3284
    %3938 = vmatpush1.bf16.msra.mxu0 %v3283
    %3939 = vmatprep.subr.bf16.mxu0 %v3292
    %3940 = vmatpush1.bf16.msra.mxu0 %v3291
    %3941 = vmatprep.subr.bf16.mxu0 %v3300
    %3942 = vmatpush1.bf16.msra.mxu0 %v3299
    %3943 = vmatprep.subr.bf16.mxu0 %v3308
    %3944 = vmatpush1.bf16.msra.mxu0 %v3307
    %3945 = vmatprep.subr.bf16.mxu0 %v3316
    %3946 = vmatpush1.bf16.msra.mxu0 %v3315
    %3947 = vmatprep.subr.bf16.mxu0 %v3324
    %3948 = vmatpush1.bf16.msra.mxu0 %v3323
    %3949 = vmatprep.subr.bf16.mxu0 %v3332
    %3950 = vmatpush1.bf16.msra.mxu0 %v3331
    %3951 = vmatprep.subr.bf16.mxu0 %v3340
    %3952 = vmatpush1.bf16.msra.mxu0 %v3339
    %3953 = vmatprep.subr.bf16.mxu0 %v3348
    %3954 = vmatpush1.bf16.msra.mxu0 %v3347
    %3955 = vmatprep.subr.bf16.mxu0 %v3356
    %3956 = vmatpush1.bf16.msra.mxu0 %v3355
    %3957 = vmatprep.subr.bf16.mxu0 %v3364
    %3958 = vmatpush1.bf16.msra.mxu0 %v3363
    %3959 = vmatprep.subr.bf16.mxu0 %v3372
    %3960 = vmatpush1.bf16.msra.mxu0 %v3371
    %3961 = vmatprep.subr.bf16.mxu0 %v3380
    %3962 = vmatpush1.bf16.msra.mxu0 %v3379
    %3963 = vmatprep.mubr.bf16.mxu0 %v2186
    %3964 = vmatmul.mubr.bf16.gmra.mrb[0].mxu0 %v2185
    %v3965 = vpop.f32.mrb[0].mxu0
    %v3966 = vadd.f32 %v2466, %v3965
    %v3967 = vpop.f32.mrb[0].mxu0
    %v3968 = vadd.f32 %v2470, %v3967
    %v3969 = vpop.f32.mrb[0].mxu0
    %v3970 = vpop.f32.mrb[0].mxu0
    %3971 = vdwg.mxu0
    %3972 = vmatprep.subr.bf16.mxu0 %v3388
    %3973 = vmatpush1.bf16.msra.mxu0 %v3387
    %3974 = vmatprep.subr.bf16.mxu0 %v3396
    %3975 = vmatpush1.bf16.msra.mxu0 %v3395
    %3976 = vmatprep.subr.bf16.mxu0 %v3404
    %3977 = vmatpush1.bf16.msra.mxu0 %v3403
    %3978 = vmatprep.subr.bf16.mxu0 %v3412
    %3979 = vmatpush1.bf16.msra.mxu0 %v3411
    %3980 = vmatprep.subr.bf16.mxu0 %v3420
    %3981 = vmatpush1.bf16.msra.mxu0 %v3419
    %3982 = vmatprep.subr.bf16.mxu0 %v3428
    %3983 = vmatpush1.bf16.msra.mxu0 %v3427
    %3984 = vmatprep.subr.bf16.mxu0 %v3436
    %3985 = vmatpush1.bf16.msra.mxu0 %v3435
    %3986 = vmatprep.subr.bf16.mxu0 %v3444
    %3987 = vmatpush1.bf16.msra.mxu0 %v3443
    %3988 = vmatprep.subr.bf16.mxu0 %v3452
    %3989 = vmatpush1.bf16.msra.mxu0 %v3451
    %3990 = vmatprep.subr.bf16.mxu0 %v3460
    %3991 = vmatpush1.bf16.msra.mxu0 %v3459
    %3992 = vmatprep.subr.bf16.mxu0 %v3468
    %3993 = vmatpush1.bf16.msra.mxu0 %v3467
    %3994 = vmatprep.subr.bf16.mxu0 %v3476
    %3995 = vmatpush1.bf16.msra.mxu0 %v3475
    %3996 = vmatprep.subr.bf16.mxu0 %v3484
    %3997 = vmatpush1.bf16.msra.mxu0 %v3483
    %3998 = vmatprep.subr.bf16.mxu0 %v3492
    %3999 = vmatpush1.bf16.msra.mxu0 %v3491
    %4000 = vmatprep.subr.bf16.mxu0 %v3500
    %4001 = vmatpush1.bf16.msra.mxu0 %v3499
    %4002 = vmatprep.subr.bf16.mxu0 %v3508
    %4003 = vmatpush1.bf16.msra.mxu0 %v3507
    %4004 = vmatprep.mubr.bf16.mxu0 %v2188
    %4005 = vmatmul.mubr.bf16.gmra.mrb[0].mxu0 %v2187
    %v4006 = vpop.f32.mrb[0].mxu0
    %v4007 = vadd.f32 %v3966, %v4006
    %v4008 = vpop.f32.mrb[0].mxu0
    %v4009 = vadd.f32 %v3968, %v4008
    %v4010 = vpop.f32.mrb[0].mxu0
    %v4011 = vpop.f32.mrb[0].mxu0
    %4012 = vdwg.mxu0
    %4013 = vmatprep.subr.bf16.mxu0 %v3262
    %4014 = vmatpush1.bf16.msra.mxu0 %v3261
    %4015 = vmatprep.subr.bf16.mxu0 %v3270
    %4016 = vmatpush1.bf16.msra.mxu0 %v3269
    %4017 = vmatprep.subr.bf16.mxu0 %v3278
    %4018 = vmatpush1.bf16.msra.mxu0 %v3277
    %4019 = vmatprep.subr.bf16.mxu0 %v3286
    %4020 = vmatpush1.bf16.msra.mxu0 %v3285
    %4021 = vmatprep.subr.bf16.mxu0 %v3294
    %4022 = vmatpush1.bf16.msra.mxu0 %v3293
    %4023 = vmatprep.subr.bf16.mxu0 %v3302
    %4024 = vmatpush1.bf16.msra.mxu0 %v3301
    %4025 = vmatprep.subr.bf16.mxu0 %v3310
    %4026 = vmatpush1.bf16.msra.mxu0 %v3309
    %4027 = vmatprep.subr.bf16.mxu0 %v3318
    %4028 = vmatpush1.bf16.msra.mxu0 %v3317
    %4029 = vmatprep.subr.bf16.mxu0 %v3326
    %4030 = vmatpush1.bf16.msra.mxu0 %v3325
    %4031 = vmatprep.subr.bf16.mxu0 %v3334
    %4032 = vmatpush1.bf16.msra.mxu0 %v3333
    %4033 = vmatprep.subr.bf16.mxu0 %v3342
    %4034 = vmatpush1.bf16.msra.mxu0 %v3341
    %4035 = vmatprep.subr.bf16.mxu0 %v3350
    %4036 = vmatpush1.bf16.msra.mxu0 %v3349
    %4037 = vmatprep.subr.bf16.mxu0 %v3358
    %4038 = vmatpush1.bf16.msra.mxu0 %v3357
    %4039 = vmatprep.subr.bf16.mxu0 %v3366
    %4040 = vmatpush1.bf16.msra.mxu0 %v3365
    %4041 = vmatprep.subr.bf16.mxu0 %v3374
    %4042 = vmatpush1.bf16.msra.mxu0 %v3373
    %4043 = vmatprep.subr.bf16.mxu0 %v3382
    %4044 = vmatpush1.bf16.msra.mxu0 %v3381
    %4045 = vmatprep.mubr.bf16.mxu0 %v2186
    %4046 = vmatmul.mubr.bf16.gmra.mrb[0].mxu0 %v2185
    %v4047 = vpop.f32.mrb[0].mxu0
    %v4048 = vadd.f32 %v2474, %v4047
    %v4049 = vpop.f32.mrb[0].mxu0
    %v4050 = vadd.f32 %v2478, %v4049
    %v4051 = vpop.f32.mrb[0].mxu0
    %v4052 = vpop.f32.mrb[0].mxu0
    %4053 = vdwg.mxu0
    %4054 = vmatprep.subr.bf16.mxu0 %v3390
    %4055 = vmatpush1.bf16.msra.mxu0 %v3389
    %4056 = vmatprep.subr.bf16.mxu0 %v3398
    %4057 = vmatpush1.bf16.msra.mxu0 %v3397
    %4058 = vmatprep.subr.bf16.mxu0 %v3406
    %4059 = vmatpush1.bf16.msra.mxu0 %v3405
    %4060 = vmatprep.subr.bf16.mxu0 %v3414
    %4061 = vmatpush1.bf16.msra.mxu0 %v3413
    %4062 = vmatprep.subr.bf16.mxu0 %v3422
    %4063 = vmatpush1.bf16.msra.mxu0 %v3421
    %4064 = vmatprep.subr.bf16.mxu0 %v3430
    %4065 = vmatpush1.bf16.msra.mxu0 %v3429
    %4066 = vmatprep.subr.bf16.mxu0 %v3438
    %4067 = vmatpush1.bf16.msra.mxu0 %v3437
    %4068 = vmatprep.subr.bf16.mxu0 %v3446
    %4069 = vmatpush1.bf16.msra.mxu0 %v3445
    %4070 = vmatprep.subr.bf16.mxu0 %v3454
    %4071 = vmatpush1.bf16.msra.mxu0 %v3453
    %4072 = vmatprep.subr.bf16.mxu0 %v3462
    %4073 = vmatpush1.bf16.msra.mxu0 %v3461
    %4074 = vmatprep.subr.bf16.mxu0 %v3470
    %4075 = vmatpush1.bf16.msra.mxu0 %v3469
    %4076 = vmatprep.subr.bf16.mxu0 %v3478
    %4077 = vmatpush1.bf16.msra.mxu0 %v3477
    %4078 = vmatprep.subr.bf16.mxu0 %v3486
    %4079 = vmatpush1.bf16.msra.mxu0 %v3485
    %4080 = vmatprep.subr.bf16.mxu0 %v3494
    %4081 = vmatpush1.bf16.msra.mxu0 %v3493
    %4082 = vmatprep.subr.bf16.mxu0 %v3502
    %4083 = vmatpush1.bf16.msra.mxu0 %v3501
    %4084 = vmatprep.subr.bf16.mxu0 %v3510
    %4085 = vmatpush1.bf16.msra.mxu0 %v3509
    %4086 = vmatprep.mubr.bf16.mxu0 %v2188
    %4087 = vmatmul.mubr.bf16.gmra.mrb[0].mxu0 %v2187
    %v4088 = vpop.f32.mrb[0].mxu0
    %v4089 = vadd.f32 %v4048, %v4088
    %v4090 = vpop.f32.mrb[0].mxu0
    %v4091 = vadd.f32 %v4050, %v4090
    %v4092 = vpop.f32.mrb[0].mxu0
    %v4093 = vpop.f32.mrb[0].mxu0
    %4094 = vdwg.mxu0
    %v4095 = vmax.f32 %v3843, 0.0
    %v4096 = vmax.f32 %v3845, 0.0
    %v4097 = vmax.f32 %v3925, 0.0
    %v4098 = vmax.f32 %v3927, 0.0
    %v4099 = vmax.f32 %v4007, 0.0
    %v4100 = vmax.f32 %v4009, 0.0
    %v4101 = vmax.f32 %v4089, 0.0
    %v4102 = vmax.f32 %v4091, 0.0
    %v4103 = vpack.c.bf16 %v4095, %v4095
    %v4104 = vpack.c.bf16 %v4096, %v4096
    %v4105 = vpack.c.bf16 %v4097, %v4097
    %v4106 = vpack.c.bf16 %v4098, %v4098
    %v4107 = vpack.c.bf16 %v4099, %v4099
    %v4108 = vpack.c.bf16 %v4100, %v4100
    %v4109 = vpack.c.bf16 %v4101, %v4101
    %v4110 = vpack.c.bf16 %v4102, %v4102
    %v4111 = vld [vmem:[#allocation15] sm:$0xf]
    %v4112 = vld [vmem:[#allocation15 + $0x4] sm:$0xf]
    %v4113 = vld [vmem:[#allocation15 + $0x8] sm:$0xf]
    %v4114 = vld [vmem:[#allocation15 + $0xc] sm:$0xf]
    %v4115 = vld [vmem:[#allocation15 + $0x10] sm:$0xf]
    %v4116 = vld [vmem:[#allocation15 + $0x14] sm:$0xf]
    %v4117 = vld [vmem:[#allocation15 + $0x18] sm:$0xf]
    %v4118 = vld [vmem:[#allocation15 + $0x1c] sm:$0xf]
    %v4119 = vld [vmem:[#allocation15 + $0x20] sm:$0xf]
    %v4120 = vld [vmem:[#allocation15 + $0x24] sm:$0xf]
    %v4121 = vld [vmem:[#allocation15 + $0x28] sm:$0xf]
    %v4122 = vld [vmem:[#allocation15 + $0x2c] sm:$0xf]
    %v4123 = vld [vmem:[#allocation15 + $0x30] sm:$0xf]
    %v4124 = vld [vmem:[#allocation15 + $0x34] sm:$0xf]
    %v4125 = vld [vmem:[#allocation15 + $0x38] sm:$0xf]
    %v4126 = vld [vmem:[#allocation15 + $0x3c] sm:$0xf]
    %v4127 = vld [vmem:[#allocation15 + $0x40] sm:$0xf]
    %v4128 = vld [vmem:[#allocation15 + $0x44] sm:$0xf]
    %v4129 = vld [vmem:[#allocation15 + $0x48] sm:$0xf]
    %v4130 = vld [vmem:[#allocation15 + $0x4c] sm:$0xf]
    %v4131 = vld [vmem:[#allocation15 + $0x50] sm:$0xf]
    %v4132 = vld [vmem:[#allocation15 + $0x54] sm:$0xf]
    %v4133 = vld [vmem:[#allocation15 + $0x58] sm:$0xf]
    %v4134 = vld [vmem:[#allocation15 + $0x5c] sm:$0xf]
    %v4135 = vld [vmem:[#allocation15 + $0x60] sm:$0xf]
    %v4136 = vld [vmem:[#allocation15 + $0x64] sm:$0xf]
    %v4137 = vld [vmem:[#allocation15 + $0x68] sm:$0xf]
    %v4138 = vld [vmem:[#allocation15 + $0x6c] sm:$0xf]
    %v4139 = vld [vmem:[#allocation15 + $0x70] sm:$0xf]
    %v4140 = vld [vmem:[#allocation15 + $0x74] sm:$0xf]
    %v4141 = vld [vmem:[#allocation15 + $0x78] sm:$0xf]
    %v4142 = vld [vmem:[#allocation15 + $0x7c] sm:$0xf]
    %v4143 = vld [vmem:[#allocation15 + $0x80] sm:$0xf]
    %v4144 = vld [vmem:[#allocation15 + $0x84] sm:$0xf]
    %v4145 = vld [vmem:[#allocation15 + $0x88] sm:$0xf]
    %v4146 = vld [vmem:[#allocation15 + $0x8c] sm:$0xf]
    %v4147 = vld [vmem:[#allocation15 + $0x90] sm:$0xf]
    %v4148 = vld [vmem:[#allocation15 + $0x94] sm:$0xf]
    %v4149 = vld [vmem:[#allocation15 + $0x98] sm:$0xf]
    %v4150 = vld [vmem:[#allocation15 + $0x9c] sm:$0xf]
    %v4151 = vld [vmem:[#allocation15 + $0xa0] sm:$0xf]
    %v4152 = vld [vmem:[#allocation15 + $0xa4] sm:$0xf]
    %v4153 = vld [vmem:[#allocation15 + $0xa8] sm:$0xf]
    %v4154 = vld [vmem:[#allocation15 + $0xac] sm:$0xf]
    %v4155 = vld [vmem:[#allocation15 + $0xb0] sm:$0xf]
    %v4156 = vld [vmem:[#allocation15 + $0xb4] sm:$0xf]
    %v4157 = vld [vmem:[#allocation15 + $0xb8] sm:$0xf]
    %v4158 = vld [vmem:[#allocation15 + $0xbc] sm:$0xf]
    %v4159 = vld [vmem:[#allocation15 + $0xc0] sm:$0xf]
    %v4160 = vld [vmem:[#allocation15 + $0xc4] sm:$0xf]
    %v4161 = vld [vmem:[#allocation15 + $0xc8] sm:$0xf]
    %v4162 = vld [vmem:[#allocation15 + $0xcc] sm:$0xf]
    %v4163 = vld [vmem:[#allocation15 + $0xd0] sm:$0xf]
    %v4164 = vld [vmem:[#allocation15 + $0xd4] sm:$0xf]
    %v4165 = vld [vmem:[#allocation15 + $0xd8] sm:$0xf]
    %v4166 = vld [vmem:[#allocation15 + $0xdc] sm:$0xf]
    %v4167 = vld [vmem:[#allocation15 + $0xe0] sm:$0xf]
    %v4168 = vld [vmem:[#allocation15 + $0xe4] sm:$0xf]
    %v4169 = vld [vmem:[#allocation15 + $0xe8] sm:$0xf]
    %v4170 = vld [vmem:[#allocation15 + $0xec] sm:$0xf]
    %v4171 = vld [vmem:[#allocation15 + $0xf0] sm:$0xf]
    %v4172 = vld [vmem:[#allocation15 + $0xf4] sm:$0xf]
    %v4173 = vld [vmem:[#allocation15 + $0xf8] sm:$0xf]
    %v4174 = vld [vmem:[#allocation15 + $0xfc] sm:$0xf]
    %v4175 = vld [vmem:[#allocation15 + $0x100] sm:$0xf]
    %v4176 = vld [vmem:[#allocation15 + $0x104] sm:$0xf]
    %v4177 = vld [vmem:[#allocation15 + $0x108] sm:$0xf]
    %v4178 = vld [vmem:[#allocation15 + $0x10c] sm:$0xf]
    %v4179 = vld [vmem:[#allocation15 + $0x110] sm:$0xf]
    %v4180 = vld [vmem:[#allocation15 + $0x114] sm:$0xf]
    %v4181 = vld [vmem:[#allocation15 + $0x118] sm:$0xf]
    %v4182 = vld [vmem:[#allocation15 + $0x11c] sm:$0xf]
    %v4183 = vld [vmem:[#allocation15 + $0x120] sm:$0xf]
    %v4184 = vld [vmem:[#allocation15 + $0x124] sm:$0xf]
    %v4185 = vld [vmem:[#allocation15 + $0x128] sm:$0xf]
    %v4186 = vld [vmem:[#allocation15 + $0x12c] sm:$0xf]
    %v4187 = vld [vmem:[#allocation15 + $0x130] sm:$0xf]
    %v4188 = vld [vmem:[#allocation15 + $0x134] sm:$0xf]
    %v4189 = vld [vmem:[#allocation15 + $0x138] sm:$0xf]
    %v4190 = vld [vmem:[#allocation15 + $0x13c] sm:$0xf]
    %v4191 = vld [vmem:[#allocation15 + $0x140] sm:$0xf]
    %v4192 = vld [vmem:[#allocation15 + $0x144] sm:$0xf]
    %v4193 = vld [vmem:[#allocation15 + $0x148] sm:$0xf]
    %v4194 = vld [vmem:[#allocation15 + $0x14c] sm:$0xf]
    %v4195 = vld [vmem:[#allocation15 + $0x150] sm:$0xf]
    %v4196 = vld [vmem:[#allocation15 + $0x154] sm:$0xf]
    %v4197 = vld [vmem:[#allocation15 + $0x158] sm:$0xf]
    %v4198 = vld [vmem:[#allocation15 + $0x15c] sm:$0xf]
    %v4199 = vld [vmem:[#allocation15 + $0x160] sm:$0xf]
    %v4200 = vld [vmem:[#allocation15 + $0x164] sm:$0xf]
    %v4201 = vld [vmem:[#allocation15 + $0x168] sm:$0xf]
    %v4202 = vld [vmem:[#allocation15 + $0x16c] sm:$0xf]
    %v4203 = vld [vmem:[#allocation15 + $0x170] sm:$0xf]
    %v4204 = vld [vmem:[#allocation15 + $0x174] sm:$0xf]
    %v4205 = vld [vmem:[#allocation15 + $0x178] sm:$0xf]
    %v4206 = vld [vmem:[#allocation15 + $0x17c] sm:$0xf]
    %v4207 = vld [vmem:[#allocation15 + $0x180] sm:$0xf]
    %v4208 = vld [vmem:[#allocation15 + $0x184] sm:$0xf]
    %v4209 = vld [vmem:[#allocation15 + $0x188] sm:$0xf]
    %v4210 = vld [vmem:[#allocation15 + $0x18c] sm:$0xf]
    %v4211 = vld [vmem:[#allocation15 + $0x190] sm:$0xf]
    %v4212 = vld [vmem:[#allocation15 + $0x194] sm:$0xf]
    %v4213 = vld [vmem:[#allocation15 + $0x198] sm:$0xf]
    %v4214 = vld [vmem:[#allocation15 + $0x19c] sm:$0xf]
    %v4215 = vld [vmem:[#allocation15 + $0x1a0] sm:$0xf]
    %v4216 = vld [vmem:[#allocation15 + $0x1a4] sm:$0xf]
    %v4217 = vld [vmem:[#allocation15 + $0x1a8] sm:$0xf]
    %v4218 = vld [vmem:[#allocation15 + $0x1ac] sm:$0xf]
    %v4219 = vld [vmem:[#allocation15 + $0x1b0] sm:$0xf]
    %v4220 = vld [vmem:[#allocation15 + $0x1b4] sm:$0xf]
    %v4221 = vld [vmem:[#allocation15 + $0x1b8] sm:$0xf]
    %v4222 = vld [vmem:[#allocation15 + $0x1bc] sm:$0xf]
    %v4223 = vld [vmem:[#allocation15 + $0x1c0] sm:$0xf]
    %v4224 = vld [vmem:[#allocation15 + $0x1c4] sm:$0xf]
    %v4225 = vld [vmem:[#allocation15 + $0x1c8] sm:$0xf]
    %v4226 = vld [vmem:[#allocation15 + $0x1cc] sm:$0xf]
    %v4227 = vld [vmem:[#allocation15 + $0x1d0] sm:$0xf]
    %v4228 = vld [vmem:[#allocation15 + $0x1d4] sm:$0xf]
    %v4229 = vld [vmem:[#allocation15 + $0x1d8] sm:$0xf]
    %v4230 = vld [vmem:[#allocation15 + $0x1dc] sm:$0xf]
    %v4231 = vld [vmem:[#allocation15 + $0x1e0] sm:$0xf]
    %v4232 = vld [vmem:[#allocation15 + $0x1e4] sm:$0xf]
    %v4233 = vld [vmem:[#allocation15 + $0x1e8] sm:$0xf]
    %v4234 = vld [vmem:[#allocation15 + $0x1ec] sm:$0xf]
    %v4235 = vld [vmem:[#allocation15 + $0x1f0] sm:$0xf]
    %v4236 = vld [vmem:[#allocation15 + $0x1f4] sm:$0xf]
    %v4237 = vld [vmem:[#allocation15 + $0x1f8] sm:$0xf]
    %v4238 = vld [vmem:[#allocation15 + $0x1fc] sm:$0xf]
    %v4239 = vld [vmem:[#allocation17] sm:$0x1]
    %v4241 = vlaneseq
    %v4242 = vshrl.u32 %v4241, 7
    %v4243 = vsub.s32 0, %v4242
    %v4244 = vrot.slane %v4239, %v4243
    %v4374 = vunpack.c.l.b16 %v4111
    %v4375 = vunpack.c.l.b16 %v4112
    %v4376 = vunpack.c.l.b16 %v4113
    %v4377 = vunpack.c.l.b16 %v4114
    %v4378 = vunpack.c.l.b16 %v4115
    %v4379 = vunpack.c.l.b16 %v4116
    %v4380 = vunpack.c.l.b16 %v4117
    %v4381 = vunpack.c.l.b16 %v4118
    %v4382 = vunpack.c.l.b16 %v4119
    %v4383 = vunpack.c.l.b16 %v4120
    %v4384 = vunpack.c.l.b16 %v4121
    %v4385 = vunpack.c.l.b16 %v4122
    %v4386 = vunpack.c.l.b16 %v4123
    %v4387 = vunpack.c.l.b16 %v4124
    %v4388 = vunpack.c.l.b16 %v4125
    %v4389 = vunpack.c.l.b16 %v4126
    %v4390 = vunpack.c.l.b16 %v4127
    %v4391 = vunpack.c.l.b16 %v4128
    %v4392 = vunpack.c.l.b16 %v4129
    %v4393 = vunpack.c.l.b16 %v4130
    %v4394 = vunpack.c.l.b16 %v4131
    %v4395 = vunpack.c.l.b16 %v4132
    %v4396 = vunpack.c.l.b16 %v4133
    %v4397 = vunpack.c.l.b16 %v4134
    %v4398 = vunpack.c.l.b16 %v4135
    %v4399 = vunpack.c.l.b16 %v4136
    %v4400 = vunpack.c.l.b16 %v4137
    %v4401 = vunpack.c.l.b16 %v4138
    %v4402 = vunpack.c.l.b16 %v4139
    %v4403 = vunpack.c.l.b16 %v4140
    %v4404 = vunpack.c.l.b16 %v4141
    %v4405 = vunpack.c.l.b16 %v4142
    %v4406 = vunpack.c.l.b16 %v4143
    %v4407 = vunpack.c.l.b16 %v4144
    %v4408 = vunpack.c.l.b16 %v4145
    %v4409 = vunpack.c.l.b16 %v4146
    %v4410 = vunpack.c.l.b16 %v4147
    %v4411 = vunpack.c.l.b16 %v4148
    %v4412 = vunpack.c.l.b16 %v4149
    %v4413 = vunpack.c.l.b16 %v4150
    %v4414 = vunpack.c.l.b16 %v4151
    %v4415 = vunpack.c.l.b16 %v4152
    %v4416 = vunpack.c.l.b16 %v4153
    %v4417 = vunpack.c.l.b16 %v4154
    %v4418 = vunpack.c.l.b16 %v4155
    %v4419 = vunpack.c.l.b16 %v4156
    %v4420 = vunpack.c.l.b16 %v4157
    %v4421 = vunpack.c.l.b16 %v4158
    %v4422 = vunpack.c.l.b16 %v4159
    %v4423 = vunpack.c.l.b16 %v4160
    %v4424 = vunpack.c.l.b16 %v4161
    %v4425 = vunpack.c.l.b16 %v4162
    %v4426 = vunpack.c.l.b16 %v4163
    %v4427 = vunpack.c.l.b16 %v4164
    %v4428 = vunpack.c.l.b16 %v4165
    %v4429 = vunpack.c.l.b16 %v4166
    %v4430 = vunpack.c.l.b16 %v4167
    %v4431 = vunpack.c.l.b16 %v4168
    %v4432 = vunpack.c.l.b16 %v4169
    %v4433 = vunpack.c.l.b16 %v4170
    %v4434 = vunpack.c.l.b16 %v4171
    %v4435 = vunpack.c.l.b16 %v4172
    %v4436 = vunpack.c.l.b16 %v4173
    %v4437 = vunpack.c.l.b16 %v4174
    %v4438 = vunpack.c.l.b16 %v4175
    %v4439 = vunpack.c.l.b16 %v4176
    %v4440 = vunpack.c.l.b16 %v4177
    %v4441 = vunpack.c.l.b16 %v4178
    %v4442 = vunpack.c.l.b16 %v4179
    %v4443 = vunpack.c.l.b16 %v4180
    %v4444 = vunpack.c.l.b16 %v4181
    %v4445 = vunpack.c.l.b16 %v4182
    %v4446 = vunpack.c.l.b16 %v4183
    %v4447 = vunpack.c.l.b16 %v4184
    %v4448 = vunpack.c.l.b16 %v4185
    %v4449 = vunpack.c.l.b16 %v4186
    %v4450 = vunpack.c.l.b16 %v4187
    %v4451 = vunpack.c.l.b16 %v4188
    %v4452 = vunpack.c.l.b16 %v4189
    %v4453 = vunpack.c.l.b16 %v4190
    %v4454 = vunpack.c.l.b16 %v4191
    %v4455 = vunpack.c.l.b16 %v4192
    %v4456 = vunpack.c.l.b16 %v4193
    %v4457 = vunpack.c.l.b16 %v4194
    %v4458 = vunpack.c.l.b16 %v4195
    %v4459 = vunpack.c.l.b16 %v4196
    %v4460 = vunpack.c.l.b16 %v4197
    %v4461 = vunpack.c.l.b16 %v4198
    %v4462 = vunpack.c.l.b16 %v4199
    %v4463 = vunpack.c.l.b16 %v4200
    %v4464 = vunpack.c.l.b16 %v4201
    %v4465 = vunpack.c.l.b16 %v4202
    %v4466 = vunpack.c.l.b16 %v4203
    %v4467 = vunpack.c.l.b16 %v4204
    %v4468 = vunpack.c.l.b16 %v4205
    %v4469 = vunpack.c.l.b16 %v4206
    %v4470 = vunpack.c.l.b16 %v4207
    %v4471 = vunpack.c.l.b16 %v4208
    %v4472 = vunpack.c.l.b16 %v4209
    %v4473 = vunpack.c.l.b16 %v4210
    %v4474 = vunpack.c.l.b16 %v4211
    %v4475 = vunpack.c.l.b16 %v4212
    %v4476 = vunpack.c.l.b16 %v4213
    %v4477 = vunpack.c.l.b16 %v4214
    %v4478 = vunpack.c.l.b16 %v4215
    %v4479 = vunpack.c.l.b16 %v4216
    %v4480 = vunpack.c.l.b16 %v4217
    %v4481 = vunpack.c.l.b16 %v4218
    %v4482 = vunpack.c.l.b16 %v4219
    %v4483 = vunpack.c.l.b16 %v4220
    %v4484 = vunpack.c.l.b16 %v4221
    %v4485 = vunpack.c.l.b16 %v4222
    %v4486 = vunpack.c.l.b16 %v4223
    %v4487 = vunpack.c.l.b16 %v4224
    %v4488 = vunpack.c.l.b16 %v4225
    %v4489 = vunpack.c.l.b16 %v4226
    %v4490 = vunpack.c.l.b16 %v4227
    %v4491 = vunpack.c.l.b16 %v4228
    %v4492 = vunpack.c.l.b16 %v4229
    %v4493 = vunpack.c.l.b16 %v4230
    %v4494 = vunpack.c.l.b16 %v4231
    %v4495 = vunpack.c.l.b16 %v4232
    %v4496 = vunpack.c.l.b16 %v4233
    %v4497 = vunpack.c.l.b16 %v4234
    %v4498 = vunpack.c.l.b16 %v4235
    %v4499 = vunpack.c.l.b16 %v4236
    %v4500 = vunpack.c.l.b16 %v4237
    %v4501 = vunpack.c.l.b16 %v4238
    %v4502 = vpack.c.b16 %v4375, %v4374
    %v4503 = vpack.c.b16 %v4377, %v4376
    %v4504 = vpack.c.b16 %v4379, %v4378
    %v4505 = vpack.c.b16 %v4381, %v4380
    %v4506 = vpack.c.b16 %v4383, %v4382
    %v4507 = vpack.c.b16 %v4385, %v4384
    %v4508 = vpack.c.b16 %v4387, %v4386
    %v4509 = vpack.c.b16 %v4389, %v4388
    %v4510 = vpack.c.b16 %v4391, %v4390
    %v4511 = vpack.c.b16 %v4393, %v4392
    %v4512 = vpack.c.b16 %v4395, %v4394
    %v4513 = vpack.c.b16 %v4397, %v4396
    %v4514 = vpack.c.b16 %v4399, %v4398
    %v4515 = vpack.c.b16 %v4401, %v4400
    %v4516 = vpack.c.b16 %v4403, %v4402
    %v4517 = vpack.c.b16 %v4405, %v4404
    %v4518 = vpack.c.b16 %v4407, %v4406
    %v4519 = vpack.c.b16 %v4409, %v4408
    %v4520 = vpack.c.b16 %v4411, %v4410
    %v4521 = vpack.c.b16 %v4413, %v4412
    %v4522 = vpack.c.b16 %v4415, %v4414
    %v4523 = vpack.c.b16 %v4417, %v4416
    %v4524 = vpack.c.b16 %v4419, %v4418
    %v4525 = vpack.c.b16 %v4421, %v4420
    %v4526 = vpack.c.b16 %v4423, %v4422
    %v4527 = vpack.c.b16 %v4425, %v4424
    %v4528 = vpack.c.b16 %v4427, %v4426
    %v4529 = vpack.c.b16 %v4429, %v4428
    %v4530 = vpack.c.b16 %v4431, %v4430
    %v4531 = vpack.c.b16 %v4433, %v4432
    %v4532 = vpack.c.b16 %v4435, %v4434
    %v4533 = vpack.c.b16 %v4437, %v4436
    %v4534 = vpack.c.b16 %v4439, %v4438
    %v4535 = vpack.c.b16 %v4441, %v4440
    %v4536 = vpack.c.b16 %v4443, %v4442
    %v4537 = vpack.c.b16 %v4445, %v4444
    %v4538 = vpack.c.b16 %v4447, %v4446
    %v4539 = vpack.c.b16 %v4449, %v4448
    %v4540 = vpack.c.b16 %v4451, %v4450
    %v4541 = vpack.c.b16 %v4453, %v4452
    %v4542 = vpack.c.b16 %v4455, %v4454
    %v4543 = vpack.c.b16 %v4457, %v4456
    %v4544 = vpack.c.b16 %v4459, %v4458
    %v4545 = vpack.c.b16 %v4461, %v4460
    %v4546 = vpack.c.b16 %v4463, %v4462
    %v4547 = vpack.c.b16 %v4465, %v4464
    %v4548 = vpack.c.b16 %v4467, %v4466
    %v4549 = vpack.c.b16 %v4469, %v4468
    %v4550 = vpack.c.b16 %v4471, %v4470
    %v4551 = vpack.c.b16 %v4473, %v4472
    %v4552 = vpack.c.b16 %v4475, %v4474
    %v4553 = vpack.c.b16 %v4477, %v4476
    %v4554 = vpack.c.b16 %v4479, %v4478
    %v4555 = vpack.c.b16 %v4481, %v4480
    %v4556 = vpack.c.b16 %v4483, %v4482
    %v4557 = vpack.c.b16 %v4485, %v4484
    %v4558 = vpack.c.b16 %v4487, %v4486
    %v4559 = vpack.c.b16 %v4489, %v4488
    %v4560 = vpack.c.b16 %v4491, %v4490
    %v4561 = vpack.c.b16 %v4493, %v4492
    %v4562 = vpack.c.b16 %v4495, %v4494
    %v4563 = vpack.c.b16 %v4497, %v4496
    %v4564 = vpack.c.b16 %v4499, %v4498
    %v4565 = vpack.c.b16 %v4501, %v4500
    %4630 = vmatprep.subr.bf16.mxu0 0
    %4631 = vmatpush1.bf16.msra.mxu0 %v4502
    %4632 = vmatprep.subr.bf16.mxu0 0
    %4633 = vmatpush1.bf16.msra.mxu0 %v4503
    %4634 = vmatprep.subr.bf16.mxu0 0
    %4635 = vmatpush1.bf16.msra.mxu0 %v4504
    %4636 = vmatprep.subr.bf16.mxu0 0
    %4637 = vmatpush1.bf16.msra.mxu0 %v4505
    %4638 = vmatprep.subr.bf16.mxu0 0
    %4639 = vmatpush1.bf16.msra.mxu0 %v4506
    %4640 = vmatprep.subr.bf16.mxu0 0
    %4641 = vmatpush1.bf16.msra.mxu0 %v4507
    %4642 = vmatprep.subr.bf16.mxu0 0
    %4643 = vmatpush1.bf16.msra.mxu0 %v4508
    %4644 = vmatprep.subr.bf16.mxu0 0
    %4645 = vmatpush1.bf16.msra.mxu0 %v4509
    %4646 = vmatprep.subr.bf16.mxu0 0
    %4647 = vmatpush1.bf16.msra.mxu0 %v4510
    %4648 = vmatprep.subr.bf16.mxu0 0
    %4649 = vmatpush1.bf16.msra.mxu0 %v4511
    %4650 = vmatprep.subr.bf16.mxu0 0
    %4651 = vmatpush1.bf16.msra.mxu0 %v4512
    %4652 = vmatprep.subr.bf16.mxu0 0
    %4653 = vmatpush1.bf16.msra.mxu0 %v4513
    %4654 = vmatprep.subr.bf16.mxu0 0
    %4655 = vmatpush1.bf16.msra.mxu0 %v4514
    %4656 = vmatprep.subr.bf16.mxu0 0
    %4657 = vmatpush1.bf16.msra.mxu0 %v4515
    %4658 = vmatprep.subr.bf16.mxu0 0
    %4659 = vmatpush1.bf16.msra.mxu0 %v4516
    %4660 = vmatprep.subr.bf16.mxu0 0
    %4661 = vmatpush1.bf16.msra.mxu0 %v4517
    %4662 = vmatprep.mubr.bf16.mxu0 %v4104
    %4663 = vmatmul.mubr.bf16.gmra.mrb[0].mxu0 %v4103
    %v4664 = vpop.f32.mrb[0].mxu0
    %v4665 = vadd.f32 %v4244, %v4664
    %v4666 = vpop.f32.mrb[0].mxu0
    %v4667 = vpop.f32.mrb[0].mxu0
    %v4668 = vpop.f32.mrb[0].mxu0
    %4669 = vdwg.mxu0
    %4670 = vmatprep.subr.bf16.mxu0 0
    %4671 = vmatpush1.bf16.msra.mxu0 %v4518
    %4672 = vmatprep.subr.bf16.mxu0 0
    %4673 = vmatpush1.bf16.msra.mxu0 %v4519
    %4674 = vmatprep.subr.bf16.mxu0 0
    %4675 = vmatpush1.bf16.msra.mxu0 %v4520
    %4676 = vmatprep.subr.bf16.mxu0 0
    %4677 = vmatpush1.bf16.msra.mxu0 %v4521
    %4678 = vmatprep.subr.bf16.mxu0 0
    %4679 = vmatpush1.bf16.msra.mxu0 %v4522
    %4680 = vmatprep.subr.bf16.mxu0 0
    %4681 = vmatpush1.bf16.msra.mxu0 %v4523
    %4682 = vmatprep.subr.bf16.mxu0 0
    %4683 = vmatpush1.bf16.msra.mxu0 %v4524
    %4684 = vmatprep.subr.bf16.mxu0 0
    %4685 = vmatpush1.bf16.msra.mxu0 %v4525
    %4686 = vmatprep.subr.bf16.mxu0 0
    %4687 = vmatpush1.bf16.msra.mxu0 %v4526
    %4688 = vmatprep.subr.bf16.mxu0 0
    %4689 = vmatpush1.bf16.msra.mxu0 %v4527
    %4690 = vmatprep.subr.bf16.mxu0 0
    %4691 = vmatpush1.bf16.msra.mxu0 %v4528
    %4692 = vmatprep.subr.bf16.mxu0 0
    %4693 = vmatpush1.bf16.msra.mxu0 %v4529
    %4694 = vmatprep.subr.bf16.mxu0 0
    %4695 = vmatpush1.bf16.msra.mxu0 %v4530
    %4696 = vmatprep.subr.bf16.mxu0 0
    %4697 = vmatpush1.bf16.msra.mxu0 %v4531
    %4698 = vmatprep.subr.bf16.mxu0 0
    %4699 = vmatpush1.bf16.msra.mxu0 %v4532
    %4700 = vmatprep.subr.bf16.mxu0 0
    %4701 = vmatpush1.bf16.msra.mxu0 %v4533
    %4702 = vmatprep.mubr.bf16.mxu0 %v4106
    %4703 = vmatmul.mubr.bf16.gmra.mrb[0].mxu0 %v4105
    %v4704 = vpop.f32.mrb[0].mxu0
    %v4705 = vadd.f32 %v4665, %v4704
    %v4706 = vpop.f32.mrb[0].mxu0
    %v4707 = vpop.f32.mrb[0].mxu0
    %v4708 = vpop.f32.mrb[0].mxu0
    %4709 = vdwg.mxu0
    %4710 = vmatprep.subr.bf16.mxu0 0
    %4711 = vmatpush1.bf16.msra.mxu0 %v4534
    %4712 = vmatprep.subr.bf16.mxu0 0
    %4713 = vmatpush1.bf16.msra.mxu0 %v4535
    %4714 = vmatprep.subr.bf16.mxu0 0
    %4715 = vmatpush1.bf16.msra.mxu0 %v4536
    %4716 = vmatprep.subr.bf16.mxu0 0
    %4717 = vmatpush1.bf16.msra.mxu0 %v4537
    %4718 = vmatprep.subr.bf16.mxu0 0
    %4719 = vmatpush1.bf16.msra.mxu0 %v4538
    %4720 = vmatprep.subr.bf16.mxu0 0
    %4721 = vmatpush1.bf16.msra.mxu0 %v4539
    %4722 = vmatprep.subr.bf16.mxu0 0
    %4723 = vmatpush1.bf16.msra.mxu0 %v4540
    %4724 = vmatprep.subr.bf16.mxu0 0
    %4725 = vmatpush1.bf16.msra.mxu0 %v4541
    %4726 = vmatprep.subr.bf16.mxu0 0
    %4727 = vmatpush1.bf16.msra.mxu0 %v4542
    %4728 = vmatprep.subr.bf16.mxu0 0
    %4729 = vmatpush1.bf16.msra.mxu0 %v4543
    %4730 = vmatprep.subr.bf16.mxu0 0
    %4731 = vmatpush1.bf16.msra.mxu0 %v4544
    %4732 = vmatprep.subr.bf16.mxu0 0
    %4733 = vmatpush1.bf16.msra.mxu0 %v4545
    %4734 = vmatprep.subr.bf16.mxu0 0
    %4735 = vmatpush1.bf16.msra.mxu0 %v4546
    %4736 = vmatprep.subr.bf16.mxu0 0
    %4737 = vmatpush1.bf16.msra.mxu0 %v4547
    %4738 = vmatprep.subr.bf16.mxu0 0
    %4739 = vmatpush1.bf16.msra.mxu0 %v4548
    %4740 = vmatprep.subr.bf16.mxu0 0
    %4741 = vmatpush1.bf16.msra.mxu0 %v4549
    %4742 = vmatprep.mubr.bf16.mxu0 %v4108
    %4743 = vmatmul.mubr.bf16.gmra.mrb[0].mxu0 %v4107
    %v4744 = vpop.f32.mrb[0].mxu0
    %v4745 = vadd.f32 %v4705, %v4744
    %v4746 = vpop.f32.mrb[0].mxu0
    %v4747 = vpop.f32.mrb[0].mxu0
    %v4748 = vpop.f32.mrb[0].mxu0
    %4749 = vdwg.mxu0
    %4750 = vmatprep.subr.bf16.mxu0 0
    %4751 = vmatpush1.bf16.msra.mxu0 %v4550
    %4752 = vmatprep.subr.bf16.mxu0 0
    %4753 = vmatpush1.bf16.msra.mxu0 %v4551
    %4754 = vmatprep.subr.bf16.mxu0 0
    %4755 = vmatpush1.bf16.msra.mxu0 %v4552
    %4756 = vmatprep.subr.bf16.mxu0 0
    %4757 = vmatpush1.bf16.msra.mxu0 %v4553
    %4758 = vmatprep.subr.bf16.mxu0 0
    %4759 = vmatpush1.bf16.msra.mxu0 %v4554
    %4760 = vmatprep.subr.bf16.mxu0 0
    %4761 = vmatpush1.bf16.msra.mxu0 %v4555
    %4762 = vmatprep.subr.bf16.mxu0 0
    %4763 = vmatpush1.bf16.msra.mxu0 %v4556
    %4764 = vmatprep.subr.bf16.mxu0 0
    %4765 = vmatpush1.bf16.msra.mxu0 %v4557
    %4766 = vmatprep.subr.bf16.mxu0 0
    %4767 = vmatpush1.bf16.msra.mxu0 %v4558
    %4768 = vmatprep.subr.bf16.mxu0 0
    %4769 = vmatpush1.bf16.msra.mxu0 %v4559
    %4770 = vmatprep.subr.bf16.mxu0 0
    %4771 = vmatpush1.bf16.msra.mxu0 %v4560
    %4772 = vmatprep.subr.bf16.mxu0 0
    %4773 = vmatpush1.bf16.msra.mxu0 %v4561
    %4774 = vmatprep.subr.bf16.mxu0 0
    %4775 = vmatpush1.bf16.msra.mxu0 %v4562
    %4776 = vmatprep.subr.bf16.mxu0 0
    %4777 = vmatpush1.bf16.msra.mxu0 %v4563
    %4778 = vmatprep.subr.bf16.mxu0 0
    %4779 = vmatpush1.bf16.msra.mxu0 %v4564
    %4780 = vmatprep.subr.bf16.mxu0 0
    %4781 = vmatpush1.bf16.msra.mxu0 %v4565
    %4782 = vmatprep.mubr.bf16.mxu0 %v4110
    %4783 = vmatmul.mubr.bf16.gmra.mrb[0].mxu0 %v4109
    %v4784 = vpop.f32.mrb[0].mxu0
    %v4785 = vadd.f32 %v4745, %v4784
    %v4786 = vpop.f32.mrb[0].mxu0
    %v4787 = vpop.f32.mrb[0].mxu0
    %v4788 = vpop.f32.mrb[0].mxu0
    %4789 = vdwg.mxu0
    %4790 = vst [vmem:[%s15] sm:$0xff] %v4785
    %vm4791 = vcmp.lt.s32.totalorder %v422, 5
    %v4792 = vsel %vm4791, %v4785, -1e+30
    %4793 = vmax.xlane.f32.xlu0 %v4792
    %v4794 = vpop.xlane.xlu0 %4793
    %v4795 = vsub.f32 %v4792, %v4794
    %v4796 = vmul.f32 %v4795, 1.442695
    %v4797 = vpow.pop %v4796
    %4798 = vadd.xlane.f32.xlu0 %v4797
    %v4799 = vpop.xlane.xlu0 %4798
    %v4800 = vrcp.pop %v4799
    %v4801 = vmul.f32 %v4797, %v4800
    %4802 = vst [vmem:[%s16] sm:$0xff] %v4801
    // Predicated region
    $region98: #{attention_forward.1} parent=1 // pred_check
      _
    $region99: #{attention_forward.1} parent=1 // pred_check_branch
      %4804 = sbr.rel (0) target = $region101
    $region100: #{attention_forward.1} parent=1 // pred_region
      _
    $region101: #{attention_forward.1} parent=1 // pred_fallthru
      _
    // Predicated region
    $region102: #{attention_forward.1} parent=1 // pred_check
      _
    $region103: #{attention_forward.1} parent=1 // pred_check_branch
      %4806 = sbr.rel (0) target = $region105
    $region104: #{attention_forward.1} parent=1 // pred_region
      _
    $region105: #{attention_forward.1} parent=1 // pred_fallthru
      _
    // Predicated region
    $region106: #{attention_forward.1} parent=1 // pred_check
      _
    $region107: #{attention_forward.1} parent=1 // pred_check_branch
      %4808 = sbr.rel (0) target = $region109
    $region108: #{attention_forward.1} parent=1 // pred_region
      _
    $region109: #{attention_forward.1} parent=1 // pred_fallthru
      _
    // Predicated region
    $region110: #{attention_forward.1} parent=1 // pred_check
      _
    $region111: #{attention_forward.1} parent=1 // pred_check_branch
      %4810 = sbr.rel (0) target = $region113
    $region112: #{attention_forward.1} parent=1 // pred_region
      _
    $region113: #{attention_forward.1} parent=1 // pred_fallthru
      _
    // Predicated region
    $region114: #{attention_forward.1} parent=1 // pred_check
      _
    $region115: #{attention_forward.1} parent=1 // pred_check_branch
      %4812 = sbr.rel (0) target = $region117
    $region116: #{attention_forward.1} parent=1 // pred_region
      _
    $region117: #{attention_forward.1} parent=1 // pred_fallthru
      _
    // Predicated region
    $region118: #{attention_forward.1} parent=1 // pred_check
      _
    $region119: #{attention_forward.1} parent=1 // pred_check_branch
      %4814 = sbr.rel (0) target = $region121
    $region120: #{attention_forward.1} parent=1 // pred_region
      _
    $region121: #{attention_forward.1} parent=1 // pred_fallthru
      _
    // Predicated region
    $region122: #{attention_forward.1} parent=1 // pred_check
      _
    $region123: #{attention_forward.1} parent=1 // pred_check_branch
      %4816 = sbr.rel (0) target = $region125
    $region124: #{attention_forward.1} parent=1 // pred_region
      _
    $region125: #{attention_forward.1} parent=1 // pred_fallthru
      _
    // Predicated region
    $region126: #{attention_forward.1} parent=1 // pred_check
      _
    $region127: #{attention_forward.1} parent=1 // pred_check_branch
      %4818 = sbr.rel (0) target = $region129
    $region128: #{attention_forward.1} parent=1 // pred_region
      _
    $region129: #{attention_forward.1} parent=1 // pred_fallthru
      _
    %4819 = vsyncpa [#allocation5], 1
    %4820 = vsyncpa [#allocation7], 1
    %4821 = vsyncpa [#allocation10], 1
    %4822 = vsyncpa [#allocation13], 1
    %4823 = vsyncpa [#allocation16], 1

</llo_original>
